<compile_context>
chip_gen: v6e
topology: v6e:2x2x1
jax: 0.10.0
libtpu: 0.0.40
codegen_flags: <defaults>
</compile_context>

<pallas_src>
import functools
import math

import jax
import jax.numpy as jnp
from jax.experimental import pallas as pl
from jax.experimental.pallas import tpu as pltpu


# Explicit scoped-VMEM budget: above the default scoped limit on all generations but
# safely under v7x's 64 MiB physical VMEM per TensorCore.
_VMEM_LIMIT_BYTES = 48 * 1024 * 1024
_TILE = 256  # multiple of 128 (v5e MXU geometry) and 256 (v6e/v7x MXU geometry)


def _pick_tile(dim, preferred=_TILE):
    """Largest 'nice' (128-multiple) tile that divides dim; fall back to the full dim."""
    for t in (preferred, 512, 256, 128):
        if t <= dim and dim % t == 0:
            return t
    return dim


# ----------------------------- Pallas kernels ------------------------------

def _matmul_kernel(x_ref, w_ref, b_ref, o_ref, acc_ref, *, relu):
    # Tiled y = x @ w + b, f32 accumulation; bias (and activation) only on the last K step.
    k = pl.program_id(2)

    @pl.when(k == 0)
    def _init():
        acc_ref[...] = jnp.zeros_like(acc_ref)

    acc_ref[...] += jnp.dot(x_ref[...], w_ref[...], preferred_element_type=jnp.float32)

    @pl.when(k == pl.num_programs(2) - 1)
    def _finalize():
        y = acc_ref[...] + b_ref[...].astype(jnp.float32)
        if relu:
            y = jnp.maximum(y, 0.0)
        o_ref[...] = y.astype(o_ref.dtype)


def _matmul_residual_kernel(x_ref, w_ref, b_ref, r_ref, o_ref, acc_ref):
    # Tiled y = residual + x @ w + b (residual added once, on the last K step).
    k = pl.program_id(2)

    @pl.when(k == 0)
    def _init():
        acc_ref[...] = jnp.zeros_like(acc_ref)

    acc_ref[...] += jnp.dot(x_ref[...], w_ref[...], preferred_element_type=jnp.float32)

    @pl.when(k == pl.num_programs(2) - 1)
    def _finalize():
        o_ref[...] = (acc_ref[...] + b_ref[...].astype(jnp.float32)
                      + r_ref[...].astype(jnp.float32)).astype(o_ref.dtype)


def _ln_matmul_kernel(x_ref, g_ref, beta_ref, w_ref, b_ref, ln_ref, o_ref, *, relu):
    # Fused LayerNorm (f32 stats, eps=1e-5) + projection; emits both the normalized
    # activations (needed later as the residual) and the projection output.
    x = x_ref[...].astype(jnp.float32)
    mu = jnp.mean(x, axis=-1, keepdims=True)
    xc = x - mu
    var = jnp.mean(xc * xc, axis=-1, keepdims=True)
    xn = xc * jax.lax.rsqrt(var + 1e-5)
    xn = xn * g_ref[...] + beta_ref[...]
    ln_ref[...] = xn.astype(ln_ref.dtype)

    y = jnp.dot(xn.astype(w_ref.dtype), w_ref[...], preferred_element_type=jnp.float32)
    y = y + b_ref[...].astype(jnp.float32)
    if relu:
        y = jnp.maximum(y, 0.0)
    o_ref[...] = y.astype(o_ref.dtype)


def _layernorm_kernel(x_ref, g_ref, b_ref, o_ref):
    x = x_ref[...].astype(jnp.float32)
    mu = jnp.mean(x, axis=-1, keepdims=True)
    xc = x - mu
    var = jnp.mean(xc * xc, axis=-1, keepdims=True)
    xn = xc * jax.lax.rsqrt(var + 1e-5)
    o_ref[...] = (xn * g_ref[...] + b_ref[...]).astype(o_ref.dtype)


def _mhsa_kernel(qkv_ref, o_ref, *, h, d_k, scale):
    # One batch element: packed (T, 3*n_units) QKV in, lane-dense (T, n_units) context out.
    # Heads are static lane slices; per-head softmax stays in f32, matmuls are bf16->f32.
    n = h * d_k
    qkv = qkv_ref[...]                                        # (T, 3n), bf16
    for i in range(h):
        sl = slice(i * d_k, (i + 1) * d_k)
        q = qkv[:, sl]                                        # (T, d_k)
        k = qkv[:, n + i * d_k: n + (i + 1) * d_k]            # (T, d_k)
        v = qkv[:, 2 * n + i * d_k: 2 * n + (i + 1) * d_k]    # (T, d_k)
        # scores = q @ k^T  (contract d_k on both operands; no explicit transpose op)
        s = jax.lax.dot_general(q, k, (((1,), (1,)), ((), ())),
                                preferred_element_type=jnp.float32) * scale
        m = jnp.max(s, axis=-1, keepdims=True)
        p = jnp.exp(s - m)
        l = jnp.sum(p, axis=-1, keepdims=True)
        p = p * pl.reciprocal(l, approx=True)                 # EUP, off the VALU
        ctx = jnp.dot(p.astype(qkv.dtype), v, preferred_element_type=jnp.float32)
        o_ref[:, sl] = ctx.astype(o_ref.dtype)


# ----------------------------- pallas_call wrappers -------------------------

def _tiled_linear(x, w, b, *, residual=None, relu=False, out_dtype=jnp.float32,
                  alias_residual=False):
    """y = [residual +] act(x @ w + b) with (M, N, K) tiling and f32 accumulation."""
    M, K = x.shape
    _, N = w.shape
    tm, tn, tk = _pick_tile(M), _pick_tile(N), _pick_tile(K)
    num_k = K // tk

    w_kwargs = {}
    if num_k >= 3:
        # Deeper buffering on the weight panels hides the weight DMA on long K loops (FF).
        w_kwargs["pipeline_mode"] = pl.Buffered(3)

    in_specs = [
        pl.BlockSpec((tm, tk), lambda i, j, k: (i, k)),
        pl.BlockSpec((tk, tn), lambda i, j, k: (k, j), **w_kwargs),
        pl.BlockSpec((1, tn), lambda i, j, k: (0, j)),
    ]
    args = [x, w, b]
    call_kwargs = {}
    if residual is not None:
        in_specs.append(pl.BlockSpec((tm, tn), lambda i, j, k: (i, j)))
        args.append(residual)
        kernel = _matmul_residual_kernel
        if alias_residual:
            call_kwargs["input_output_aliases"] = {3: 0}   # write result in place over residual
    else:
        kernel = functools.partial(_matmul_kernel, relu=relu)

    return pl.pallas_call(
        kernel,
        out_shape=jax.ShapeDtypeStruct((M, N), out_dtype),
        grid=(M // tm, N // tn, num_k),
        in_specs=in_specs,
        out_specs=pl.BlockSpec((tm, tn), lambda i, j, k: (i, j)),
        scratch_shapes=[pltpu.VMEM((tm, tn), jnp.float32)],
        compiler_params=pltpu.CompilerParams(
            dimension_semantics=("parallel", "parallel", "arbitrary"),
            vmem_limit_bytes=_VMEM_LIMIT_BYTES),
        **call_kwargs,
    )(*args)


def _ln_matmul(x, g, beta, w, b, *, relu=False, out_dtype=jnp.bfloat16):
    """(LayerNorm(x), act(LayerNorm(x) @ w + b)); K (= n_units) handled as a single block."""
    M, K = x.shape
    _, N = w.shape
    tm, tn = _pick_tile(M), _pick_tile(N)
    return pl.pallas_call(
        functools.partial(_ln_matmul_kernel, relu=relu),
        out_shape=(jax.ShapeDtypeStruct((M, K), jnp.float32),
                   jax.ShapeDtypeStruct((M, N), out_dtype)),
        grid=(M // tm, N // tn),
        in_specs=[
            pl.BlockSpec((tm, K), lambda i, j: (i, 0)),
            pl.BlockSpec((1, K), lambda i, j: (0, 0)),
            pl.BlockSpec((1, K), lambda i, j: (0, 0)),
            pl.BlockSpec((K, tn), lambda i, j: (0, j)),
            pl.BlockSpec((1, tn), lambda i, j: (0, j)),
        ],
        out_specs=(
            pl.BlockSpec((tm, K), lambda i, j: (i, 0)),
            pl.BlockSpec((tm, tn), lambda i, j: (i, j)),
        ),
        compiler_params=pltpu.CompilerParams(
            dimension_semantics=("parallel", "arbitrary"),
            vmem_limit_bytes=_VMEM_LIMIT_BYTES),
    )(x, g, beta, w, b)


def layernorm(x, g, b):
    M, N = x.shape
    tm = _pick_tile(M)
    return pl.pallas_call(
        _layernorm_kernel,
        out_shape=jax.ShapeDtypeStruct((M, N), jnp.float32),
        grid=(M // tm,),
        in_specs=[
            pl.BlockSpec((tm, N), lambda i: (i, 0)),
            pl.BlockSpec((1, N), lambda i: (0, 0)),
            pl.BlockSpec((1, N), lambda i: (0, 0)),
        ],
        out_specs=pl.BlockSpec((tm, N), lambda i: (i, 0)),
        compiler_params=pltpu.CompilerParams(
            dimension_semantics=("parallel",),
            vmem_limit_bytes=_VMEM_LIMIT_BYTES),
    )(x, g, b)


def mhsa_core(qkv, h, d_k):
    # qkv: (B, T, 3*n_units) bf16 -> context (B, T, n_units) bf16.  Grid over B only,
    # all heads per step, so the output store is lane-dense (n_units wide).
    B, T, _ = qkv.shape
    n = h * d_k
    return pl.pallas_call(
        functools.partial(_mhsa_kernel, h=h, d_k=d_k, scale=1.0 / math.sqrt(d_k)),
        out_shape=jax.ShapeDtypeStruct((B, T, n), jnp.bfloat16),
        grid=(B,),
        in_specs=[pl.BlockSpec((None, T, 3 * n), lambda b: (b, 0, 0))],
        out_specs=pl.BlockSpec((None, T, n), lambda b: (b, 0, 0)),
        compiler_params=pltpu.CompilerParams(
            dimension_semantics=("parallel",),
            vmem_limit_bytes=_VMEM_LIMIT_BYTES),
    )(qkv)


# ----------------------------- model forward --------------------------------

def transformer_encoder_forward(x, params, *, n_layers, h):
    """EEND-VC encoder: linear_in -> n_layers x TransformerEncoderBlock -> LayerNorm_out."""
    B, T, idim = x.shape
    n_units = params["w_in"].shape[1]
    d_k = n_units // h
    M = B * T

    # Input projection (operands bf16, f32 accumulate); residual stream `e` stays f32.
    e = _tiled_linear(x.reshape(M, idim).astype(jnp.bfloat16),
                      params["w_in"], params["b_in"], out_dtype=jnp.float32)

    for i in range(n_layers):
        lp = params["layers"][i]

        # --- TransformerEncoderBlock ---
        # lnorm1 + fused QKV projection (packed [Q|K|V] output, lane-dense).
        e_ln, qkv = _ln_matmul(e, lp["ln1_g"], lp["ln1_b"], lp["w_qkv"], lp["b_qkv"])
        # Multi-head self-attention, heads sliced in-kernel, no XLA transposes.
        ctx = mhsa_core(qkv.reshape(B, T, 3 * n_units), h, d_k)
        # Output projection + residual over lnorm1(e), written in place over e_ln.
        e = _tiled_linear(ctx.reshape(M, n_units), lp["wo"], lp["bo"],
                          residual=e_ln, alias_residual=True, out_dtype=jnp.float32)
        # lnorm2 + fused FF1 (+ ReLU); hidden kept in bf16 to halve its HBM traffic.
        e_ln2, hid = _ln_matmul(e, lp["ln2_g"], lp["ln2_b"], lp["w1"], lp["b1"], relu=True)
        # FF2 + residual over lnorm2(e), written in place over e_ln2.
        e = _tiled_linear(hid, lp["w2"], lp["b2"],
                          residual=e_ln2, alias_residual=True, out_dtype=jnp.float32)

    return layernorm(e, params["ln_out_g"], params["ln_out_b"])


# ----------------------------- parameter handling ----------------------------

def prepare_params(params):
    """Cast matmul weights to bf16 and pack Wq/Wk/Wv into a single (n_units, 3*n_units) weight."""
    bf = lambda w: w.astype(jnp.bfloat16)
    out = dict(
        w_in=bf(params["w_in"]), b_in=params["b_in"],
        ln_out_g=params["ln_out_g"], ln_out_b=params["ln_out_b"],
        layers=[],
    )
    for lp in params["layers"]:
        out["layers"].append(dict(
            ln1_g=lp["ln1_g"], ln1_b=lp["ln1_b"],
            w_qkv=bf(jnp.concatenate([lp["wq"], lp["wk"], lp["wv"]], axis=1)),
            b_qkv=jnp.concatenate([lp["bq"], lp["bk"], lp["bv"]], axis=1),
            wo=bf(lp["wo"]), bo=lp["bo"],
            ln2_g=lp["ln2_g"], ln2_b=lp["ln2_b"],
            w1=bf(lp["w1"]), b1=lp["b1"],
            w2=bf(lp["w2"]), b2=lp["b2"],
        ))
    return out


def init_params(key, idim, n_layers, n_units, e_units):
    def lin(key, fan_in, fan_out):
        kw, kb = jax.random.split(key)
        w = jax.random.normal(kw, (fan_in, fan_out), jnp.float32) / math.sqrt(fan_in)
        b = jax.random.normal(kb, (1, fan_out), jnp.float32) * 0.01
        return w, b

    keys = jax.random.split(key, n_layers + 1)
    w_in, b_in = lin(keys[0], idim, n_units)
    layers = []
    for i in range(n_layers):
        lk = jax.random.split(keys[i + 1], 6)
        wq, bq = lin(lk[0], n_units, n_units)
        wk, bk = lin(lk[1], n_units, n_units)
        wv, bv = lin(lk[2], n_units, n_units)
        wo, bo = lin(lk[3], n_units, n_units)
        w1, b1 = lin(lk[4], n_units, e_units)
        w2, b2 = lin(lk[5], e_units, n_units)
        layers.append(dict(
            ln1_g=jnp.ones((1, n_units), jnp.float32), ln1_b=jnp.zeros((1, n_units), jnp.float32),
            wq=wq, bq=bq, wk=wk, bk=bk, wv=wv, bv=bv, wo=wo, bo=bo,
            ln2_g=jnp.ones((1, n_units), jnp.float32), ln2_b=jnp.zeros((1, n_units), jnp.float32),
            w1=w1, b1=b1, w2=w2, b2=b2,
        ))
    return dict(
        w_in=w_in, b_in=b_in, layers=layers,
        ln_out_g=jnp.ones((1, n_units), jnp.float32),
        ln_out_b=jnp.zeros((1, n_units), jnp.float32),
    )


# ----------------------------- pure-JAX reference (all f32) ------------------

def _ref_layernorm(x, g, b):
    mu = jnp.mean(x, axis=-1, keepdims=True)
    var = jnp.mean((x - mu) ** 2, axis=-1, keepdims=True)
    return (x - mu) / jnp.sqrt(var + 1e-5) * g + b


def ref_forward(x, params, *, n_layers, h):
    B, T, idim = x.shape
    n_units = params["w_in"].shape[1]
    d_k = n_units // h
    e = x.reshape(B * T, idim) @ params["w_in"] + params["b_in"]
    for i in range(n_layers):
        lp = params["layers"][i]
        e = _ref_layernorm(e, lp["ln1_g"], lp["ln1_b"])
        q = (e @ lp["wq"] + lp["bq"]).reshape(B, T, h, d_k).transpose(0, 2, 1, 3)
        k = (e @ lp["wk"] + lp["bk"]).reshape(B, T, h, d_k).transpose(0, 2, 1, 3)
        v = (e @ lp["wv"] + lp["bv"]).reshape(B, T, h, d_k).transpose(0, 2, 1, 3)
        s = jnp.einsum("bhqd,bhkd->bhqk", q, k) / math.sqrt(d_k)
        p = jax.nn.softmax(s, axis=-1)
        a = jnp.einsum("bhqk,bhkd->bhqd", p, v).transpose(0, 2, 1, 3).reshape(B * T, n_units)
        e = e + (a @ lp["wo"] + lp["bo"])
        e = _ref_layernorm(e, lp["ln2_g"], lp["ln2_b"])
        hdn = jnp.maximum(e @ lp["w1"] + lp["b1"], 0.0)
        e = e + (hdn @ lp["w2"] + lp["b2"])
    return _ref_layernorm(e, params["ln_out_g"], params["ln_out_b"])


# ----------------------------- main ------------------------------------------

if __name__ == "__main__":
    B, T, idim = 2, 8, 16
    n_layers, n_units, e_units, h = 2, 32, 64, 8

    key = jax.random.PRNGKey(0)
    kx, kp = jax.random.split(key)
    x = jax.random.normal(kx, (B, T, idim), jnp.float32)
    params = init_params(kp, idim, n_layers, n_units, e_units)
    kparams = prepare_params(params)

    fwd = jax.jit(functools.partial(transformer_encoder_forward, n_layers=n_layers, h=h))
    out = jax.block_until_ready(fwd(x, kparams))

    ref = ref_forward(x, params, n_layers=n_layers, h=h)
    assert out.shape == (B * T, n_units)
    # Kernel uses bf16 matmul operands (f32 accumulate) vs. the all-f32 reference,
    # hence the loose tolerance; structural errors would be O(1).
    err = float(jnp.max(jnp.abs(out - ref)))
    assert jnp.allclose(out, ref, rtol=5e-2, atol=5e-2), f"max abs err {err}"

    print("KERNEL_OK")
</pallas_src>

<mosaic_0001>
module attributes {stable_mosaic.version = 11 : i64} {
  func.func @_mhsa_kernel(%arg0: i32, %arg1: memref<1x8x96xbf16, #tpu.memory_space<vmem>>, %arg2: memref<1x8x32xbf16, #tpu.memory_space<vmem>>) attributes {dimension_semantics = [#tpu.dimension_semantics<parallel>], iteration_bounds = array<i64: 2>, scalar_prefetch = 0 : i64, scratch_operands = 0 : i64, tpu.core_type = #tpu.core_type<tc>, window_params = [{transform_indices = @transform_0, window_bounds = array<i64: 1, 8, 96>}, {transform_indices = @transform_1, window_bounds = array<i64: 1, 8, 32>}]} {
    %c0 = arith.constant 0 : index
    %c0_0 = arith.constant 0 : index
    %c0_1 = arith.constant 0 : index
    %0 = vector.load %arg1[%c0, %c0_0, %c0_1] : memref<1x8x96xbf16, #tpu.memory_space<vmem>>, vector<1x8x96xbf16>
    %1 = vector.shape_cast %0 : vector<1x8x96xbf16> to vector<8x96xbf16>
    %2 = vector.extract_strided_slice %1 {offsets = [0, 0], sizes = [8, 4], strides = [1, 1]} : vector<8x96xbf16> to vector<8x4xbf16>
    %3 = vector.extract_strided_slice %1 {offsets = [0, 32], sizes = [8, 4], strides = [1, 1]} : vector<8x96xbf16> to vector<8x4xbf16>
    %4 = vector.extract_strided_slice %1 {offsets = [0, 64], sizes = [8, 4], strides = [1, 1]} : vector<8x96xbf16> to vector<8x4xbf16>
    %cst = arith.constant dense<0.000000e+00> : vector<8x8xf32>
    %5 = tpu.matmul %2, %3, %cst {dimension_numbers = #tpu.dot_dimension_numbers<[1], [1], [0], [0], [0, 0, 1, 0], [], []>} : vector<8x4xbf16>, vector<8x4xbf16>, vector<8x8xf32> -> vector<8x8xf32>
    %cst_2 = arith.constant 5.000000e-01 : f32
    %6 = vector.broadcast %cst_2 : f32 to vector<8x8xf32>
    %7 = arith.mulf %5, %6 : vector<8x8xf32>
    %cst_3 = arith.constant dense<0xFF800000> : vector<8xf32>
    %8 = vector.multi_reduction <maximumf>, %7, %cst_3 [1] : vector<8x8xf32> to vector<8xf32>
    %9 = vector.shape_cast %8 : vector<8xf32> to vector<8x1xf32>
    %10 = vector.broadcast %9 : vector<8x1xf32> to vector<8x8xf32>
    %11 = arith.subf %7, %10 : vector<8x8xf32>
    %12 = math.exp %11 : vector<8x8xf32>
    %cst_4 = arith.constant dense<0.000000e+00> : vector<8xf32>
    %13 = vector.multi_reduction <add>, %12, %cst_4 [1] : vector<8x8xf32> to vector<8xf32>
    %14 = vector.shape_cast %13 : vector<8xf32> to vector<8x1xf32>
    %15 = tpu.reciprocal %14 {approx = true} : vector<8x1xf32> -> vector<8x1xf32>
    %16 = vector.broadcast %15 : vector<8x1xf32> to vector<8x8xf32>
    %17 = arith.mulf %12, %16 : vector<8x8xf32>
    %18 = arith.truncf %17 : vector<8x8xf32> to vector<8x8xbf16>
    %cst_5 = arith.constant dense<0.000000e+00> : vector<8x4xf32>
    %19 = tpu.matmul %18, %4, %cst_5 {dimension_numbers = #tpu.dot_dimension_numbers<[1], [0], [0], [1], [0, 0, 1, 1], [], []>} : vector<8x8xbf16>, vector<8x4xbf16>, vector<8x4xf32> -> vector<8x4xf32>
    %20 = arith.truncf %19 : vector<8x4xf32> to vector<8x4xbf16>
    %c0_6 = arith.constant 0 : index
    %c0_7 = arith.constant 0 : index
    %c0_8 = arith.constant 0 : index
    %21 = vector.load %arg2[%c0_6, %c0_7, %c0_8] : memref<1x8x32xbf16, #tpu.memory_space<vmem>>, vector<1x8x4xbf16>
    %22 = vector.shape_cast %21 : vector<1x8x4xbf16> to vector<8x4xbf16>
    %23 = vector.shape_cast %20 : vector<8x4xbf16> to vector<1x8x4xbf16>
    tpu.vector_store %arg2[%c0_6, %c0_7, %c0_8], %23 {strides = array<i32>} : memref<1x8x32xbf16, #tpu.memory_space<vmem>>, vector<1x8x4xbf16>,
    %24 = vector.extract_strided_slice %1 {offsets = [0, 4], sizes = [8, 4], strides = [1, 1]} : vector<8x96xbf16> to vector<8x4xbf16>
    %25 = vector.extract_strided_slice %1 {offsets = [0, 36], sizes = [8, 4], strides = [1, 1]} : vector<8x96xbf16> to vector<8x4xbf16>
    %26 = vector.extract_strided_slice %1 {offsets = [0, 68], sizes = [8, 4], strides = [1, 1]} : vector<8x96xbf16> to vector<8x4xbf16>
    %cst_9 = arith.constant dense<0.000000e+00> : vector<8x8xf32>
    %27 = tpu.matmul %24, %25, %cst_9 {dimension_numbers = #tpu.dot_dimension_numbers<[1], [1], [0], [0], [0, 0, 1, 0], [], []>} : vector<8x4xbf16>, vector<8x4xbf16>, vector<8x8xf32> -> vector<8x8xf32>
    %cst_10 = arith.constant 5.000000e-01 : f32
    %28 = vector.broadcast %cst_10 : f32 to vector<8x8xf32>
    %29 = arith.mulf %27, %28 : vector<8x8xf32>
    %cst_11 = arith.constant dense<0xFF800000> : vector<8xf32>
    %30 = vector.multi_reduction <maximumf>, %29, %cst_11 [1] : vector<8x8xf32> to vector<8xf32>
    %31 = vector.shape_cast %30 : vector<8xf32> to vector<8x1xf32>
    %32 = vector.broadcast %31 : vector<8x1xf32> to vector<8x8xf32>
    %33 = arith.subf %29, %32 : vector<8x8xf32>
    %34 = math.exp %33 : vector<8x8xf32>
    %cst_12 = arith.constant dense<0.000000e+00> : vector<8xf32>
    %35 = vector.multi_reduction <add>, %34, %cst_12 [1] : vector<8x8xf32> to vector<8xf32>
    %36 = vector.shape_cast %35 : vector<8xf32> to vector<8x1xf32>
    %37 = tpu.reciprocal %36 {approx = true} : vector<8x1xf32> -> vector<8x1xf32>
    %38 = vector.broadcast %37 : vector<8x1xf32> to vector<8x8xf32>
    %39 = arith.mulf %34, %38 : vector<8x8xf32>
    %40 = arith.truncf %39 : vector<8x8xf32> to vector<8x8xbf16>
    %cst_13 = arith.constant dense<0.000000e+00> : vector<8x4xf32>
    %41 = tpu.matmul %40, %26, %cst_13 {dimension_numbers = #tpu.dot_dimension_numbers<[1], [0], [0], [1], [0, 0, 1, 1], [], []>} : vector<8x8xbf16>, vector<8x4xbf16>, vector<8x4xf32> -> vector<8x4xf32>
    %42 = arith.truncf %41 : vector<8x4xf32> to vector<8x4xbf16>
    %c0_14 = arith.constant 0 : index
    %c0_15 = arith.constant 0 : index
    %c4 = arith.constant 4 : index
    %43 = vector.load %arg2[%c0_14, %c0_15, %c4] : memref<1x8x32xbf16, #tpu.memory_space<vmem>>, vector<1x8x4xbf16>
    %44 = vector.shape_cast %43 : vector<1x8x4xbf16> to vector<8x4xbf16>
    %45 = vector.shape_cast %42 : vector<8x4xbf16> to vector<1x8x4xbf16>
    tpu.vector_store %arg2[%c0_14, %c0_15, %c4], %45 {strides = array<i32>} : memref<1x8x32xbf16, #tpu.memory_space<vmem>>, vector<1x8x4xbf16>,
    %46 = vector.extract_strided_slice %1 {offsets = [0, 8], sizes = [8, 4], strides = [1, 1]} : vector<8x96xbf16> to vector<8x4xbf16>
    %47 = vector.extract_strided_slice %1 {offsets = [0, 40], sizes = [8, 4], strides = [1, 1]} : vector<8x96xbf16> to vector<8x4xbf16>
    %48 = vector.extract_strided_slice %1 {offsets = [0, 72], sizes = [8, 4], strides = [1, 1]} : vector<8x96xbf16> to vector<8x4xbf16>
    %cst_16 = arith.constant dense<0.000000e+00> : vector<8x8xf32>
    %49 = tpu.matmul %46, %47, %cst_16 {dimension_numbers = #tpu.dot_dimension_numbers<[1], [1], [0], [0], [0, 0, 1, 0], [], []>} : vector<8x4xbf16>, vector<8x4xbf16>, vector<8x8xf32> -> vector<8x8xf32>
    %cst_17 = arith.constant 5.000000e-01 : f32
    %50 = vector.broadcast %cst_17 : f32 to vector<8x8xf32>
    %51 = arith.mulf %49, %50 : vector<8x8xf32>
    %cst_18 = arith.constant dense<0xFF800000> : vector<8xf32>
    %52 = vector.multi_reduction <maximumf>, %51, %cst_18 [1] : vector<8x8xf32> to vector<8xf32>
    %53 = vector.shape_cast %52 : vector<8xf32> to vector<8x1xf32>
    %54 = vector.broadcast %53 : vector<8x1xf32> to vector<8x8xf32>
    %55 = arith.subf %51, %54 : vector<8x8xf32>
    %56 = math.exp %55 : vector<8x8xf32>
    %cst_19 = arith.constant dense<0.000000e+00> : vector<8xf32>
    %57 = vector.multi_reduction <add>, %56, %cst_19 [1] : vector<8x8xf32> to vector<8xf32>
    %58 = vector.shape_cast %57 : vector<8xf32> to vector<8x1xf32>
    %59 = tpu.reciprocal %58 {approx = true} : vector<8x1xf32> -> vector<8x1xf32>
    %60 = vector.broadcast %59 : vector<8x1xf32> to vector<8x8xf32>
    %61 = arith.mulf %56, %60 : vector<8x8xf32>
    %62 = arith.truncf %61 : vector<8x8xf32> to vector<8x8xbf16>
    %cst_20 = arith.constant dense<0.000000e+00> : vector<8x4xf32>
    %63 = tpu.matmul %62, %48, %cst_20 {dimension_numbers = #tpu.dot_dimension_numbers<[1], [0], [0], [1], [0, 0, 1, 1], [], []>} : vector<8x8xbf16>, vector<8x4xbf16>, vector<8x4xf32> -> vector<8x4xf32>
    %64 = arith.truncf %63 : vector<8x4xf32> to vector<8x4xbf16>
    %c0_21 = arith.constant 0 : index
    %c0_22 = arith.constant 0 : index
    %c8 = arith.constant 8 : index
    %65 = vector.load %arg2[%c0_21, %c0_22, %c8] : memref<1x8x32xbf16, #tpu.memory_space<vmem>>, vector<1x8x4xbf16>
    %66 = vector.shape_cast %65 : vector<1x8x4xbf16> to vector<8x4xbf16>
    %67 = vector.shape_cast %64 : vector<8x4xbf16> to vector<1x8x4xbf16>
    tpu.vector_store %arg2[%c0_21, %c0_22, %c8], %67 {strides = array<i32>} : memref<1x8x32xbf16, #tpu.memory_space<vmem>>, vector<1x8x4xbf16>,
    %68 = vector.extract_strided_slice %1 {offsets = [0, 12], sizes = [8, 4], strides = [1, 1]} : vector<8x96xbf16> to vector<8x4xbf16>
    %69 = vector.extract_strided_slice %1 {offsets = [0, 44], sizes = [8, 4], strides = [1, 1]} : vector<8x96xbf16> to vector<8x4xbf16>
    %70 = vector.extract_strided_slice %1 {offsets = [0, 76], sizes = [8, 4], strides = [1, 1]} : vector<8x96xbf16> to vector<8x4xbf16>
    %cst_23 = arith.constant dense<0.000000e+00> : vector<8x8xf32>
    %71 = tpu.matmul %68, %69, %cst_23 {dimension_numbers = #tpu.dot_dimension_numbers<[1], [1], [0], [0], [0, 0, 1, 0], [], []>} : vector<8x4xbf16>, vector<8x4xbf16>, vector<8x8xf32> -> vector<8x8xf32>
    %cst_24 = arith.constant 5.000000e-01 : f32
    %72 = vector.broadcast %cst_24 : f32 to vector<8x8xf32>
    %73 = arith.mulf %71, %72 : vector<8x8xf32>
    %cst_25 = arith.constant dense<0xFF800000> : vector<8xf32>
    %74 = vector.multi_reduction <maximumf>, %73, %cst_25 [1] : vector<8x8xf32> to vector<8xf32>
    %75 = vector.shape_cast %74 : vector<8xf32> to vector<8x1xf32>
    %76 = vector.broadcast %75 : vector<8x1xf32> to vector<8x8xf32>
    %77 = arith.subf %73, %76 : vector<8x8xf32>
    %78 = math.exp %77 : vector<8x8xf32>
    %cst_26 = arith.constant dense<0.000000e+00> : vector<8xf32>
    %79 = vector.multi_reduction <add>, %78, %cst_26 [1] : vector<8x8xf32> to vector<8xf32>
    %80 = vector.shape_cast %79 : vector<8xf32> to vector<8x1xf32>
    %81 = tpu.reciprocal %80 {approx = true} : vector<8x1xf32> -> vector<8x1xf32>
    %82 = vector.broadcast %81 : vector<8x1xf32> to vector<8x8xf32>
    %83 = arith.mulf %78, %82 : vector<8x8xf32>
    %84 = arith.truncf %83 : vector<8x8xf32> to vector<8x8xbf16>
    %cst_27 = arith.constant dense<0.000000e+00> : vector<8x4xf32>
    %85 = tpu.matmul %84, %70, %cst_27 {dimension_numbers = #tpu.dot_dimension_numbers<[1], [0], [0], [1], [0, 0, 1, 1], [], []>} : vector<8x8xbf16>, vector<8x4xbf16>, vector<8x4xf32> -> vector<8x4xf32>
    %86 = arith.truncf %85 : vector<8x4xf32> to vector<8x4xbf16>
    %c0_28 = arith.constant 0 : index
    %c0_29 = arith.constant 0 : index
    %c12 = arith.constant 12 : index
    %87 = vector.load %arg2[%c0_28, %c0_29, %c12] : memref<1x8x32xbf16, #tpu.memory_space<vmem>>, vector<1x8x4xbf16>
    %88 = vector.shape_cast %87 : vector<1x8x4xbf16> to vector<8x4xbf16>
    %89 = vector.shape_cast %86 : vector<8x4xbf16> to vector<1x8x4xbf16>
    tpu.vector_store %arg2[%c0_28, %c0_29, %c12], %89 {strides = array<i32>} : memref<1x8x32xbf16, #tpu.memory_space<vmem>>, vector<1x8x4xbf16>,
    %90 = vector.extract_strided_slice %1 {offsets = [0, 16], sizes = [8, 4], strides = [1, 1]} : vector<8x96xbf16> to vector<8x4xbf16>
    %91 = vector.extract_strided_slice %1 {offsets = [0, 48], sizes = [8, 4], strides = [1, 1]} : vector<8x96xbf16> to vector<8x4xbf16>
    %92 = vector.extract_strided_slice %1 {offsets = [0, 80], sizes = [8, 4], strides = [1, 1]} : vector<8x96xbf16> to vector<8x4xbf16>
    %cst_30 = arith.constant dense<0.000000e+00> : vector<8x8xf32>
    %93 = tpu.matmul %90, %91, %cst_30 {dimension_numbers = #tpu.dot_dimension_numbers<[1], [1], [0], [0], [0, 0, 1, 0], [], []>} : vector<8x4xbf16>, vector<8x4xbf16>, vector<8x8xf32> -> vector<8x8xf32>
    %cst_31 = arith.constant 5.000000e-01 : f32
    %94 = vector.broadcast %cst_31 : f32 to vector<8x8xf32>
    %95 = arith.mulf %93, %94 : vector<8x8xf32>
    %cst_32 = arith.constant dense<0xFF800000> : vector<8xf32>
    %96 = vector.multi_reduction <maximumf>, %95, %cst_32 [1] : vector<8x8xf32> to vector<8xf32>
    %97 = vector.shape_cast %96 : vector<8xf32> to vector<8x1xf32>
    %98 = vector.broadcast %97 : vector<8x1xf32> to vector<8x8xf32>
    %99 = arith.subf %95, %98 : vector<8x8xf32>
    %100 = math.exp %99 : vector<8x8xf32>
    %cst_33 = arith.constant dense<0.000000e+00> : vector<8xf32>
    %101 = vector.multi_reduction <add>, %100, %cst_33 [1] : vector<8x8xf32> to vector<8xf32>
    %102 = vector.shape_cast %101 : vector<8xf32> to vector<8x1xf32>
    %103 = tpu.reciprocal %102 {approx = true} : vector<8x1xf32> -> vector<8x1xf32>
    %104 = vector.broadcast %103 : vector<8x1xf32> to vector<8x8xf32>
    %105 = arith.mulf %100, %104 : vector<8x8xf32>
    %106 = arith.truncf %105 : vector<8x8xf32> to vector<8x8xbf16>
    %cst_34 = arith.constant dense<0.000000e+00> : vector<8x4xf32>
    %107 = tpu.matmul %106, %92, %cst_34 {dimension_numbers = #tpu.dot_dimension_numbers<[1], [0], [0], [1], [0, 0, 1, 1], [], []>} : vector<8x8xbf16>, vector<8x4xbf16>, vector<8x4xf32> -> vector<8x4xf32>
    %108 = arith.truncf %107 : vector<8x4xf32> to vector<8x4xbf16>
    %c0_35 = arith.constant 0 : index
    %c0_36 = arith.constant 0 : index
    %c16 = arith.constant 16 : index
    %109 = vector.load %arg2[%c0_35, %c0_36, %c16] : memref<1x8x32xbf16, #tpu.memory_space<vmem>>, vector<1x8x4xbf16>
    %110 = vector.shape_cast %109 : vector<1x8x4xbf16> to vector<8x4xbf16>
    %111 = vector.shape_cast %108 : vector<8x4xbf16> to vector<1x8x4xbf16>
    tpu.vector_store %arg2[%c0_35, %c0_36, %c16], %111 {strides = array<i32>} : memref<1x8x32xbf16, #tpu.memory_space<vmem>>, vector<1x8x4xbf16>,
    %112 = vector.extract_strided_slice %1 {offsets = [0, 20], sizes = [8, 4], strides = [1, 1]} : vector<8x96xbf16> to vector<8x4xbf16>
    %113 = vector.extract_strided_slice %1 {offsets = [0, 52], sizes = [8, 4], strides = [1, 1]} : vector<8x96xbf16> to vector<8x4xbf16>
    %114 = vector.extract_strided_slice %1 {offsets = [0, 84], sizes = [8, 4], strides = [1, 1]} : vector<8x96xbf16> to vector<8x4xbf16>
    %cst_37 = arith.constant dense<0.000000e+00> : vector<8x8xf32>
    %115 = tpu.matmul %112, %113, %cst_37 {dimension_numbers = #tpu.dot_dimension_numbers<[1], [1], [0], [0], [0, 0, 1, 0], [], []>} : vector<8x4xbf16>, vector<8x4xbf16>, vector<8x8xf32> -> vector<8x8xf32>
    %cst_38 = arith.constant 5.000000e-01 : f32
    %116 = vector.broadcast %cst_38 : f32 to vector<8x8xf32>
    %117 = arith.mulf %115, %116 : vector<8x8xf32>
    %cst_39 = arith.constant dense<0xFF800000> : vector<8xf32>
    %118 = vector.multi_reduction <maximumf>, %117, %cst_39 [1] : vector<8x8xf32> to vector<8xf32>
    %119 = vector.shape_cast %118 : vector<8xf32> to vector<8x1xf32>
    %120 = vector.broadcast %119 : vector<8x1xf32> to vector<8x8xf32>
    %121 = arith.subf %117, %120 : vector<8x8xf32>
    %122 = math.exp %121 : vector<8x8xf32>
    %cst_40 = arith.constant dense<0.000000e+00> : vector<8xf32>
    %123 = vector.multi_reduction <add>, %122, %cst_40 [1] : vector<8x8xf32> to vector<8xf32>
    %124 = vector.shape_cast %123 : vector<8xf32> to vector<8x1xf32>
    %125 = tpu.reciprocal %124 {approx = true} : vector<8x1xf32> -> vector<8x1xf32>
    %126 = vector.broadcast %125 : vector<8x1xf32> to vector<8x8xf32>
    %127 = arith.mulf %122, %126 : vector<8x8xf32>
    %128 = arith.truncf %127 : vector<8x8xf32> to vector<8x8xbf16>
    %cst_41 = arith.constant dense<0.000000e+00> : vector<8x4xf32>
    %129 = tpu.matmul %128, %114, %cst_41 {dimension_numbers = #tpu.dot_dimension_numbers<[1], [0], [0], [1], [0, 0, 1, 1], [], []>} : vector<8x8xbf16>, vector<8x4xbf16>, vector<8x4xf32> -> vector<8x4xf32>
    %130 = arith.truncf %129 : vector<8x4xf32> to vector<8x4xbf16>
    %c0_42 = arith.constant 0 : index
    %c0_43 = arith.constant 0 : index
    %c20 = arith.constant 20 : index
    %131 = vector.load %arg2[%c0_42, %c0_43, %c20] : memref<1x8x32xbf16, #tpu.memory_space<vmem>>, vector<1x8x4xbf16>
    %132 = vector.shape_cast %131 : vector<1x8x4xbf16> to vector<8x4xbf16>
    %133 = vector.shape_cast %130 : vector<8x4xbf16> to vector<1x8x4xbf16>
    tpu.vector_store %arg2[%c0_42, %c0_43, %c20], %133 {strides = array<i32>} : memref<1x8x32xbf16, #tpu.memory_space<vmem>>, vector<1x8x4xbf16>,
    %134 = vector.extract_strided_slice %1 {offsets = [0, 24], sizes = [8, 4], strides = [1, 1]} : vector<8x96xbf16> to vector<8x4xbf16>
    %135 = vector.extract_strided_slice %1 {offsets = [0, 56], sizes = [8, 4], strides = [1, 1]} : vector<8x96xbf16> to vector<8x4xbf16>
    %136 = vector.extract_strided_slice %1 {offsets = [0, 88], sizes = [8, 4], strides = [1, 1]} : vector<8x96xbf16> to vector<8x4xbf16>
    %cst_44 = arith.constant dense<0.000000e+00> : vector<8x8xf32>
    %137 = tpu.matmul %134, %135, %cst_44 {dimension_numbers = #tpu.dot_dimension_numbers<[1], [1], [0], [0], [0, 0, 1, 0], [], []>} : vector<8x4xbf16>, vector<8x4xbf16>, vector<8x8xf32> -> vector<8x8xf32>
    %cst_45 = arith.constant 5.000000e-01 : f32
    %138 = vector.broadcast %cst_45 : f32 to vector<8x8xf32>
    %139 = arith.mulf %137, %138 : vector<8x8xf32>
    %cst_46 = arith.constant dense<0xFF800000> : vector<8xf32>
    %140 = vector.multi_reduction <maximumf>, %139, %cst_46 [1] : vector<8x8xf32> to vector<8xf32>
    %141 = vector.shape_cast %140 : vector<8xf32> to vector<8x1xf32>
    %142 = vector.broadcast %141 : vector<8x1xf32> to vector<8x8xf32>
    %143 = arith.subf %139, %142 : vector<8x8xf32>
    %144 = math.exp %143 : vector<8x8xf32>
    %cst_47 = arith.constant dense<0.000000e+00> : vector<8xf32>
    %145 = vector.multi_reduction <add>, %144, %cst_47 [1] : vector<8x8xf32> to vector<8xf32>
    %146 = vector.shape_cast %145 : vector<8xf32> to vector<8x1xf32>
    %147 = tpu.reciprocal %146 {approx = true} : vector<8x1xf32> -> vector<8x1xf32>
    %148 = vector.broadcast %147 : vector<8x1xf32> to vector<8x8xf32>
    %149 = arith.mulf %144, %148 : vector<8x8xf32>
    %150 = arith.truncf %149 : vector<8x8xf32> to vector<8x8xbf16>
    %cst_48 = arith.constant dense<0.000000e+00> : vector<8x4xf32>
    %151 = tpu.matmul %150, %136, %cst_48 {dimension_numbers = #tpu.dot_dimension_numbers<[1], [0], [0], [1], [0, 0, 1, 1], [], []>} : vector<8x8xbf16>, vector<8x4xbf16>, vector<8x4xf32> -> vector<8x4xf32>
    %152 = arith.truncf %151 : vector<8x4xf32> to vector<8x4xbf16>
    %c0_49 = arith.constant 0 : index
    %c0_50 = arith.constant 0 : index
    %c24 = arith.constant 24 : index
    %153 = vector.load %arg2[%c0_49, %c0_50, %c24] : memref<1x8x32xbf16, #tpu.memory_space<vmem>>, vector<1x8x4xbf16>
    %154 = vector.shape_cast %153 : vector<1x8x4xbf16> to vector<8x4xbf16>
    %155 = vector.shape_cast %152 : vector<8x4xbf16> to vector<1x8x4xbf16>
    tpu.vector_store %arg2[%c0_49, %c0_50, %c24], %155 {strides = array<i32>} : memref<1x8x32xbf16, #tpu.memory_space<vmem>>, vector<1x8x4xbf16>,
    %156 = vector.extract_strided_slice %1 {offsets = [0, 28], sizes = [8, 4], strides = [1, 1]} : vector<8x96xbf16> to vector<8x4xbf16>
    %157 = vector.extract_strided_slice %1 {offsets = [0, 60], sizes = [8, 4], strides = [1, 1]} : vector<8x96xbf16> to vector<8x4xbf16>
    %158 = vector.extract_strided_slice %1 {offsets = [0, 92], sizes = [8, 4], strides = [1, 1]} : vector<8x96xbf16> to vector<8x4xbf16>
    %cst_51 = arith.constant dense<0.000000e+00> : vector<8x8xf32>
    %159 = tpu.matmul %156, %157, %cst_51 {dimension_numbers = #tpu.dot_dimension_numbers<[1], [1], [0], [0], [0, 0, 1, 0], [], []>} : vector<8x4xbf16>, vector<8x4xbf16>, vector<8x8xf32> -> vector<8x8xf32>
    %cst_52 = arith.constant 5.000000e-01 : f32
    %160 = vector.broadcast %cst_52 : f32 to vector<8x8xf32>
    %161 = arith.mulf %159, %160 : vector<8x8xf32>
    %cst_53 = arith.constant dense<0xFF800000> : vector<8xf32>
    %162 = vector.multi_reduction <maximumf>, %161, %cst_53 [1] : vector<8x8xf32> to vector<8xf32>
    %163 = vector.shape_cast %162 : vector<8xf32> to vector<8x1xf32>
    %164 = vector.broadcast %163 : vector<8x1xf32> to vector<8x8xf32>
    %165 = arith.subf %161, %164 : vector<8x8xf32>
    %166 = math.exp %165 : vector<8x8xf32>
    %cst_54 = arith.constant dense<0.000000e+00> : vector<8xf32>
    %167 = vector.multi_reduction <add>, %166, %cst_54 [1] : vector<8x8xf32> to vector<8xf32>
    %168 = vector.shape_cast %167 : vector<8xf32> to vector<8x1xf32>
    %169 = tpu.reciprocal %168 {approx = true} : vector<8x1xf32> -> vector<8x1xf32>
    %170 = vector.broadcast %169 : vector<8x1xf32> to vector<8x8xf32>
    %171 = arith.mulf %166, %170 : vector<8x8xf32>
    %172 = arith.truncf %171 : vector<8x8xf32> to vector<8x8xbf16>
    %cst_55 = arith.constant dense<0.000000e+00> : vector<8x4xf32>
    %173 = tpu.matmul %172, %158, %cst_55 {dimension_numbers = #tpu.dot_dimension_numbers<[1], [0], [0], [1], [0, 0, 1, 1], [], []>} : vector<8x8xbf16>, vector<8x4xbf16>, vector<8x4xf32> -> vector<8x4xf32>
    %174 = arith.truncf %173 : vector<8x4xf32> to vector<8x4xbf16>
    %c0_56 = arith.constant 0 : index
    %c0_57 = arith.constant 0 : index
    %c28 = arith.constant 28 : index
    %175 = vector.load %arg2[%c0_56, %c0_57, %c28] : memref<1x8x32xbf16, #tpu.memory_space<vmem>>, vector<1x8x4xbf16>
    %176 = vector.shape_cast %175 : vector<1x8x4xbf16> to vector<8x4xbf16>
    %177 = vector.shape_cast %174 : vector<8x4xbf16> to vector<1x8x4xbf16>
    tpu.vector_store %arg2[%c0_56, %c0_57, %c28], %177 {strides = array<i32>} : memref<1x8x32xbf16, #tpu.memory_space<vmem>>, vector<1x8x4xbf16>,
    return
  }
  func.func @transform_0(%arg0: i32) -> (i32, i32, i32) {
    %c0_i32 = arith.constant 0 : i32
    %c0_i32_0 = arith.constant 0 : i32
    %c0_i32_1 = arith.constant 0 : i32
    return %arg0, %c0_i32, %c0_i32_0 : i32, i32, i32
  }
  func.func @transform_1(%arg0: i32) -> (i32, i32, i32) {
    %c0_i32 = arith.constant 0 : i32
    %c0_i32_0 = arith.constant 0 : i32
    %c0_i32_1 = arith.constant 0 : i32
    return %arg0, %c0_i32, %c0_i32_0 : i32, i32, i32
  }
}

module attributes {stable_mosaic.version = 11 : i64} {
  func.func @_matmul_kernel(%arg0: i32, %arg1: i32, %arg2: i32, %arg3: memref<16x16xbf16, #tpu.memory_space<vmem>>, %arg4: memref<16x32xbf16, #tpu.memory_space<vmem>>, %arg5: memref<1x32xf32, #tpu.memory_space<vmem>>, %arg6: memref<16x32xf32, #tpu.memory_space<vmem>>, %arg7: memref<16x32xf32, #tpu.memory_space<vmem>>) attributes {dimension_semantics = [#tpu.dimension_semantics<parallel>, #tpu.dimension_semantics<parallel>, #tpu.dimension_semantics<arbitrary>], iteration_bounds = array<i64: 1, 1, 1>, scalar_prefetch = 0 : i64, scratch_operands = 1 : i64, tpu.core_type = #tpu.core_type<tc>, window_params = [{transform_indices = @transform_0, window_bounds = array<i64: 16, 16>}, {transform_indices = @transform_1, window_bounds = array<i64: 16, 32>}, {transform_indices = @transform_2, window_bounds = array<i64: 1, 32>}, {transform_indices = @transform_3, window_bounds = array<i64: 16, 32>}]} {
    %c0_i32 = arith.constant 0 : i32
    %0 = arith.cmpi eq, %arg2, %c0_i32 : i32
    %1 = arith.extui %0 : i1 to i32
    %c0_i32_0 = arith.constant 0 : i32
    %2 = arith.cmpi ne, %1, %c0_i32_0 : i32
    scf.if %2 {
      %cst_10 = arith.constant 0.000000e+00 : f32
      %12 = vector.broadcast %cst_10 : f32 to vector<16x32xf32>
      %c0_11 = arith.constant 0 : index
      %c0_12 = arith.constant 0 : index
      %13 = vector.load %arg7[%c0_11, %c0_12] : memref<16x32xf32, #tpu.memory_space<vmem>>, vector<16x32xf32>
      tpu.vector_store %arg7[%c0_11, %c0_12], %12 {strides = array<i32>} : memref<16x32xf32, #tpu.memory_space<vmem>>, vector<16x32xf32>,
    } else {
    }
    %c0 = arith.constant 0 : index
    %c0_1 = arith.constant 0 : index
    %3 = vector.load %arg7[%c0, %c0_1] : memref<16x32xf32, #tpu.memory_space<vmem>>, vector<16x32xf32>
    %c0_2 = arith.constant 0 : index
    %c0_3 = arith.constant 0 : index
    %4 = vector.load %arg3[%c0_2, %c0_3] : memref<16x16xbf16, #tpu.memory_space<vmem>>, vector<16x16xbf16>
    %c0_4 = arith.constant 0 : index
    %c0_5 = arith.constant 0 : index
    %5 = vector.load %arg4[%c0_4, %c0_5] : memref<16x32xbf16, #tpu.memory_space<vmem>>, vector<16x32xbf16>
    %cst = arith.constant dense<0.000000e+00> : vector<16x32xf32>
    %6 = tpu.matmul %4, %5, %cst {dimension_numbers = #tpu.dot_dimension_numbers<[1], [0], [0], [1], [0, 0, 1, 1], [], []>} : vector<16x16xbf16>, vector<16x32xbf16>, vector<16x32xf32> -> vector<16x32xf32>
    %7 = arith.addf %3, %6 : vector<16x32xf32>
    %c0_6 = arith.constant 0 : index
    %c0_7 = arith.constant 0 : index
    %8 = vector.load %arg7[%c0_6, %c0_7] : memref<16x32xf32, #tpu.memory_space<vmem>>, vector<16x32xf32>
    tpu.vector_store %arg7[%c0_6, %c0_7], %7 {strides = array<i32>} : memref<16x32xf32, #tpu.memory_space<vmem>>, vector<16x32xf32>,
    %c0_i32_8 = arith.constant 0 : i32
    %9 = arith.cmpi eq, %arg2, %c0_i32_8 : i32
    %10 = arith.extui %9 : i1 to i32
    %c0_i32_9 = arith.constant 0 : i32
    %11 = arith.cmpi ne, %10, %c0_i32_9 : i32
    scf.if %11 {
      %c0_10 = arith.constant 0 : index
      %c0_11 = arith.constant 0 : index
      %12 = vector.load %arg7[%c0_10, %c0_11] : memref<16x32xf32, #tpu.memory_space<vmem>>, vector<16x32xf32>
      %c0_12 = arith.constant 0 : index
      %c0_13 = arith.constant 0 : index
      %13 = vector.load %arg5[%c0_12, %c0_13] : memref<1x32xf32, #tpu.memory_space<vmem>>, vector<1x32xf32>
      %14 = vector.broadcast %13 : vector<1x32xf32> to vector<16x32xf32>
      %15 = arith.addf %12, %14 : vector<16x32xf32>
      %c0_14 = arith.constant 0 : index
      %c0_15 = arith.constant 0 : index
      %16 = vector.load %arg6[%c0_14, %c0_15] : memref<16x32xf32, #tpu.memory_space<vmem>>, vector<16x32xf32>
      tpu.vector_store %arg6[%c0_14, %c0_15], %15 {strides = array<i32>} : memref<16x32xf32, #tpu.memory_space<vmem>>, vector<16x32xf32>,
    } else {
    }
    return
  }
  func.func @transform_0(%arg0: i32, %arg1: i32, %arg2: i32) -> (i32, i32) {
    %c0_i32 = arith.constant 0 : i32
    return %arg0, %arg2 : i32, i32
  }
  func.func @transform_1(%arg0: i32, %arg1: i32, %arg2: i32) -> (i32, i32) {
    %c0_i32 = arith.constant 0 : i32
    return %arg2, %arg1 : i32, i32
  }
  func.func @transform_2(%arg0: i32, %arg1: i32, %arg2: i32) -> (i32, i32) {
    %c0_i32 = arith.constant 0 : i32
    %c0_i32_0 = arith.constant 0 : i32
    return %c0_i32, %arg1 : i32, i32
  }
  func.func @transform_3(%arg0: i32, %arg1: i32, %arg2: i32) -> (i32, i32) {
    %c0_i32 = arith.constant 0 : i32
    return %arg0, %arg1 : i32, i32
  }
}

module attributes {stable_mosaic.version = 11 : i64} {
  func.func @_ln_matmul_kernel(%arg0: i32, %arg1: i32, %arg2: memref<16x32xf32, #tpu.memory_space<vmem>>, %arg3: memref<1x32xf32, #tpu.memory_space<vmem>>, %arg4: memref<1x32xf32, #tpu.memory_space<vmem>>, %arg5: memref<32x96xbf16, #tpu.memory_space<vmem>>, %arg6: memref<1x96xf32, #tpu.memory_space<vmem>>, %arg7: memref<16x32xf32, #tpu.memory_space<vmem>>, %arg8: memref<16x96xbf16, #tpu.memory_space<vmem>>) attributes {dimension_semantics = [#tpu.dimension_semantics<parallel>, #tpu.dimension_semantics<arbitrary>], iteration_bounds = array<i64: 1, 1>, scalar_prefetch = 0 : i64, scratch_operands = 0 : i64, tpu.core_type = #tpu.core_type<tc>, window_params = [{transform_indices = @transform_0, window_bounds = array<i64: 16, 32>}, {pipeline_mode = #tpu.pipeline_mode<synchronous>, transform_indices = @transform_1, window_bounds = array<i64: 1, 32>}, {pipeline_mode = #tpu.pipeline_mode<synchronous>, transform_indices = @transform_2, window_bounds = array<i64: 1, 32>}, {transform_indices = @transform_3, window_bounds = array<i64: 32, 96>}, {transform_indices = @transform_4, window_bounds = array<i64: 1, 96>}, {transform_indices = @transform_5, window_bounds = array<i64: 16, 32>}, {transform_indices = @transform_6, window_bounds = array<i64: 16, 96>}]} {
    %c0 = arith.constant 0 : index
    %c0_0 = arith.constant 0 : index
    %0 = vector.load %arg2[%c0, %c0_0] : memref<16x32xf32, #tpu.memory_space<vmem>>, vector<16x32xf32>
    %cst = arith.constant dense<0.000000e+00> : vector<16xf32>
    %1 = vector.multi_reduction <add>, %0, %cst [1] : vector<16x32xf32> to vector<16xf32>
    %2 = vector.shape_cast %1 : vector<16xf32> to vector<16x1xf32>
    %cst_1 = arith.constant 3.200000e+01 : f32
    %3 = vector.broadcast %cst_1 : f32 to vector<16x1xf32>
    %4 = arith.divf %2, %3 : vector<16x1xf32>
    %5 = vector.broadcast %4 : vector<16x1xf32> to vector<16x32xf32>
    %6 = arith.subf %0, %5 : vector<16x32xf32>
    %7 = arith.mulf %6, %6 : vector<16x32xf32>
    %cst_2 = arith.constant dense<0.000000e+00> : vector<16xf32>
    %8 = vector.multi_reduction <add>, %7, %cst_2 [1] : vector<16x32xf32> to vector<16xf32>
    %9 = vector.shape_cast %8 : vector<16xf32> to vector<16x1xf32>
    %cst_3 = arith.constant 3.200000e+01 : f32
    %10 = vector.broadcast %cst_3 : f32 to vector<16x1xf32>
    %11 = arith.divf %9, %10 : vector<16x1xf32>
    %cst_4 = arith.constant 9.99999974E-6 : f32
    %12 = vector.broadcast %cst_4 : f32 to vector<16x1xf32>
    %13 = arith.addf %11, %12 : vector<16x1xf32>
    %14 = math.rsqrt %13 : vector<16x1xf32>
    %15 = vector.broadcast %14 : vector<16x1xf32> to vector<16x32xf32>
    %16 = arith.mulf %6, %15 : vector<16x32xf32>
    %c0_5 = arith.constant 0 : index
    %c0_6 = arith.constant 0 : index
    %17 = vector.load %arg3[%c0_5, %c0_6] : memref<1x32xf32, #tpu.memory_space<vmem>>, vector<1x32xf32>
    %18 = vector.broadcast %17 : vector<1x32xf32> to vector<16x32xf32>
    %19 = arith.mulf %16, %18 : vector<16x32xf32>
    %c0_7 = arith.constant 0 : index
    %c0_8 = arith.constant 0 : index
    %20 = vector.load %arg4[%c0_7, %c0_8] : memref<1x32xf32, #tpu.memory_space<vmem>>, vector<1x32xf32>
    %21 = vector.broadcast %20 : vector<1x32xf32> to vector<16x32xf32>
    %22 = arith.addf %19, %21 : vector<16x32xf32>
    %c0_9 = arith.constant 0 : index
    %c0_10 = arith.constant 0 : index
    %23 = vector.load %arg7[%c0_9, %c0_10] : memref<16x32xf32, #tpu.memory_space<vmem>>, vector<16x32xf32>
    tpu.vector_store %arg7[%c0_9, %c0_10], %22 {strides = array<i32>} : memref<16x32xf32, #tpu.memory_space<vmem>>, vector<16x32xf32>,
    %24 = arith.truncf %22 : vector<16x32xf32> to vector<16x32xbf16>
    %c0_11 = arith.constant 0 : index
    %c0_12 = arith.constant 0 : index
    %25 = vector.load %arg5[%c0_11, %c0_12] : memref<32x96xbf16, #tpu.memory_space<vmem>>, vector<32x96xbf16>
    %cst_13 = arith.constant dense<0.000000e+00> : vector<16x96xf32>
    %26 = tpu.matmul %24, %25, %cst_13 {dimension_numbers = #tpu.dot_dimension_numbers<[1], [0], [0], [1], [0, 0, 1, 1], [], []>} : vector<16x32xbf16>, vector<32x96xbf16>, vector<16x96xf32> -> vector<16x96xf32>
    %c0_14 = arith.constant 0 : index
    %c0_15 = arith.constant 0 : index
    %27 = vector.load %arg6[%c0_14, %c0_15] : memref<1x96xf32, #tpu.memory_space<vmem>>, vector<1x96xf32>
    %28 = vector.broadcast %27 : vector<1x96xf32> to vector<16x96xf32>
    %29 = arith.addf %26, %28 : vector<16x96xf32>
    %30 = arith.truncf %29 : vector<16x96xf32> to vector<16x96xbf16>
    %c0_16 = arith.constant 0 : index
    %c0_17 = arith.constant 0 : index
    %31 = vector.load %arg8[%c0_16, %c0_17] : memref<16x96xbf16, #tpu.memory_space<vmem>>, vector<16x96xbf16>
    tpu.vector_store %arg8[%c0_16, %c0_17], %30 {strides = array<i32>} : memref<16x96xbf16, #tpu.memory_space<vmem>>, vector<16x96xbf16>,
    return
  }
  func.func @transform_0(%arg0: i32, %arg1: i32) -> (i32, i32) {
    %c0_i32 = arith.constant 0 : i32
    %c0_i32_0 = arith.constant 0 : i32
    return %arg0, %c0_i32 : i32, i32
  }
  func.func @transform_1(%arg0: i32, %arg1: i32) -> (i32, i32) {
    %c0_i32 = arith.constant 0 : i32
    %c0_i32_0 = arith.constant 0 : i32
    %c0_i32_1 = arith.constant 0 : i32
    return %c0_i32, %c0_i32_0 : i32, i32
  }
  func.func @transform_2(%arg0: i32, %arg1: i32) -> (i32, i32) {
    %c0_i32 = arith.constant 0 : i32
    %c0_i32_0 = arith.constant 0 : i32
    %c0_i32_1 = arith.constant 0 : i32
    return %c0_i32, %c0_i32_0 : i32, i32
  }
  func.func @transform_3(%arg0: i32, %arg1: i32) -> (i32, i32) {
    %c0_i32 = arith.constant 0 : i32
    %c0_i32_0 = arith.constant 0 : i32
    return %c0_i32, %arg1 : i32, i32
  }
  func.func @transform_4(%arg0: i32, %arg1: i32) -> (i32, i32) {
    %c0_i32 = arith.constant 0 : i32
    %c0_i32_0 = arith.constant 0 : i32
    return %c0_i32, %arg1 : i32, i32
  }
  func.func @transform_5(%arg0: i32, %arg1: i32) -> (i32, i32) {
    %c0_i32 = arith.constant 0 : i32
    %c0_i32_0 = arith.constant 0 : i32
    return %arg0, %c0_i32 : i32, i32
  }
  func.func @transform_6(%arg0: i32, %arg1: i32) -> (i32, i32) {
    %c0_i32 = arith.constant 0 : i32
    return %arg0, %arg1 : i32, i32
  }
}

module attributes {stable_mosaic.version = 11 : i64} {
  func.func @_matmul_residual_kernel(%arg0: i32, %arg1: i32, %arg2: i32, %arg3: memref<16x32xbf16, #tpu.memory_space<vmem>>, %arg4: memref<32x32xbf16, #tpu.memory_space<vmem>>, %arg5: memref<1x32xf32, #tpu.memory_space<vmem>>, %arg6: memref<16x32xf32, #tpu.memory_space<vmem>>, %arg7: memref<16x32xf32, #tpu.memory_space<vmem>>, %arg8: memref<16x32xf32, #tpu.memory_space<vmem>>) attributes {dimension_semantics = [#tpu.dimension_semantics<parallel>, #tpu.dimension_semantics<parallel>, #tpu.dimension_semantics<arbitrary>], iteration_bounds = array<i64: 1, 1, 1>, scalar_prefetch = 0 : i64, scratch_operands = 1 : i64, tpu.core_type = #tpu.core_type<tc>, window_params = [{transform_indices = @transform_0, window_bounds = array<i64: 16, 32>}, {transform_indices = @transform_1, window_bounds = array<i64: 32, 32>}, {transform_indices = @transform_2, window_bounds = array<i64: 1, 32>}, {transform_indices = @transform_3, window_bounds = array<i64: 16, 32>}, {transform_indices = @transform_4, window_bounds = array<i64: 16, 32>}]} {
    %c0_i32 = arith.constant 0 : i32
    %0 = arith.cmpi eq, %arg2, %c0_i32 : i32
    %1 = arith.extui %0 : i1 to i32
    %c0_i32_0 = arith.constant 0 : i32
    %2 = arith.cmpi ne, %1, %c0_i32_0 : i32
    scf.if %2 {
      %cst_10 = arith.constant 0.000000e+00 : f32
      %12 = vector.broadcast %cst_10 : f32 to vector<16x32xf32>
      %c0_11 = arith.constant 0 : index
      %c0_12 = arith.constant 0 : index
      %13 = vector.load %arg8[%c0_11, %c0_12] : memref<16x32xf32, #tpu.memory_space<vmem>>, vector<16x32xf32>
      tpu.vector_store %arg8[%c0_11, %c0_12], %12 {strides = array<i32>} : memref<16x32xf32, #tpu.memory_space<vmem>>, vector<16x32xf32>,
    } else {
    }
    %c0 = arith.constant 0 : index
    %c0_1 = arith.constant 0 : index
    %3 = vector.load %arg8[%c0, %c0_1] : memref<16x32xf32, #tpu.memory_space<vmem>>, vector<16x32xf32>
    %c0_2 = arith.constant 0 : index
    %c0_3 = arith.constant 0 : index
    %4 = vector.load %arg3[%c0_2, %c0_3] : memref<16x32xbf16, #tpu.memory_space<vmem>>, vector<16x32xbf16>
    %c0_4 = arith.constant 0 : index
    %c0_5 = arith.constant 0 : index
    %5 = vector.load %arg4[%c0_4, %c0_5] : memref<32x32xbf16, #tpu.memory_space<vmem>>, vector<32x32xbf16>
    %cst = arith.constant dense<0.000000e+00> : vector<16x32xf32>
    %6 = tpu.matmul %4, %5, %cst {dimension_numbers = #tpu.dot_dimension_numbers<[1], [0], [0], [1], [0, 0, 1, 1], [], []>} : vector<16x32xbf16>, vector<32x32xbf16>, vector<16x32xf32> -> vector<16x32xf32>
    %7 = arith.addf %3, %6 : vector<16x32xf32>
    %c0_6 = arith.constant 0 : index
    %c0_7 = arith.constant 0 : index
    %8 = vector.load %arg8[%c0_6, %c0_7] : memref<16x32xf32, #tpu.memory_space<vmem>>, vector<16x32xf32>
    tpu.vector_store %arg8[%c0_6, %c0_7], %7 {strides = array<i32>} : memref<16x32xf32, #tpu.memory_space<vmem>>, vector<16x32xf32>,
    %c0_i32_8 = arith.constant 0 : i32
    %9 = arith.cmpi eq, %arg2, %c0_i32_8 : i32
    %10 = arith.extui %9 : i1 to i32
    %c0_i32_9 = arith.constant 0 : i32
    %11 = arith.cmpi ne, %10, %c0_i32_9 : i32
    scf.if %11 {
      %c0_10 = arith.constant 0 : index
      %c0_11 = arith.constant 0 : index
      %12 = vector.load %arg8[%c0_10, %c0_11] : memref<16x32xf32, #tpu.memory_space<vmem>>, vector<16x32xf32>
      %c0_12 = arith.constant 0 : index
      %c0_13 = arith.constant 0 : index
      %13 = vector.load %arg5[%c0_12, %c0_13] : memref<1x32xf32, #tpu.memory_space<vmem>>, vector<1x32xf32>
      %14 = vector.broadcast %13 : vector<1x32xf32> to vector<16x32xf32>
      %15 = arith.addf %12, %14 : vector<16x32xf32>
      %c0_14 = arith.constant 0 : index
      %c0_15 = arith.constant 0 : index
      %16 = vector.load %arg6[%c0_14, %c0_15] : memref<16x32xf32, #tpu.memory_space<vmem>>, vector<16x32xf32>
      %17 = arith.addf %15, %16 : vector<16x32xf32>
      %c0_16 = arith.constant 0 : index
      %c0_17 = arith.constant 0 : index
      %18 = vector.load %arg7[%c0_16, %c0_17] : memref<16x32xf32, #tpu.memory_space<vmem>>, vector<16x32xf32>
      tpu.vector_store %arg7[%c0_16, %c0_17], %17 {strides = array<i32>} : memref<16x32xf32, #tpu.memory_space<vmem>>, vector<16x32xf32>,
    } else {
    }
    return
  }
  func.func @transform_0(%arg0: i32, %arg1: i32, %arg2: i32) -> (i32, i32) {
    %c0_i32 = arith.constant 0 : i32
    return %arg0, %arg2 : i32, i32
  }
  func.func @transform_1(%arg0: i32, %arg1: i32, %arg2: i32) -> (i32, i32) {
    %c0_i32 = arith.constant 0 : i32
    return %arg2, %arg1 : i32, i32
  }
  func.func @transform_2(%arg0: i32, %arg1: i32, %arg2: i32) -> (i32, i32) {
    %c0_i32 = arith.constant 0 : i32
    %c0_i32_0 = arith.constant 0 : i32
    return %c0_i32, %arg1 : i32, i32
  }
  func.func @transform_3(%arg0: i32, %arg1: i32, %arg2: i32) -> (i32, i32) {
    %c0_i32 = arith.constant 0 : i32
    return %arg0, %arg1 : i32, i32
  }
  func.func @transform_4(%arg0: i32, %arg1: i32, %arg2: i32) -> (i32, i32) {
    %c0_i32 = arith.constant 0 : i32
    return %arg0, %arg1 : i32, i32
  }
}

module attributes {stable_mosaic.version = 11 : i64} {
  func.func @_ln_matmul_kernel(%arg0: i32, %arg1: i32, %arg2: memref<16x32xf32, #tpu.memory_space<vmem>>, %arg3: memref<1x32xf32, #tpu.memory_space<vmem>>, %arg4: memref<1x32xf32, #tpu.memory_space<vmem>>, %arg5: memref<32x64xbf16, #tpu.memory_space<vmem>>, %arg6: memref<1x64xf32, #tpu.memory_space<vmem>>, %arg7: memref<16x32xf32, #tpu.memory_space<vmem>>, %arg8: memref<16x64xbf16, #tpu.memory_space<vmem>>) attributes {dimension_semantics = [#tpu.dimension_semantics<parallel>, #tpu.dimension_semantics<arbitrary>], iteration_bounds = array<i64: 1, 1>, scalar_prefetch = 0 : i64, scratch_operands = 0 : i64, tpu.core_type = #tpu.core_type<tc>, window_params = [{transform_indices = @transform_0, window_bounds = array<i64: 16, 32>}, {pipeline_mode = #tpu.pipeline_mode<synchronous>, transform_indices = @transform_1, window_bounds = array<i64: 1, 32>}, {pipeline_mode = #tpu.pipeline_mode<synchronous>, transform_indices = @transform_2, window_bounds = array<i64: 1, 32>}, {transform_indices = @transform_3, window_bounds = array<i64: 32, 64>}, {transform_indices = @transform_4, window_bounds = array<i64: 1, 64>}, {transform_indices = @transform_5, window_bounds = array<i64: 16, 32>}, {transform_indices = @transform_6, window_bounds = array<i64: 16, 64>}]} {
    %c0 = arith.constant 0 : index
    %c0_0 = arith.constant 0 : index
    %0 = vector.load %arg2[%c0, %c0_0] : memref<16x32xf32, #tpu.memory_space<vmem>>, vector<16x32xf32>
    %cst = arith.constant dense<0.000000e+00> : vector<16xf32>
    %1 = vector.multi_reduction <add>, %0, %cst [1] : vector<16x32xf32> to vector<16xf32>
    %2 = vector.shape_cast %1 : vector<16xf32> to vector<16x1xf32>
    %cst_1 = arith.constant 3.200000e+01 : f32
    %3 = vector.broadcast %cst_1 : f32 to vector<16x1xf32>
    %4 = arith.divf %2, %3 : vector<16x1xf32>
    %5 = vector.broadcast %4 : vector<16x1xf32> to vector<16x32xf32>
    %6 = arith.subf %0, %5 : vector<16x32xf32>
    %7 = arith.mulf %6, %6 : vector<16x32xf32>
    %cst_2 = arith.constant dense<0.000000e+00> : vector<16xf32>
    %8 = vector.multi_reduction <add>, %7, %cst_2 [1] : vector<16x32xf32> to vector<16xf32>
    %9 = vector.shape_cast %8 : vector<16xf32> to vector<16x1xf32>
    %cst_3 = arith.constant 3.200000e+01 : f32
    %10 = vector.broadcast %cst_3 : f32 to vector<16x1xf32>
    %11 = arith.divf %9, %10 : vector<16x1xf32>
    %cst_4 = arith.constant 9.99999974E-6 : f32
    %12 = vector.broadcast %cst_4 : f32 to vector<16x1xf32>
    %13 = arith.addf %11, %12 : vector<16x1xf32>
    %14 = math.rsqrt %13 : vector<16x1xf32>
    %15 = vector.broadcast %14 : vector<16x1xf32> to vector<16x32xf32>
    %16 = arith.mulf %6, %15 : vector<16x32xf32>
    %c0_5 = arith.constant 0 : index
    %c0_6 = arith.constant 0 : index
    %17 = vector.load %arg3[%c0_5, %c0_6] : memref<1x32xf32, #tpu.memory_space<vmem>>, vector<1x32xf32>
    %18 = vector.broadcast %17 : vector<1x32xf32> to vector<16x32xf32>
    %19 = arith.mulf %16, %18 : vector<16x32xf32>
    %c0_7 = arith.constant 0 : index
    %c0_8 = arith.constant 0 : index
    %20 = vector.load %arg4[%c0_7, %c0_8] : memref<1x32xf32, #tpu.memory_space<vmem>>, vector<1x32xf32>
    %21 = vector.broadcast %20 : vector<1x32xf32> to vector<16x32xf32>
    %22 = arith.addf %19, %21 : vector<16x32xf32>
    %c0_9 = arith.constant 0 : index
    %c0_10 = arith.constant 0 : index
    %23 = vector.load %arg7[%c0_9, %c0_10] : memref<16x32xf32, #tpu.memory_space<vmem>>, vector<16x32xf32>
    tpu.vector_store %arg7[%c0_9, %c0_10], %22 {strides = array<i32>} : memref<16x32xf32, #tpu.memory_space<vmem>>, vector<16x32xf32>,
    %24 = arith.truncf %22 : vector<16x32xf32> to vector<16x32xbf16>
    %c0_11 = arith.constant 0 : index
    %c0_12 = arith.constant 0 : index
    %25 = vector.load %arg5[%c0_11, %c0_12] : memref<32x64xbf16, #tpu.memory_space<vmem>>, vector<32x64xbf16>
    %cst_13 = arith.constant dense<0.000000e+00> : vector<16x64xf32>
    %26 = tpu.matmul %24, %25, %cst_13 {dimension_numbers = #tpu.dot_dimension_numbers<[1], [0], [0], [1], [0, 0, 1, 1], [], []>} : vector<16x32xbf16>, vector<32x64xbf16>, vector<16x64xf32> -> vector<16x64xf32>
    %c0_14 = arith.constant 0 : index
    %c0_15 = arith.constant 0 : index
    %27 = vector.load %arg6[%c0_14, %c0_15] : memref<1x64xf32, #tpu.memory_space<vmem>>, vector<1x64xf32>
    %28 = vector.broadcast %27 : vector<1x64xf32> to vector<16x64xf32>
    %29 = arith.addf %26, %28 : vector<16x64xf32>
    %cst_16 = arith.constant 0.000000e+00 : f32
    %30 = vector.broadcast %cst_16 : f32 to vector<16x64xf32>
    %31 = arith.maximumf %29, %30 : vector<16x64xf32>
    %32 = arith.truncf %31 : vector<16x64xf32> to vector<16x64xbf16>
    %c0_17 = arith.constant 0 : index
    %c0_18 = arith.constant 0 : index
    %33 = vector.load %arg8[%c0_17, %c0_18] : memref<16x64xbf16, #tpu.memory_space<vmem>>, vector<16x64xbf16>
    tpu.vector_store %arg8[%c0_17, %c0_18], %32 {strides = array<i32>} : memref<16x64xbf16, #tpu.memory_space<vmem>>, vector<16x64xbf16>,
    return
  }
  func.func @transform_0(%arg0: i32, %arg1: i32) -> (i32, i32) {
    %c0_i32 = arith.constant 0 : i32
    %c0_i32_0 = arith.constant 0 : i32
    return %arg0, %c0_i32 : i32, i32
  }
  func.func @transform_1(%arg0: i32, %arg1: i32) -> (i32, i32) {
    %c0_i32 = arith.constant 0 : i32
    %c0_i32_0 = arith.constant 0 : i32
    %c0_i32_1 = arith.constant 0 : i32
    return %c0_i32, %c0_i32_0 : i32, i32
  }
  func.func @transform_2(%arg0: i32, %arg1: i32) -> (i32, i32) {
    %c0_i32 = arith.constant 0 : i32
    %c0_i32_0 = arith.constant 0 : i32
    %c0_i32_1 = arith.constant 0 : i32
    return %c0_i32, %c0_i32_0 : i32, i32
  }
  func.func @transform_3(%arg0: i32, %arg1: i32) -> (i32, i32) {
    %c0_i32 = arith.constant 0 : i32
    %c0_i32_0 = arith.constant 0 : i32
    return %c0_i32, %arg1 : i32, i32
  }
  func.func @transform_4(%arg0: i32, %arg1: i32) -> (i32, i32) {
    %c0_i32 = arith.constant 0 : i32
    %c0_i32_0 = arith.constant 0 : i32
    return %c0_i32, %arg1 : i32, i32
  }
  func.func @transform_5(%arg0: i32, %arg1: i32) -> (i32, i32) {
    %c0_i32 = arith.constant 0 : i32
    %c0_i32_0 = arith.constant 0 : i32
    return %arg0, %c0_i32 : i32, i32
  }
  func.func @transform_6(%arg0: i32, %arg1: i32) -> (i32, i32) {
    %c0_i32 = arith.constant 0 : i32
    return %arg0, %arg1 : i32, i32
  }
}

module attributes {stable_mosaic.version = 11 : i64} {
  func.func @_matmul_residual_kernel(%arg0: i32, %arg1: i32, %arg2: i32, %arg3: memref<16x64xbf16, #tpu.memory_space<vmem>>, %arg4: memref<64x32xbf16, #tpu.memory_space<vmem>>, %arg5: memref<1x32xf32, #tpu.memory_space<vmem>>, %arg6: memref<16x32xf32, #tpu.memory_space<vmem>>, %arg7: memref<16x32xf32, #tpu.memory_space<vmem>>, %arg8: memref<16x32xf32, #tpu.memory_space<vmem>>) attributes {dimension_semantics = [#tpu.dimension_semantics<parallel>, #tpu.dimension_semantics<parallel>, #tpu.dimension_semantics<arbitrary>], iteration_bounds = array<i64: 1, 1, 1>, scalar_prefetch = 0 : i64, scratch_operands = 1 : i64, tpu.core_type = #tpu.core_type<tc>, window_params = [{transform_indices = @transform_0, window_bounds = array<i64: 16, 64>}, {transform_indices = @transform_1, window_bounds = array<i64: 64, 32>}, {transform_indices = @transform_2, window_bounds = array<i64: 1, 32>}, {transform_indices = @transform_3, window_bounds = array<i64: 16, 32>}, {transform_indices = @transform_4, window_bounds = array<i64: 16, 32>}]} {
    %c0_i32 = arith.constant 0 : i32
    %0 = arith.cmpi eq, %arg2, %c0_i32 : i32
    %1 = arith.extui %0 : i1 to i32
    %c0_i32_0 = arith.constant 0 : i32
    %2 = arith.cmpi ne, %1, %c0_i32_0 : i32
    scf.if %2 {
      %cst_10 = arith.constant 0.000000e+00 : f32
      %12 = vector.broadcast %cst_10 : f32 to vector<16x32xf32>
      %c0_11 = arith.constant 0 : index
      %c0_12 = arith.constant 0 : index
      %13 = vector.load %arg8[%c0_11, %c0_12] : memref<16x32xf32, #tpu.memory_space<vmem>>, vector<16x32xf32>
      tpu.vector_store %arg8[%c0_11, %c0_12], %12 {strides = array<i32>} : memref<16x32xf32, #tpu.memory_space<vmem>>, vector<16x32xf32>,
    } else {
    }
    %c0 = arith.constant 0 : index
    %c0_1 = arith.constant 0 : index
    %3 = vector.load %arg8[%c0, %c0_1] : memref<16x32xf32, #tpu.memory_space<vmem>>, vector<16x32xf32>
    %c0_2 = arith.constant 0 : index
    %c0_3 = arith.constant 0 : index
    %4 = vector.load %arg3[%c0_2, %c0_3] : memref<16x64xbf16, #tpu.memory_space<vmem>>, vector<16x64xbf16>
    %c0_4 = arith.constant 0 : index
    %c0_5 = arith.constant 0 : index
    %5 = vector.load %arg4[%c0_4, %c0_5] : memref<64x32xbf16, #tpu.memory_space<vmem>>, vector<64x32xbf16>
    %cst = arith.constant dense<0.000000e+00> : vector<16x32xf32>
    %6 = tpu.matmul %4, %5, %cst {dimension_numbers = #tpu.dot_dimension_numbers<[1], [0], [0], [1], [0, 0, 1, 1], [], []>} : vector<16x64xbf16>, vector<64x32xbf16>, vector<16x32xf32> -> vector<16x32xf32>
    %7 = arith.addf %3, %6 : vector<16x32xf32>
    %c0_6 = arith.constant 0 : index
    %c0_7 = arith.constant 0 : index
    %8 = vector.load %arg8[%c0_6, %c0_7] : memref<16x32xf32, #tpu.memory_space<vmem>>, vector<16x32xf32>
    tpu.vector_store %arg8[%c0_6, %c0_7], %7 {strides = array<i32>} : memref<16x32xf32, #tpu.memory_space<vmem>>, vector<16x32xf32>,
    %c0_i32_8 = arith.constant 0 : i32
    %9 = arith.cmpi eq, %arg2, %c0_i32_8 : i32
    %10 = arith.extui %9 : i1 to i32
    %c0_i32_9 = arith.constant 0 : i32
    %11 = arith.cmpi ne, %10, %c0_i32_9 : i32
    scf.if %11 {
      %c0_10 = arith.constant 0 : index
      %c0_11 = arith.constant 0 : index
      %12 = vector.load %arg8[%c0_10, %c0_11] : memref<16x32xf32, #tpu.memory_space<vmem>>, vector<16x32xf32>
      %c0_12 = arith.constant 0 : index
      %c0_13 = arith.constant 0 : index
      %13 = vector.load %arg5[%c0_12, %c0_13] : memref<1x32xf32, #tpu.memory_space<vmem>>, vector<1x32xf32>
      %14 = vector.broadcast %13 : vector<1x32xf32> to vector<16x32xf32>
      %15 = arith.addf %12, %14 : vector<16x32xf32>
      %c0_14 = arith.constant 0 : index
      %c0_15 = arith.constant 0 : index
      %16 = vector.load %arg6[%c0_14, %c0_15] : memref<16x32xf32, #tpu.memory_space<vmem>>, vector<16x32xf32>
      %17 = arith.addf %15, %16 : vector<16x32xf32>
      %c0_16 = arith.constant 0 : index
      %c0_17 = arith.constant 0 : index
      %18 = vector.load %arg7[%c0_16, %c0_17] : memref<16x32xf32, #tpu.memory_space<vmem>>, vector<16x32xf32>
      tpu.vector_store %arg7[%c0_16, %c0_17], %17 {strides = array<i32>} : memref<16x32xf32, #tpu.memory_space<vmem>>, vector<16x32xf32>,
    } else {
    }
    return
  }
  func.func @transform_0(%arg0: i32, %arg1: i32, %arg2: i32) -> (i32, i32) {
    %c0_i32 = arith.constant 0 : i32
    return %arg0, %arg2 : i32, i32
  }
  func.func @transform_1(%arg0: i32, %arg1: i32, %arg2: i32) -> (i32, i32) {
    %c0_i32 = arith.constant 0 : i32
    return %arg2, %arg1 : i32, i32
  }
  func.func @transform_2(%arg0: i32, %arg1: i32, %arg2: i32) -> (i32, i32) {
    %c0_i32 = arith.constant 0 : i32
    %c0_i32_0 = arith.constant 0 : i32
    return %c0_i32, %arg1 : i32, i32
  }
  func.func @transform_3(%arg0: i32, %arg1: i32, %arg2: i32) -> (i32, i32) {
    %c0_i32 = arith.constant 0 : i32
    return %arg0, %arg1 : i32, i32
  }
  func.func @transform_4(%arg0: i32, %arg1: i32, %arg2: i32) -> (i32, i32) {
    %c0_i32 = arith.constant 0 : i32
    return %arg0, %arg1 : i32, i32
  }
}

module attributes {stable_mosaic.version = 11 : i64} {
  func.func @_layernorm_kernel(%arg0: i32, %arg1: memref<16x32xf32, #tpu.memory_space<vmem>>, %arg2: memref<1x32xf32, #tpu.memory_space<vmem>>, %arg3: memref<1x32xf32, #tpu.memory_space<vmem>>, %arg4: memref<16x32xf32, #tpu.memory_space<vmem>>) attributes {dimension_semantics = [#tpu.dimension_semantics<parallel>], iteration_bounds = array<i64: 1>, scalar_prefetch = 0 : i64, scratch_operands = 0 : i64, tpu.core_type = #tpu.core_type<tc>, window_params = [{transform_indices = @transform_0, window_bounds = array<i64: 16, 32>}, {pipeline_mode = #tpu.pipeline_mode<synchronous>, transform_indices = @transform_1, window_bounds = array<i64: 1, 32>}, {pipeline_mode = #tpu.pipeline_mode<synchronous>, transform_indices = @transform_2, window_bounds = array<i64: 1, 32>}, {transform_indices = @transform_3, window_bounds = array<i64: 16, 32>}]} {
    %c0 = arith.constant 0 : index
    %c0_0 = arith.constant 0 : index
    %0 = vector.load %arg1[%c0, %c0_0] : memref<16x32xf32, #tpu.memory_space<vmem>>, vector<16x32xf32>
    %cst = arith.constant dense<0.000000e+00> : vector<16xf32>
    %1 = vector.multi_reduction <add>, %0, %cst [1] : vector<16x32xf32> to vector<16xf32>
    %2 = vector.shape_cast %1 : vector<16xf32> to vector<16x1xf32>
    %cst_1 = arith.constant 3.200000e+01 : f32
    %3 = vector.broadcast %cst_1 : f32 to vector<16x1xf32>
    %4 = arith.divf %2, %3 : vector<16x1xf32>
    %5 = vector.broadcast %4 : vector<16x1xf32> to vector<16x32xf32>
    %6 = arith.subf %0, %5 : vector<16x32xf32>
    %7 = arith.mulf %6, %6 : vector<16x32xf32>
    %cst_2 = arith.constant dense<0.000000e+00> : vector<16xf32>
    %8 = vector.multi_reduction <add>, %7, %cst_2 [1] : vector<16x32xf32> to vector<16xf32>
    %9 = vector.shape_cast %8 : vector<16xf32> to vector<16x1xf32>
    %cst_3 = arith.constant 3.200000e+01 : f32
    %10 = vector.broadcast %cst_3 : f32 to vector<16x1xf32>
    %11 = arith.divf %9, %10 : vector<16x1xf32>
    %cst_4 = arith.constant 9.99999974E-6 : f32
    %12 = vector.broadcast %cst_4 : f32 to vector<16x1xf32>
    %13 = arith.addf %11, %12 : vector<16x1xf32>
    %14 = math.rsqrt %13 : vector<16x1xf32>
    %15 = vector.broadcast %14 : vector<16x1xf32> to vector<16x32xf32>
    %16 = arith.mulf %6, %15 : vector<16x32xf32>
    %c0_5 = arith.constant 0 : index
    %c0_6 = arith.constant 0 : index
    %17 = vector.load %arg2[%c0_5, %c0_6] : memref<1x32xf32, #tpu.memory_space<vmem>>, vector<1x32xf32>
    %18 = vector.broadcast %17 : vector<1x32xf32> to vector<16x32xf32>
    %19 = arith.mulf %16, %18 : vector<16x32xf32>
    %c0_7 = arith.constant 0 : index
    %c0_8 = arith.constant 0 : index
    %20 = vector.load %arg3[%c0_7, %c0_8] : memref<1x32xf32, #tpu.memory_space<vmem>>, vector<1x32xf32>
    %21 = vector.broadcast %20 : vector<1x32xf32> to vector<16x32xf32>
    %22 = arith.addf %19, %21 : vector<16x32xf32>
    %c0_9 = arith.constant 0 : index
    %c0_10 = arith.constant 0 : index
    %23 = vector.load %arg4[%c0_9, %c0_10] : memref<16x32xf32, #tpu.memory_space<vmem>>, vector<16x32xf32>
    tpu.vector_store %arg4[%c0_9, %c0_10], %22 {strides = array<i32>} : memref<16x32xf32, #tpu.memory_space<vmem>>, vector<16x32xf32>,
    return
  }
  func.func @transform_0(%arg0: i32) -> (i32, i32) {
    %c0_i32 = arith.constant 0 : i32
    %c0_i32_0 = arith.constant 0 : i32
    return %arg0, %c0_i32 : i32, i32
  }
  func.func @transform_1(%arg0: i32) -> (i32, i32) {
    %c0_i32 = arith.constant 0 : i32
    %c0_i32_0 = arith.constant 0 : i32
    %c0_i32_1 = arith.constant 0 : i32
    return %c0_i32, %c0_i32_0 : i32, i32
  }
  func.func @transform_2(%arg0: i32) -> (i32, i32) {
    %c0_i32 = arith.constant 0 : i32
    %c0_i32_0 = arith.constant 0 : i32
    %c0_i32_1 = arith.constant 0 : i32
    return %c0_i32, %c0_i32_0 : i32, i32
  }
  func.func @transform_3(%arg0: i32) -> (i32, i32) {
    %c0_i32 = arith.constant 0 : i32
    %c0_i32_0 = arith.constant 0 : i32
    return %arg0, %c0_i32 : i32, i32
  }
}

</mosaic_0001>

<llo_original>
// kernel: transformer_encoder_forward.12
$region0: #{transformer_encoder_forward.12}
  #allocation0 [shape = 'u32[]', space=smem, size = 0x4, offset = 0x4, fixed_abs, tag = 'smem constant byte address 0x4 - core index']
  #allocation1 [shape = 'u32[144,128]{1,0:T(1,128)}', space=vmem, size = 0x12000, scoped, tag = 'internal scratch']
  #allocation2 [shape = 'f32[16,32]{1,0:T(8,128)}', space=vmem, size = 0x2000, scoped, tag = 'scratch operand']
  %s0 = inlined_call_operand.vmem [shape: bf16[16,16], index: 0, kind: input, shape index: {}]
  %s1 = inlined_call_operand.vmem [shape: bf16[16,32], index: 1, kind: input, shape index: {}]
  %s2 = inlined_call_operand.vmem [shape: f32[1,32], index: 2, kind: input, shape index: {}]
  %s3 = inlined_call_operand.vmem [shape: f32[16,32], index: 3, kind: output, shape index: {}]
  %s4 = sld [smem:[#allocation0]]
  $region30: #{transformer_encoder_forward.12} parent=0
    _
  %s6 = ssub.s32 1, %s4
  %s7 = scalar_select 0, %s6, %s4
  // Predicated region
  $region2: #{transformer_encoder_forward.12} parent=0 // pred_check
    _
  $region3: #{transformer_encoder_forward.12} parent=0 // pred_check_branch
    %9 = sbr.rel (0) target = $region5
  $region4: #{transformer_encoder_forward.12} parent=0 // pred_region
    _
  $region5: #{transformer_encoder_forward.12} parent=0 // pred_fallthru
    _
  // Predicated region
  $region6: #{transformer_encoder_forward.12} parent=0 // pred_check
    _
  $region7: #{transformer_encoder_forward.12} parent=0 // pred_check_branch
    %11 = sbr.rel (0) target = $region9
  $region8: #{transformer_encoder_forward.12} parent=0 // pred_region
    _
  $region9: #{transformer_encoder_forward.12} parent=0 // pred_fallthru
    _
  // Predicated region
  $region10: #{transformer_encoder_forward.12} parent=0 // pred_check
    _
  $region11: #{transformer_encoder_forward.12} parent=0 // pred_check_branch
    %13 = sbr.rel (0) target = $region13
  $region12: #{transformer_encoder_forward.12} parent=0 // pred_region
    _
  $region13: #{transformer_encoder_forward.12} parent=0 // pred_fallthru
    _
  %p15 = scmp.eq.s32.totalorder 0, 0
  // Predicated region
  $region14: #{transformer_encoder_forward.12} parent=0 // pred_check
    %p16 = pneg %p15
  $region15: #{transformer_encoder_forward.12} parent=0 // pred_check_branch
    %18 = sbr.rel (%p16) target = $region17
  $region16: #{transformer_encoder_forward.12} parent=0 // pred_region
    %vm19 = vcmask 261120
    %20 = vst.msk [vmem:[#allocation2] sm:$0xff] %vm19, 0.0
    %21 = vst.msk [vmem:[#allocation2 + $0x8] sm:$0xff] %vm19, 0.0
  $region17: #{transformer_encoder_forward.12} parent=0 // pred_fallthru
    _
  %v22 = vld [vmem:[#allocation2] sm:$0xff]
  %v23 = vld [vmem:[#allocation2 + $0x8] sm:$0xff]
  %v24 = vld [vmem:[%s0] sm:$0xf]
  %v25 = vld [vmem:[%s0 + $0x4] sm:$0xf]
  %v26 = vld [vmem:[%s1] sm:$0xf]
  %v27 = vld [vmem:[%s1 + $0x4] sm:$0xf]
  %v30 = vunpack.c.l.b16 %v24
  %v31 = vunpack.c.l.b16 %v25
  %v32 = vpack.c.b16 %v31, %v30
  %v35 = vunpack.c.l.b16 %v26
  %v36 = vunpack.c.l.b16 %v27
  %v37 = vpack.c.b16 %v36, %v35
  %vm39 = vcmask 130048
  %v41 = vsel %vm39, %v32, 0
  %43 = vmatprep.subr.bf16.mxu0 0
  %44 = vmatpush1.bf16.msra.mxu0 0
  %45 = vmatprep.subr.bf16.mxu0 0
  %46 = vmatpush1.bf16.msra.mxu0 0
  %47 = vmatprep.subr.bf16.mxu0 0
  %48 = vmatpush1.bf16.msra.mxu0 0
  %49 = vmatprep.subr.bf16.mxu0 0
  %50 = vmatpush1.bf16.msra.mxu0 0
  %51 = vmatprep.subr.bf16.mxu0 0
  %52 = vmatpush1.bf16.msra.mxu0 0
  %53 = vmatprep.subr.bf16.mxu0 0
  %54 = vmatpush1.bf16.msra.mxu0 0
  %55 = vmatprep.subr.bf16.mxu0 0
  %56 = vmatpush1.bf16.msra.mxu0 0
  %57 = vmatprep.subr.bf16.mxu0 0
  %58 = vmatpush1.bf16.msra.mxu0 %v37
  %59 = vmatprep.subr.bf16.mxu0 0
  %60 = vmatpush2.bf16.msra.mxu0 0
  %61 = vmatprep.subr.bf16.mxu0 0
  %62 = vmatpush2.bf16.msra.mxu0 0
  %63 = vmatprep.subr.bf16.mxu0 0
  %64 = vmatpush2.bf16.msra.mxu0 0
  %65 = vmatprep.subr.bf16.mxu0 0
  %66 = vmatpush2.bf16.msra.mxu0 0
  %67 = vmatprep.subr.bf16.mxu0 0
  %68 = vmatpush2.bf16.msra.mxu0 0
  %69 = vmatprep.subr.bf16.mxu0 0
  %70 = vmatpush2.bf16.msra.mxu0 0
  %71 = vmatprep.subr.bf16.mxu0 0
  %72 = vmatpush2.bf16.msra.mxu0 0
  %73 = vmatprep.subr.bf16.mxu0 0
  %74 = vmatpush2.bf16.msra.mxu0 0
  %75 = vmatprep.mubr.bf16.mxu0 0
  %76 = vmatmul.mubr.bf16.gmra.mxu0 %v41
  %v77 = vpop.f32.mrf.mxu0
  %v78 = vadd.f32 0.0, %v77
  %v79 = vpop.f32.mrf.mxu0
  %v80 = vpop.f32.mrf.mxu0
  %v81 = vadd.f32 0.0, %v80
  %v82 = vpop.f32.mrf.mxu0
  %83 = vdwg.mxu0
  %v84 = vadd.f32 %v22, %v78
  %v85 = vadd.f32 %v23, %v81
  %vm86 = vcmask 261120
  %87 = vst.msk [vmem:[#allocation2] sm:$0xff] %vm86, %v84
  %88 = vst.msk [vmem:[#allocation2 + $0x8] sm:$0xff] %vm86, %v85
  // Predicated region
  $region18: #{transformer_encoder_forward.12} parent=0 // pred_check
    %p89 = pneg %p15
  $region19: #{transformer_encoder_forward.12} parent=0 // pred_check_branch
    %91 = sbr.rel (%p89) target = $region21
  $region20: #{transformer_encoder_forward.12} parent=0 // pred_region
    %v92 = vld [vmem:[#allocation2] sm:$0xff]
    %v93 = vld [vmem:[#allocation2 + $0x8] sm:$0xff]
    %v94 = vld [vmem:[%s2] sm:$0x1]
    %v96 = vlaneseq
    %v97 = vshrl.u32 %v96, 7
    %v98 = vsub.s32 0, %v97
    %v99 = vrot.slane %v94, %v98
    %v101 = vadd.f32 %v92, %v99
    %v102 = vadd.f32 %v93, %v99
    %103 = vst.msk [vmem:[%s3] sm:$0xff] %vm86, %v101
    %104 = vst.msk [vmem:[%s3 + $0x8] sm:$0xff] %vm86, %v102
  $region21: #{transformer_encoder_forward.12} parent=0 // pred_fallthru
    _
  // Predicated region
  $region22: #{transformer_encoder_forward.12} parent=0 // pred_check
    _
  $region23: #{transformer_encoder_forward.12} parent=0 // pred_check_branch
    %106 = sbr.rel (0) target = $region25
  $region24: #{transformer_encoder_forward.12} parent=0 // pred_region
    _
  $region25: #{transformer_encoder_forward.12} parent=0 // pred_fallthru
    _
  // Predicated region
  $region26: #{transformer_encoder_forward.12} parent=0 // pred_check
    _
  $region27: #{transformer_encoder_forward.12} parent=0 // pred_check_branch
    %108 = sbr.rel (0) target = $region29
  $region28: #{transformer_encoder_forward.12} parent=0 // pred_region
    _
  $region29: #{transformer_encoder_forward.12} parent=0 // pred_fallthru
    _

// kernel: transformer_encoder_forward.13
$region0: #{transformer_encoder_forward.13}
  #allocation0 [shape = 'u32[]', space=smem, size = 0x4, offset = 0x4, fixed_abs, tag = 'smem constant byte address 0x4 - core index']
  #allocation1 [shape = 'u32[144,128]{1,0:T(1,128)}', space=vmem, size = 0x12000, scoped, tag = 'internal scratch']
  %s0 = inlined_call_operand.vmem [shape: f32[16,32], index: 0, kind: input, shape index: {}]
  %s1 = inlined_call_operand.vmem [shape: f32[1,32], index: 1, kind: input, shape index: {}]
  %s2 = inlined_call_operand.vmem [shape: f32[1,32], index: 2, kind: input, shape index: {}]
  %s3 = inlined_call_operand.vmem [shape: bf16[32,96], index: 3, kind: input, shape index: {}]
  %s4 = inlined_call_operand.vmem [shape: f32[1,96], index: 4, kind: input, shape index: {}]
  %s5 = inlined_call_operand.vmem [shape: f32[16,32], index: 5, kind: output, shape index: {0}]
  %s6 = inlined_call_operand.vmem [shape: bf16[16,96], index: 6, kind: output, shape index: {1}]
  %7 = xla_tuple %s5, %s6
  %s8 = sld [smem:[#allocation0]]
  $region38: #{transformer_encoder_forward.13} parent=0
    _
  %s10 = ssub.s32 1, %s8
  %s11 = scalar_select 0, %s10, %s8
  // Predicated region
  $region2: #{transformer_encoder_forward.13} parent=0 // pred_check
    _
  $region3: #{transformer_encoder_forward.13} parent=0 // pred_check_branch
    %13 = sbr.rel (0) target = $region5
  $region4: #{transformer_encoder_forward.13} parent=0 // pred_region
    _
  $region5: #{transformer_encoder_forward.13} parent=0 // pred_fallthru
    _
  // Predicated region
  $region6: #{transformer_encoder_forward.13} parent=0 // pred_check
    _
  $region7: #{transformer_encoder_forward.13} parent=0 // pred_check_branch
    %15 = sbr.rel (0) target = $region9
  $region8: #{transformer_encoder_forward.13} parent=0 // pred_region
    _
  $region9: #{transformer_encoder_forward.13} parent=0 // pred_fallthru
    _
  // Predicated region
  $region10: #{transformer_encoder_forward.13} parent=0 // pred_check
    _
  $region11: #{transformer_encoder_forward.13} parent=0 // pred_check_branch
    %17 = sbr.rel (0) target = $region13
  $region12: #{transformer_encoder_forward.13} parent=0 // pred_region
    _
  $region13: #{transformer_encoder_forward.13} parent=0 // pred_fallthru
    _
  // Predicated region
  $region14: #{transformer_encoder_forward.13} parent=0 // pred_check
    _
  $region15: #{transformer_encoder_forward.13} parent=0 // pred_check_branch
    %19 = sbr.rel (0) target = $region17
  $region16: #{transformer_encoder_forward.13} parent=0 // pred_region
    _
  $region17: #{transformer_encoder_forward.13} parent=0 // pred_fallthru
    _
  // Predicated region
  $region18: #{transformer_encoder_forward.13} parent=0 // pred_check
    _
  $region19: #{transformer_encoder_forward.13} parent=0 // pred_check_branch
    %21 = sbr.rel (0) target = $region21
  $region20: #{transformer_encoder_forward.13} parent=0 // pred_region
    _
  $region21: #{transformer_encoder_forward.13} parent=0 // pred_fallthru
    _
  %v23 = vld [vmem:[%s0] sm:$0xff]
  %v24 = vld [vmem:[%s0 + $0x8] sm:$0xff]
  %vm25 = vcmask 261120
  %v26 = vsel %vm25, %v23, 0.0
  %27 = vadd.xlane.f32.xlu0 %v26
  %v28 = vpop.xlane.xlu0 %27
  %v29 = vsel %vm25, %v24, 0.0
  %30 = vadd.xlane.f32.xlu0 %v29
  %v31 = vpop.xlane.xlu0 %30
  %v32 = vrcp.pop 32.0
  %v33 = vmul.f32 %v28, %v32
  %v34 = vmul.f32 %v31, %v32
  %v35 = vsub.f32 %v23, %v33
  %v36 = vsub.f32 %v24, %v34
  %v37 = vmul.f32 %v35, %v35
  %v38 = vmul.f32 %v36, %v36
  %v39 = vsel %vm25, %v37, 0.0
  %40 = vadd.xlane.f32.xlu0 %v39
  %v41 = vpop.xlane.xlu0 %40
  %v42 = vsel %vm25, %v38, 0.0
  %43 = vadd.xlane.f32.xlu0 %v42
  %v44 = vpop.xlane.xlu0 %43
  %v45 = vmul.f32 %v41, %v32
  %v46 = vmul.f32 %v44, %v32
  %v47 = vadd.f32 %v45, 1e-05
  %v48 = vadd.f32 %v46, 1e-05
  %v49 = vrsqrt.pop %v47
  %v50 = vrsqrt.pop %v48
  %v51 = vmul.f32 %v35, %v49
  %v52 = vmul.f32 %v36, %v50
  %v53 = vld [vmem:[%s1] sm:$0x1]
  %v55 = vlaneseq
  %v56 = vshrl.u32 %v55, 7
  %v57 = vsub.s32 0, %v56
  %v58 = vrot.slane %v53, %v57
  %v60 = vmul.f32 %v51, %v58
  %v61 = vmul.f32 %v52, %v58
  %v62 = vld [vmem:[%s2] sm:$0x1]
  %v64 = vlaneseq
  %v65 = vshrl.u32 %v64, 7
  %v66 = vsub.s32 0, %v65
  %v67 = vrot.slane %v62, %v66
  %v69 = vadd.f32 %v60, %v67
  %v70 = vadd.f32 %v61, %v67
  %71 = vst.msk [vmem:[%s5] sm:$0xff] %vm25, %v69
  %72 = vst.msk [vmem:[%s5 + $0x8] sm:$0xff] %vm25, %v70
  %v73 = vpack.c.bf16 %v70, %v69
  %v74 = vld [vmem:[%s3] sm:$0xf]
  %v75 = vld [vmem:[%s3 + $0x4] sm:$0xf]
  %v76 = vld [vmem:[%s3 + $0x8] sm:$0xf]
  %v77 = vld [vmem:[%s3 + $0xc] sm:$0xf]
  %v78 = vld [vmem:[%s4] sm:$0x1]
  %v80 = vlaneseq
  %v81 = vshrl.u32 %v80, 7
  %v82 = vsub.s32 0, %v81
  %v83 = vrot.slane %v78, %v82
  %v89 = vunpack.c.l.b16 %v74
  %v90 = vunpack.c.l.b16 %v75
  %v91 = vunpack.c.l.b16 %v76
  %v92 = vunpack.c.l.b16 %v77
  %v93 = vpack.c.b16 %v90, %v89
  %v94 = vpack.c.b16 %v92, %v91
  %v98 = vsel %vm25, %v73, 0
  %100 = vmatprep.subr.bf16.mxu0 0
  %101 = vmatpush1.bf16.msra.mxu0 0
  %102 = vmatprep.subr.bf16.mxu0 0
  %103 = vmatpush1.bf16.msra.mxu0 0
  %104 = vmatprep.subr.bf16.mxu0 0
  %105 = vmatpush1.bf16.msra.mxu0 0
  %106 = vmatprep.subr.bf16.mxu0 0
  %107 = vmatpush1.bf16.msra.mxu0 0
  %108 = vmatprep.subr.bf16.mxu0 0
  %109 = vmatpush1.bf16.msra.mxu0 0
  %110 = vmatprep.subr.bf16.mxu0 0
  %111 = vmatpush1.bf16.msra.mxu0 0
  %112 = vmatprep.subr.bf16.mxu0 0
  %113 = vmatpush1.bf16.msra.mxu0 %v94
  %114 = vmatprep.subr.bf16.mxu0 0
  %115 = vmatpush1.bf16.msra.mxu0 %v93
  %116 = vmatprep.subr.bf16.mxu0 0
  %117 = vmatpush2.bf16.msra.mxu0 0
  %118 = vmatprep.subr.bf16.mxu0 0
  %119 = vmatpush2.bf16.msra.mxu0 0
  %120 = vmatprep.subr.bf16.mxu0 0
  %121 = vmatpush2.bf16.msra.mxu0 0
  %122 = vmatprep.subr.bf16.mxu0 0
  %123 = vmatpush2.bf16.msra.mxu0 0
  %124 = vmatprep.subr.bf16.mxu0 0
  %125 = vmatpush2.bf16.msra.mxu0 0
  %126 = vmatprep.subr.bf16.mxu0 0
  %127 = vmatpush2.bf16.msra.mxu0 0
  %128 = vmatprep.subr.bf16.mxu0 0
  %129 = vmatpush2.bf16.msra.mxu0 0
  %130 = vmatprep.subr.bf16.mxu0 0
  %131 = vmatpush2.bf16.msra.mxu0 0
  %132 = vmatprep.mubr.bf16.mxu0 0
  %133 = vmatmul.mubr.bf16.gmra.mxu0 %v98
  %v134 = vpop.f32.mrf.mxu0
  %v135 = vadd.f32 %v83, %v134
  %v136 = vpop.f32.mrf.mxu0
  %v137 = vpop.f32.mrf.mxu0
  %v138 = vadd.f32 %v83, %v137
  %v139 = vpop.f32.mrf.mxu0
  %140 = vdwg.mxu0
  %v141 = vpack.c.bf16 %v138, %v135
  %v143 = vunpack.c.l.b16 %v141
  %v144 = vunpack.c.h.b16 %v141
  %v145 = vpack.c.b16 %v143, %v143
  %v146 = vpack.c.b16 %v144, %v144
  %vm149 = vcmask 781312
  %150 = vst.msk [vmem:[%s6] sm:$0xf] %vm149, %v145
  %151 = vst.msk [vmem:[%s6 + $0x4] sm:$0xf] %vm149, %v146
  // Predicated region
  $region22: #{transformer_encoder_forward.13} parent=0 // pred_check
    _
  $region23: #{transformer_encoder_forward.13} parent=0 // pred_check_branch
    %153 = sbr.rel (0) target = $region25
  $region24: #{transformer_encoder_forward.13} parent=0 // pred_region
    _
  $region25: #{transformer_encoder_forward.13} parent=0 // pred_fallthru
    _
  // Predicated region
  $region26: #{transformer_encoder_forward.13} parent=0 // pred_check
    _
  $region27: #{transformer_encoder_forward.13} parent=0 // pred_check_branch
    %155 = sbr.rel (0) target = $region29
  $region28: #{transformer_encoder_forward.13} parent=0 // pred_region
    _
  $region29: #{transformer_encoder_forward.13} parent=0 // pred_fallthru
    _
  // Predicated region
  $region30: #{transformer_encoder_forward.13} parent=0 // pred_check
    _
  $region31: #{transformer_encoder_forward.13} parent=0 // pred_check_branch
    %157 = sbr.rel (0) target = $region33
  $region32: #{transformer_encoder_forward.13} parent=0 // pred_region
    _
  $region33: #{transformer_encoder_forward.13} parent=0 // pred_fallthru
    _
  // Predicated region
  $region34: #{transformer_encoder_forward.13} parent=0 // pred_check
    _
  $region35: #{transformer_encoder_forward.13} parent=0 // pred_check_branch
    %159 = sbr.rel (0) target = $region37
  $region36: #{transformer_encoder_forward.13} parent=0 // pred_region
    _
  $region37: #{transformer_encoder_forward.13} parent=0 // pred_fallthru
    _

// kernel: transformer_encoder_forward.15
$region0: #{transformer_encoder_forward.15}
  #allocation0 [shape = 'u32[]', space=smem, size = 0x4, offset = 0x4, fixed_abs, tag = 'smem constant byte address 0x4 - core index']
  #allocation1 [shape = 'u32[144,128]{1,0:T(1,128)}', space=vmem, size = 0x12000, scoped, tag = 'internal scratch']
  #allocation2 [shape = 'f32[16,32]{1,0:T(8,128)}', space=vmem, size = 0x2000, scoped, tag = 'scratch operand']
  %s0 = inlined_call_operand.vmem [shape: bf16[16,32], index: 0, kind: input, shape index: {}]
  %s1 = inlined_call_operand.vmem [shape: bf16[32,32], index: 1, kind: input, shape index: {}]
  %s2 = inlined_call_operand.vmem [shape: f32[1,32], index: 2, kind: input, shape index: {}]
  %s3 = inlined_call_operand.vmem [shape: f32[16,32], index: 3, kind: input, shape index: {}, may-alias: {3,4}]
  %s4 = inlined_call_operand.vmem [shape: f32[16,32], index: 4, kind: output, shape index: {}, may-alias: {3,4}]
  %s5 = sld [smem:[#allocation0]]
  $region34: #{transformer_encoder_forward.15} parent=0
    _
  %s7 = ssub.s32 1, %s5
  %s8 = scalar_select 0, %s7, %s5
  // Predicated region
  $region2: #{transformer_encoder_forward.15} parent=0 // pred_check
    _
  $region3: #{transformer_encoder_forward.15} parent=0 // pred_check_branch
    %10 = sbr.rel (0) target = $region5
  $region4: #{transformer_encoder_forward.15} parent=0 // pred_region
    _
  $region5: #{transformer_encoder_forward.15} parent=0 // pred_fallthru
    _
  // Predicated region
  $region6: #{transformer_encoder_forward.15} parent=0 // pred_check
    _
  $region7: #{transformer_encoder_forward.15} parent=0 // pred_check_branch
    %12 = sbr.rel (0) target = $region9
  $region8: #{transformer_encoder_forward.15} parent=0 // pred_region
    _
  $region9: #{transformer_encoder_forward.15} parent=0 // pred_fallthru
    _
  // Predicated region
  $region10: #{transformer_encoder_forward.15} parent=0 // pred_check
    _
  $region11: #{transformer_encoder_forward.15} parent=0 // pred_check_branch
    %14 = sbr.rel (0) target = $region13
  $region12: #{transformer_encoder_forward.15} parent=0 // pred_region
    _
  $region13: #{transformer_encoder_forward.15} parent=0 // pred_fallthru
    _
  // Predicated region
  $region14: #{transformer_encoder_forward.15} parent=0 // pred_check
    _
  $region15: #{transformer_encoder_forward.15} parent=0 // pred_check_branch
    %16 = sbr.rel (0) target = $region17
  $region16: #{transformer_encoder_forward.15} parent=0 // pred_region
    _
  $region17: #{transformer_encoder_forward.15} parent=0 // pred_fallthru
    _
  %p18 = scmp.eq.s32.totalorder 0, 0
  // Predicated region
  $region18: #{transformer_encoder_forward.15} parent=0 // pred_check
    %p19 = pneg %p18
  $region19: #{transformer_encoder_forward.15} parent=0 // pred_check_branch
    %21 = sbr.rel (%p19) target = $region21
  $region20: #{transformer_encoder_forward.15} parent=0 // pred_region
    %vm22 = vcmask 261120
    %23 = vst.msk [vmem:[#allocation2] sm:$0xff] %vm22, 0.0
    %24 = vst.msk [vmem:[#allocation2 + $0x8] sm:$0xff] %vm22, 0.0
  $region21: #{transformer_encoder_forward.15} parent=0 // pred_fallthru
    _
  %v25 = vld [vmem:[#allocation2] sm:$0xff]
  %v26 = vld [vmem:[#allocation2 + $0x8] sm:$0xff]
  %v27 = vld [vmem:[%s0] sm:$0xf]
  %v28 = vld [vmem:[%s0 + $0x4] sm:$0xf]
  %v29 = vld [vmem:[%s1] sm:$0xf]
  %v30 = vld [vmem:[%s1 + $0x4] sm:$0xf]
  %v31 = vld [vmem:[%s1 + $0x8] sm:$0xf]
  %v32 = vld [vmem:[%s1 + $0xc] sm:$0xf]
  %v35 = vunpack.c.l.b16 %v27
  %v36 = vunpack.c.l.b16 %v28
  %v37 = vpack.c.b16 %v36, %v35
  %v42 = vunpack.c.l.b16 %v29
  %v43 = vunpack.c.l.b16 %v30
  %v44 = vunpack.c.l.b16 %v31
  %v45 = vunpack.c.l.b16 %v32
  %v46 = vpack.c.b16 %v43, %v42
  %v47 = vpack.c.b16 %v45, %v44
  %vm50 = vcmask 261120
  %v52 = vsel %vm50, %v37, 0
  %54 = vmatprep.subr.bf16.mxu0 0
  %55 = vmatpush1.bf16.msra.mxu0 0
  %56 = vmatprep.subr.bf16.mxu0 0
  %57 = vmatpush1.bf16.msra.mxu0 0
  %58 = vmatprep.subr.bf16.mxu0 0
  %59 = vmatpush1.bf16.msra.mxu0 0
  %60 = vmatprep.subr.bf16.mxu0 0
  %61 = vmatpush1.bf16.msra.mxu0 0
  %62 = vmatprep.subr.bf16.mxu0 0
  %63 = vmatpush1.bf16.msra.mxu0 0
  %64 = vmatprep.subr.bf16.mxu0 0
  %65 = vmatpush1.bf16.msra.mxu0 0
  %66 = vmatprep.subr.bf16.mxu0 0
  %67 = vmatpush1.bf16.msra.mxu0 %v47
  %68 = vmatprep.subr.bf16.mxu0 0
  %69 = vmatpush1.bf16.msra.mxu0 %v46
  %70 = vmatprep.subr.bf16.mxu0 0
  %71 = vmatpush2.bf16.msra.mxu0 0
  %72 = vmatprep.subr.bf16.mxu0 0
  %73 = vmatpush2.bf16.msra.mxu0 0
  %74 = vmatprep.subr.bf16.mxu0 0
  %75 = vmatpush2.bf16.msra.mxu0 0
  %76 = vmatprep.subr.bf16.mxu0 0
  %77 = vmatpush2.bf16.msra.mxu0 0
  %78 = vmatprep.subr.bf16.mxu0 0
  %79 = vmatpush2.bf16.msra.mxu0 0
  %80 = vmatprep.subr.bf16.mxu0 0
  %81 = vmatpush2.bf16.msra.mxu0 0
  %82 = vmatprep.subr.bf16.mxu0 0
  %83 = vmatpush2.bf16.msra.mxu0 0
  %84 = vmatprep.subr.bf16.mxu0 0
  %85 = vmatpush2.bf16.msra.mxu0 0
  %86 = vmatprep.mubr.bf16.mxu0 0
  %87 = vmatmul.mubr.bf16.gmra.mxu0 %v52
  %v88 = vpop.f32.mrf.mxu0
  %v89 = vadd.f32 0.0, %v88
  %v90 = vpop.f32.mrf.mxu0
  %v91 = vpop.f32.mrf.mxu0
  %v92 = vadd.f32 0.0, %v91
  %v93 = vpop.f32.mrf.mxu0
  %94 = vdwg.mxu0
  %v95 = vadd.f32 %v25, %v89
  %v96 = vadd.f32 %v26, %v92
  %97 = vst.msk [vmem:[#allocation2] sm:$0xff] %vm50, %v95
  %98 = vst.msk [vmem:[#allocation2 + $0x8] sm:$0xff] %vm50, %v96
  // Predicated region
  $region22: #{transformer_encoder_forward.15} parent=0 // pred_check
    %p99 = pneg %p18
  $region23: #{transformer_encoder_forward.15} parent=0 // pred_check_branch
    %101 = sbr.rel (%p99) target = $region25
  $region24: #{transformer_encoder_forward.15} parent=0 // pred_region
    %v102 = vld [vmem:[#allocation2] sm:$0xff]
    %v103 = vld [vmem:[#allocation2 + $0x8] sm:$0xff]
    %v104 = vld [vmem:[%s2] sm:$0x1]
    %v106 = vlaneseq
    %v107 = vshrl.u32 %v106, 7
    %v108 = vsub.s32 0, %v107
    %v109 = vrot.slane %v104, %v108
    %v111 = vadd.f32 %v102, %v109
    %v112 = vadd.f32 %v103, %v109
    %v113 = vld [vmem:[%s3] sm:$0xff]
    %v114 = vld [vmem:[%s3 + $0x8] sm:$0xff]
    %v115 = vadd.f32 %v111, %v113
    %v116 = vadd.f32 %v112, %v114
    %117 = vst.msk [vmem:[%s4] sm:$0xff] %vm50, %v115
    %118 = vst.msk [vmem:[%s4 + $0x8] sm:$0xff] %vm50, %v116
  $region25: #{transformer_encoder_forward.15} parent=0 // pred_fallthru
    _
  // Predicated region
  $region26: #{transformer_encoder_forward.15} parent=0 // pred_check
    _
  $region27: #{transformer_encoder_forward.15} parent=0 // pred_check_branch
    %120 = sbr.rel (0) target = $region29
  $region28: #{transformer_encoder_forward.15} parent=0 // pred_region
    _
  $region29: #{transformer_encoder_forward.15} parent=0 // pred_fallthru
    _
  // Predicated region
  $region30: #{transformer_encoder_forward.15} parent=0 // pred_check
    _
  $region31: #{transformer_encoder_forward.15} parent=0 // pred_check_branch
    %122 = sbr.rel (0) target = $region33
  $region32: #{transformer_encoder_forward.15} parent=0 // pred_region
    _
  $region33: #{transformer_encoder_forward.15} parent=0 // pred_fallthru
    _

// kernel: transformer_encoder_forward.14
$region0: #{transformer_encoder_forward.14}
  #allocation0 [shape = 'u32[]', space=smem, size = 0x4, offset = 0x4, fixed_abs, tag = 'smem constant byte address 0x4 - core index']
  #allocation1 [shape = 'u32[144,128]{1,0:T(1,128)}', space=vmem, size = 0x12000, scoped, tag = 'internal scratch']
  %s0 = inlined_call_operand.vmem [shape: bf16[2,8,96], index: 0, kind: input, shape index: {}]
  %s1 = inlined_call_operand.vmem [shape: bf16[2,8,32], index: 1, kind: output, shape index: {}]
  %s2 = sld [smem:[#allocation0]]
  $region37: #{transformer_encoder_forward.14} parent=0
    _
  %s4 = ssub.s32 1, %s2
  %s5 = scalar_select 0, %s4, %s2
  loop: start=0, step=1, limit=4
  $region2: #{transformer_encoder_forward.14} parent=0 // loop_pre_header
    _
  $region3: #{transformer_encoder_forward.14} parent=0 // loop_header
    %s7 = sphi 0, %s11
    %p8 = scmp.ge.s32.totalorder %s7, 4
    %s17 = sphi 0, %s19
    %s20 = sphi 0, %s17
    %s21 = sphi 0, %s20
    %s37 = sphi 0, %s21
    %s43 = sphi 0, %s45
    %s46 = sphi 0, %s43
    %s47 = sphi 0, %s46
    %s63 = sphi 0, %s47
  $region4: #{transformer_encoder_forward.14} parent=0 // loop_header_branch
    %10 = sbr.rel (%p8) target = $region8
  $region5: #{transformer_encoder_forward.14} parent=0 // loop_body
    %s12 = ssub.s32 %s7, 1
    %s13 = ssub.s32 %s7, 2
    %s14 = sadd.s32 %s7, 1
    %s15 = ssub.s32 %s7, %s14
    %p16 = scmp.eq.s32.totalorder %s15, 0
    %s18 = sadd.s32 %s17, 1
    %s19 = scalar_select %p16, %s17, %s18
    %p22 = pneg %p16
    %p23 = scmp.eq.s32.totalorder %s7, 1
    %p24 = por %p22, %p23
    %p25 = scmp.ne.s32.totalorder %s17, %s20
    %p26 = scmp.eq.s32.totalorder %s7, 0
    %p27 = por %p25, %p26
    %p28 = scmp.ne.s32.totalorder %s17, %s20
    %p29 = scmp.eq.s32.totalorder %s12, 1
    %p30 = por %p28, %p29
    %p31 = scmp.ne.s32.totalorder %s20, %s21
    %p32 = scmp.eq.s32.totalorder %s12, 0
    %p33 = por %p31, %p32
    %p34 = scmp.ne.s32.totalorder %s20, %s21
    %p35 = scmp.eq.s32.totalorder %s13, 1
    %p36 = por %p34, %p35
    %p38 = scmp.ne.s32.totalorder %s21, %s37
    %p39 = scmp.eq.s32.totalorder %s13, 0
    %p40 = por %p38, %p39
    %s41 = ssub.s32 %s7, %s14
    %p42 = scmp.eq.s32.totalorder %s41, 0
    %s44 = sadd.s32 %s43, 1
    %s45 = scalar_select %p42, %s43, %s44
    %p48 = pneg %p42
    %p49 = scmp.eq.s32.totalorder %s7, 1
    %p50 = por %p48, %p49
    %p51 = scmp.ne.s32.totalorder %s43, %s46
    %p52 = scmp.eq.s32.totalorder %s7, 0
    %p53 = por %p51, %p52
    %p54 = scmp.ne.s32.totalorder %s43, %s46
    %p55 = scmp.eq.s32.totalorder %s12, 1
    %p56 = por %p54, %p55
    %p57 = scmp.ne.s32.totalorder %s46, %s47
    %p58 = scmp.eq.s32.totalorder %s12, 0
    %p59 = por %p57, %p58
    %p60 = scmp.ne.s32.totalorder %s46, %s47
    %p61 = scmp.eq.s32.totalorder %s13, 1
    %p62 = por %p60, %p61
    %p64 = scmp.ne.s32.totalorder %s47, %s63
    %p65 = scmp.eq.s32.totalorder %s13, 0
    %p66 = por %p64, %p65
    %p67 = scmp.le.s32.totalorder 1, %s7
    %p68 = scmp.lt.s32.totalorder %s7, 3
    %p69 = pnand %p67, %p68
    %p70 = pneg %p69
    // Predicated region
    $region9: #{transformer_encoder_forward.14} parent=5 // pred_check
      _
    $region10: #{transformer_encoder_forward.14} parent=5 // pred_check_branch
      %72 = sbr.rel (%p69) target = $region12
    $region11: #{transformer_encoder_forward.14} parent=5 // pred_region
      %s73 = ssub.s32 %s7, 1
    $region12: #{transformer_encoder_forward.14} parent=5 // pred_fallthru
      _
    %p74 = scmp.lt.s32.totalorder %s7, 2
    // Predicated region
    $region13: #{transformer_encoder_forward.14} parent=5 // pred_check
      %p75 = pneg %p74
    $region14: #{transformer_encoder_forward.14} parent=5 // pred_check_branch
      %77 = sbr.rel (%p75) target = $region16
    $region15: #{transformer_encoder_forward.14} parent=5 // pred_region
      // Predicated region
      $region17: #{transformer_encoder_forward.14} parent=15 // pred_check
        %p78 = pneg %p27
      $region18: #{transformer_encoder_forward.14} parent=15 // pred_check_branch
        %80 = sbr.rel (%p78) target = $region20
      $region19: #{transformer_encoder_forward.14} parent=15 // pred_region
        %p81 = scmp.lt.s32.totalorder %s7, 1
        %s82 = scalar_select %p81, %s7, 1
        %s83 = smul.addr %s82, 4
        %s84 = scalar_lea.vmem %s0, %s83
      $region20: #{transformer_encoder_forward.14} parent=15 // pred_fallthru
        _
    $region16: #{transformer_encoder_forward.14} parent=5 // pred_fallthru
      _
    %p85 = scmp.le.s32.totalorder 1, %s7
    %p86 = scmp.lt.s32.totalorder %s7, 3
    %p87 = pnand %p85, %p86
    %p88 = pneg %p87
    // Predicated region
    $region21: #{transformer_encoder_forward.14} parent=5 // pred_check
      _
    $region22: #{transformer_encoder_forward.14} parent=5 // pred_check_branch
      %90 = sbr.rel (%p87) target = $region24
    $region23: #{transformer_encoder_forward.14} parent=5 // pred_region
      %s91 = ssub.s32 %s7, 1
      %p92 = scmp.lt.s32.totalorder %s12, 1
      %s93 = scalar_select %p92, %s12, 1
      %s94 = smul.addr %s93, 4
      %s95 = scalar_lea.vmem %s0, %s94
      %p96 = pneg %p33
      %p97 = pneg %p30
      %p98 = pneg %p59
      %p99 = pneg %p56
      %p100 = scmp.lt.s32.totalorder %s12, 1
      %s101 = scalar_select %p100, %s12, 1
      %s102 = smul.addr %s101, 4
      %s103 = scalar_lea.vmem %s1, %s102
      %p104 = scmp.lt.s32.totalorder %s12, 1
      %s105 = scalar_select %p104, %s12, 1
      %s106 = smul.addr %s105, 4
      %s107 = scalar_lea.vmem %s0, %s106
      %p108 = scmp.lt.s32.totalorder %s12, 1
      %s109 = scalar_select %p108, %s12, 1
      %s110 = smul.addr %s109, 4
      %s111 = scalar_lea.vmem %s1, %s110
      %v113 = vld [vmem:[%s107] sm:$0xf]
      %v115 = vunpack.c.l.b16 %v113
      %v116 = vpack.c.b16 %v115, %v115
      %117 = vrot.lane.b32.xlu0 %v116, 96
      %v118 = vpop.permute.xlu0 %117
      %vm119 = vcmask 31744
      %v121 = vsel %vm119, %v113, 0
      %v124 = vsel %vm119, %v118, 0
      %126 = vmatprep.subr.bf16.mxu0 0
      %127 = vmatpush1.bf16.xpose.msra.mxu0 0
      %128 = vmatprep.subr.bf16.mxu0 0
      %129 = vmatpush1.bf16.xpose.msra.mxu0 0
      %130 = vmatprep.subr.bf16.mxu0 0
      %131 = vmatpush1.bf16.xpose.msra.mxu0 0
      %132 = vmatprep.subr.bf16.mxu0 0
      %133 = vmatpush1.bf16.xpose.msra.mxu0 0
      %134 = vmatprep.subr.bf16.mxu0 0
      %135 = vmatpush1.bf16.xpose.msra.mxu0 0
      %136 = vmatprep.subr.bf16.mxu0 0
      %137 = vmatpush1.bf16.xpose.msra.mxu0 0
      %138 = vmatprep.subr.bf16.mxu0 0
      %139 = vmatpush1.bf16.xpose.msra.mxu0 0
      %140 = vmatprep.subr.bf16.mxu0 0
      %141 = vmatpush1.bf16.xpose.msra.mxu0 %v124
      %142 = vmatprep.subr.bf16.mxu0 0
      %143 = vmatpush2.bf16.xpose.msra.mxu0 0
      %144 = vmatprep.subr.bf16.mxu0 0
      %145 = vmatpush2.bf16.xpose.msra.mxu0 0
      %146 = vmatprep.subr.bf16.mxu0 0
      %147 = vmatpush2.bf16.xpose.msra.mxu0 0
      %148 = vmatprep.subr.bf16.mxu0 0
      %149 = vmatpush2.bf16.xpose.msra.mxu0 0
      %150 = vmatprep.subr.bf16.mxu0 0
      %151 = vmatpush2.bf16.xpose.msra.mxu0 0
      %152 = vmatprep.subr.bf16.mxu0 0
      %153 = vmatpush2.bf16.xpose.msra.mxu0 0
      %154 = vmatprep.subr.bf16.mxu0 0
      %155 = vmatpush2.bf16.xpose.msra.mxu0 0
      %156 = vmatprep.subr.bf16.mxu0 0
      %157 = vmatpush2.bf16.xpose.msra.mxu0 0
      %158 = vmatprep.mubr.bf16.mxu0 0
      %159 = vmatmul.mubr.bf16.gmra.mxu0 %v121
      %v160 = vpop.f32.mrf.mxu0
      %v161 = vadd.f32 0.0, %v160
      %v162 = vpop.f32.mrf.mxu0
      %v163 = vpop.f32.mrf.mxu0
      %v164 = vpop.f32.mrf.mxu0
      %165 = vdwg.mxu0
      %v166 = vmul.f32 %v161, 0.5
      %vm167 = vcmask 64512
      %v168 = vsel %vm167, %v166, -inf
      %169 = vmax.xlane.f32.xlu0 %v168
      %v170 = vpop.xlane.xlu0 %169
      %v171 = vsub.f32 %v166, %v170
      %v172 = vmul.f32 %v171, 1.442695
      %v173 = vpow.pop %v172
      %v174 = vsel %vm167, %v173, 0.0
      %175 = vadd.xlane.f32.xlu0 %v174
      %v176 = vpop.xlane.xlu0 %175
      %v177 = vrcp.pop %v176
      %v178 = vmul.f32 %v173, %v177
      %v179 = vpack.c.bf16 %v178, %v178
      %180 = vrot.lane.b32.xlu0 %v116, 64
      %v181 = vpop.permute.xlu0 %180
      %v183 = vsel %vm167, %v179, 0
      %vm185 = vcmask 1043456
      %v187 = vsel %vm185, %v181, 0
      %189 = vmatprep.subr.bf16.mxu0 0
      %190 = vmatpush1.bf16.msra.mxu0 0
      %191 = vmatprep.subr.bf16.mxu0 0
      %192 = vmatpush1.bf16.msra.mxu0 0
      %193 = vmatprep.subr.bf16.mxu0 0
      %194 = vmatpush1.bf16.msra.mxu0 0
      %195 = vmatprep.subr.bf16.mxu0 0
      %196 = vmatpush1.bf16.msra.mxu0 0
      %197 = vmatprep.subr.bf16.mxu0 0
      %198 = vmatpush1.bf16.msra.mxu0 0
      %199 = vmatprep.subr.bf16.mxu0 0
      %200 = vmatpush1.bf16.msra.mxu0 0
      %201 = vmatprep.subr.bf16.mxu0 0
      %202 = vmatpush1.bf16.msra.mxu0 0
      %203 = vmatprep.subr.bf16.mxu0 0
      %204 = vmatpush1.bf16.msra.mxu0 %v187
      %205 = vmatprep.subr.bf16.mxu0 0
      %206 = vmatpush2.bf16.msra.mxu0 0
      %207 = vmatprep.subr.bf16.mxu0 0
      %208 = vmatpush2.bf16.msra.mxu0 0
      %209 = vmatprep.subr.bf16.mxu0 0
      %210 = vmatpush2.bf16.msra.mxu0 0
      %211 = vmatprep.subr.bf16.mxu0 0
      %212 = vmatpush2.bf16.msra.mxu0 0
      %213 = vmatprep.subr.bf16.mxu0 0
      %214 = vmatpush2.bf16.msra.mxu0 0
      %215 = vmatprep.subr.bf16.mxu0 0
      %216 = vmatpush2.bf16.msra.mxu0 0
      %217 = vmatprep.subr.bf16.mxu0 0
      %218 = vmatpush2.bf16.msra.mxu0 0
      %219 = vmatprep.subr.bf16.mxu0 0
      %220 = vmatpush2.bf16.msra.mxu0 0
      %221 = vmatprep.mubr.bf16.mxu0 0
      %222 = vmatmul.mubr.bf16.gmra.mxu0 %v183
      %v223 = vpop.f32.mrf.mxu0
      %v224 = vadd.f32 0.0, %v223
      %v225 = vpop.f32.mrf.mxu0
      %v226 = vpop.f32.mrf.mxu0
      %v227 = vpop.f32.mrf.mxu0
      %228 = vdwg.mxu0
      %v229 = vpack.c.bf16 %v224, %v224
      %vm230 = vcmask 27648
      %231 = vst.msk [vmem:[%s111] sm:$0xf] %vm230, %v229
      %232 = vrot.lane.b32.xlu0 %v116, 124
      %v233 = vpop.permute.xlu0 %232
      %234 = vrot.lane.b32.xlu0 %v116, 92
      %v235 = vpop.permute.xlu0 %234
      %v237 = vsel %vm119, %v233, 0
      %v240 = vsel %vm119, %v235, 0
      %242 = vmatprep.subr.bf16.mxu0 0
      %243 = vmatpush1.bf16.xpose.msra.mxu0 0
      %244 = vmatprep.subr.bf16.mxu0 0
      %245 = vmatpush1.bf16.xpose.msra.mxu0 0
      %246 = vmatprep.subr.bf16.mxu0 0
      %247 = vmatpush1.bf16.xpose.msra.mxu0 0
      %248 = vmatprep.subr.bf16.mxu0 0
      %249 = vmatpush1.bf16.xpose.msra.mxu0 0
      %250 = vmatprep.subr.bf16.mxu0 0
      %251 = vmatpush1.bf16.xpose.msra.mxu0 0
      %252 = vmatprep.subr.bf16.mxu0 0
      %253 = vmatpush1.bf16.xpose.msra.mxu0 0
      %254 = vmatprep.subr.bf16.mxu0 0
      %255 = vmatpush1.bf16.xpose.msra.mxu0 0
      %256 = vmatprep.subr.bf16.mxu0 0
      %257 = vmatpush1.bf16.xpose.msra.mxu0 %v240
      %258 = vmatprep.subr.bf16.mxu0 0
      %259 = vmatpush2.bf16.xpose.msra.mxu0 0
      %260 = vmatprep.subr.bf16.mxu0 0
      %261 = vmatpush2.bf16.xpose.msra.mxu0 0
      %262 = vmatprep.subr.bf16.mxu0 0
      %263 = vmatpush2.bf16.xpose.msra.mxu0 0
      %264 = vmatprep.subr.bf16.mxu0 0
      %265 = vmatpush2.bf16.xpose.msra.mxu0 0
      %266 = vmatprep.subr.bf16.mxu0 0
      %267 = vmatpush2.bf16.xpose.msra.mxu0 0
      %268 = vmatprep.subr.bf16.mxu0 0
      %269 = vmatpush2.bf16.xpose.msra.mxu0 0
      %270 = vmatprep.subr.bf16.mxu0 0
      %271 = vmatpush2.bf16.xpose.msra.mxu0 0
      %272 = vmatprep.subr.bf16.mxu0 0
      %273 = vmatpush2.bf16.xpose.msra.mxu0 0
      %274 = vmatprep.mubr.bf16.mxu0 0
      %275 = vmatmul.mubr.bf16.gmra.mxu0 %v237
      %v276 = vpop.f32.mrf.mxu0
      %v277 = vadd.f32 0.0, %v276
      %v278 = vpop.f32.mrf.mxu0
      %v279 = vpop.f32.mrf.mxu0
      %v280 = vpop.f32.mrf.mxu0
      %281 = vdwg.mxu0
      %v282 = vmul.f32 %v277, 0.5
      %v283 = vsel %vm167, %v282, -inf
      %284 = vmax.xlane.f32.xlu0 %v283
      %v285 = vpop.xlane.xlu0 %284
      %v286 = vsub.f32 %v282, %v285
      %v287 = vmul.f32 %v286, 1.442695
      %v288 = vpow.pop %v287
      %v289 = vsel %vm167, %v288, 0.0
      %290 = vadd.xlane.f32.xlu0 %v289
      %v291 = vpop.xlane.xlu0 %290
      %v292 = vrcp.pop %v291
      %v293 = vmul.f32 %v288, %v292
      %v294 = vpack.c.bf16 %v293, %v293
      %295 = vrot.lane.b32.xlu0 %v116, 60
      %v296 = vpop.permute.xlu0 %295
      %v298 = vsel %vm167, %v294, 0
      %v301 = vsel %vm185, %v296, 0
      %303 = vmatprep.subr.bf16.mxu0 0
      %304 = vmatpush1.bf16.msra.mxu0 0
      %305 = vmatprep.subr.bf16.mxu0 0
      %306 = vmatpush1.bf16.msra.mxu0 0
      %307 = vmatprep.subr.bf16.mxu0 0
      %308 = vmatpush1.bf16.msra.mxu0 0
      %309 = vmatprep.subr.bf16.mxu0 0
      %310 = vmatpush1.bf16.msra.mxu0 0
      %311 = vmatprep.subr.bf16.mxu0 0
      %312 = vmatpush1.bf16.msra.mxu0 0
      %313 = vmatprep.subr.bf16.mxu0 0
      %314 = vmatpush1.bf16.msra.mxu0 0
      %315 = vmatprep.subr.bf16.mxu0 0
      %316 = vmatpush1.bf16.msra.mxu0 0
      %317 = vmatprep.subr.bf16.mxu0 0
      %318 = vmatpush1.bf16.msra.mxu0 %v301
      %319 = vmatprep.subr.bf16.mxu0 0
      %320 = vmatpush2.bf16.msra.mxu0 0
      %321 = vmatprep.subr.bf16.mxu0 0
      %322 = vmatpush2.bf16.msra.mxu0 0
      %323 = vmatprep.subr.bf16.mxu0 0
      %324 = vmatpush2.bf16.msra.mxu0 0
      %325 = vmatprep.subr.bf16.mxu0 0
      %326 = vmatpush2.bf16.msra.mxu0 0
      %327 = vmatprep.subr.bf16.mxu0 0
      %328 = vmatpush2.bf16.msra.mxu0 0
      %329 = vmatprep.subr.bf16.mxu0 0
      %330 = vmatpush2.bf16.msra.mxu0 0
      %331 = vmatprep.subr.bf16.mxu0 0
      %332 = vmatpush2.bf16.msra.mxu0 0
      %333 = vmatprep.subr.bf16.mxu0 0
      %334 = vmatpush2.bf16.msra.mxu0 0
      %335 = vmatprep.mubr.bf16.mxu0 0
      %336 = vmatmul.mubr.bf16.gmra.mxu0 %v298
      %v337 = vpop.f32.mrf.mxu0
      %v338 = vadd.f32 0.0, %v337
      %v339 = vpop.f32.mrf.mxu0
      %v340 = vpop.f32.mrf.mxu0
      %v341 = vpop.f32.mrf.mxu0
      %342 = vdwg.mxu0
      %v343 = vpack.c.bf16 %v338, %v338
      %v345 = vunpack.c.l.b16 %v343
      %v346 = vpack.c.b16 %v345, %v345
      %347 = vrot.lane.b32.xlu0 %v346, 4
      %v348 = vpop.permute.xlu0 %347
      %vm350 = vcmask 60448
      %351 = vst.msk [vmem:[%s111] sm:$0xf] %vm350, %v348
      %352 = vrot.lane.b32.xlu0 %v116, 120
      %v353 = vpop.permute.xlu0 %352
      %354 = vrot.lane.b32.xlu0 %v116, 88
      %v355 = vpop.permute.xlu0 %354
      %v357 = vsel %vm119, %v353, 0
      %v360 = vsel %vm119, %v355, 0
      %362 = vmatprep.subr.bf16.mxu0 0
      %363 = vmatpush1.bf16.xpose.msra.mxu0 0
      %364 = vmatprep.subr.bf16.mxu0 0
      %365 = vmatpush1.bf16.xpose.msra.mxu0 0
      %366 = vmatprep.subr.bf16.mxu0 0
      %367 = vmatpush1.bf16.xpose.msra.mxu0 0
      %368 = vmatprep.subr.bf16.mxu0 0
      %369 = vmatpush1.bf16.xpose.msra.mxu0 0
      %370 = vmatprep.subr.bf16.mxu0 0
      %371 = vmatpush1.bf16.xpose.msra.mxu0 0
      %372 = vmatprep.subr.bf16.mxu0 0
      %373 = vmatpush1.bf16.xpose.msra.mxu0 0
      %374 = vmatprep.subr.bf16.mxu0 0
      %375 = vmatpush1.bf16.xpose.msra.mxu0 0
      %376 = vmatprep.subr.bf16.mxu0 0
      %377 = vmatpush1.bf16.xpose.msra.mxu0 %v360
      %378 = vmatprep.subr.bf16.mxu0 0
      %379 = vmatpush2.bf16.xpose.msra.mxu0 0
      %380 = vmatprep.subr.bf16.mxu0 0
      %381 = vmatpush2.bf16.xpose.msra.mxu0 0
      %382 = vmatprep.subr.bf16.mxu0 0
      %383 = vmatpush2.bf16.xpose.msra.mxu0 0
      %384 = vmatprep.subr.bf16.mxu0 0
      %385 = vmatpush2.bf16.xpose.msra.mxu0 0
      %386 = vmatprep.subr.bf16.mxu0 0
      %387 = vmatpush2.bf16.xpose.msra.mxu0 0
      %388 = vmatprep.subr.bf16.mxu0 0
      %389 = vmatpush2.bf16.xpose.msra.mxu0 0
      %390 = vmatprep.subr.bf16.mxu0 0
      %391 = vmatpush2.bf16.xpose.msra.mxu0 0
      %392 = vmatprep.subr.bf16.mxu0 0
      %393 = vmatpush2.bf16.xpose.msra.mxu0 0
      %394 = vmatprep.mubr.bf16.mxu0 0
      %395 = vmatmul.mubr.bf16.gmra.mxu0 %v357
      %v396 = vpop.f32.mrf.mxu0
      %v397 = vadd.f32 0.0, %v396
      %v398 = vpop.f32.mrf.mxu0
      %v399 = vpop.f32.mrf.mxu0
      %v400 = vpop.f32.mrf.mxu0
      %401 = vdwg.mxu0
      %v402 = vmul.f32 %v397, 0.5
      %v403 = vsel %vm167, %v402, -inf
      %404 = vmax.xlane.f32.xlu0 %v403
      %v405 = vpop.xlane.xlu0 %404
      %v406 = vsub.f32 %v402, %v405
      %v407 = vmul.f32 %v406, 1.442695
      %v408 = vpow.pop %v407
      %v409 = vsel %vm167, %v408, 0.0
      %410 = vadd.xlane.f32.xlu0 %v409
      %v411 = vpop.xlane.xlu0 %410
      %v412 = vrcp.pop %v411
      %v413 = vmul.f32 %v408, %v412
      %v414 = vpack.c.bf16 %v413, %v413
      %415 = vrot.lane.b32.xlu0 %v116, 56
      %v416 = vpop.permute.xlu0 %415
      %v418 = vsel %vm167, %v414, 0
      %v421 = vsel %vm185, %v416, 0
      %423 = vmatprep.subr.bf16.mxu0 0
      %424 = vmatpush1.bf16.msra.mxu0 0
      %425 = vmatprep.subr.bf16.mxu0 0
      %426 = vmatpush1.bf16.msra.mxu0 0
      %427 = vmatprep.subr.bf16.mxu0 0
      %428 = vmatpush1.bf16.msra.mxu0 0
      %429 = vmatprep.subr.bf16.mxu0 0
      %430 = vmatpush1.bf16.msra.mxu0 0
      %431 = vmatprep.subr.bf16.mxu0 0
      %432 = vmatpush1.bf16.msra.mxu0 0
      %433 = vmatprep.subr.bf16.mxu0 0
      %434 = vmatpush1.bf16.msra.mxu0 0
      %435 = vmatprep.subr.bf16.mxu0 0
      %436 = vmatpush1.bf16.msra.mxu0 0
      %437 = vmatprep.subr.bf16.mxu0 0
      %438 = vmatpush1.bf16.msra.mxu0 %v421
      %439 = vmatprep.subr.bf16.mxu0 0
      %440 = vmatpush2.bf16.msra.mxu0 0
      %441 = vmatprep.subr.bf16.mxu0 0
      %442 = vmatpush2.bf16.msra.mxu0 0
      %443 = vmatprep.subr.bf16.mxu0 0
      %444 = vmatpush2.bf16.msra.mxu0 0
      %445 = vmatprep.subr.bf16.mxu0 0
      %446 = vmatpush2.bf16.msra.mxu0 0
      %447 = vmatprep.subr.bf16.mxu0 0
      %448 = vmatpush2.bf16.msra.mxu0 0
      %449 = vmatprep.subr.bf16.mxu0 0
      %450 = vmatpush2.bf16.msra.mxu0 0
      %451 = vmatprep.subr.bf16.mxu0 0
      %452 = vmatpush2.bf16.msra.mxu0 0
      %453 = vmatprep.subr.bf16.mxu0 0
      %454 = vmatpush2.bf16.msra.mxu0 0
      %455 = vmatprep.mubr.bf16.mxu0 0
      %456 = vmatmul.mubr.bf16.gmra.mxu0 %v418
      %v457 = vpop.f32.mrf.mxu0
      %v458 = vadd.f32 0.0, %v457
      %v459 = vpop.f32.mrf.mxu0
      %v460 = vpop.f32.mrf.mxu0
      %v461 = vpop.f32.mrf.mxu0
      %462 = vdwg.mxu0
      %v463 = vpack.c.bf16 %v458, %v458
      %v465 = vunpack.c.l.b16 %v463
      %v466 = vpack.c.b16 %v465, %v465
      %467 = vrot.lane.b32.xlu0 %v466, 8
      %v468 = vpop.permute.xlu0 %467
      %vm470 = vcmask 93248
      %471 = vst.msk [vmem:[%s111] sm:$0xf] %vm470, %v468
      %472 = vrot.lane.b32.xlu0 %v116, 116
      %v473 = vpop.permute.xlu0 %472
      %474 = vrot.lane.b32.xlu0 %v116, 84
      %v475 = vpop.permute.xlu0 %474
      %v477 = vsel %vm119, %v473, 0
      %v480 = vsel %vm119, %v475, 0
      %482 = vmatprep.subr.bf16.mxu0 0
      %483 = vmatpush1.bf16.xpose.msra.mxu0 0
      %484 = vmatprep.subr.bf16.mxu0 0
      %485 = vmatpush1.bf16.xpose.msra.mxu0 0
      %486 = vmatprep.subr.bf16.mxu0 0
      %487 = vmatpush1.bf16.xpose.msra.mxu0 0
      %488 = vmatprep.subr.bf16.mxu0 0
      %489 = vmatpush1.bf16.xpose.msra.mxu0 0
      %490 = vmatprep.subr.bf16.mxu0 0
      %491 = vmatpush1.bf16.xpose.msra.mxu0 0
      %492 = vmatprep.subr.bf16.mxu0 0
      %493 = vmatpush1.bf16.xpose.msra.mxu0 0
      %494 = vmatprep.subr.bf16.mxu0 0
      %495 = vmatpush1.bf16.xpose.msra.mxu0 0
      %496 = vmatprep.subr.bf16.mxu0 0
      %497 = vmatpush1.bf16.xpose.msra.mxu0 %v480
      %498 = vmatprep.subr.bf16.mxu0 0
      %499 = vmatpush2.bf16.xpose.msra.mxu0 0
      %500 = vmatprep.subr.bf16.mxu0 0
      %501 = vmatpush2.bf16.xpose.msra.mxu0 0
      %502 = vmatprep.subr.bf16.mxu0 0
      %503 = vmatpush2.bf16.xpose.msra.mxu0 0
      %504 = vmatprep.subr.bf16.mxu0 0
      %505 = vmatpush2.bf16.xpose.msra.mxu0 0
      %506 = vmatprep.subr.bf16.mxu0 0
      %507 = vmatpush2.bf16.xpose.msra.mxu0 0
      %508 = vmatprep.subr.bf16.mxu0 0
      %509 = vmatpush2.bf16.xpose.msra.mxu0 0
      %510 = vmatprep.subr.bf16.mxu0 0
      %511 = vmatpush2.bf16.xpose.msra.mxu0 0
      %512 = vmatprep.subr.bf16.mxu0 0
      %513 = vmatpush2.bf16.xpose.msra.mxu0 0
      %514 = vmatprep.mubr.bf16.mxu0 0
      %515 = vmatmul.mubr.bf16.gmra.mxu0 %v477
      %v516 = vpop.f32.mrf.mxu0
      %v517 = vadd.f32 0.0, %v516
      %v518 = vpop.f32.mrf.mxu0
      %v519 = vpop.f32.mrf.mxu0
      %v520 = vpop.f32.mrf.mxu0
      %521 = vdwg.mxu0
      %v522 = vmul.f32 %v517, 0.5
      %v523 = vsel %vm167, %v522, -inf
      %524 = vmax.xlane.f32.xlu0 %v523
      %v525 = vpop.xlane.xlu0 %524
      %v526 = vsub.f32 %v522, %v525
      %v527 = vmul.f32 %v526, 1.442695
      %v528 = vpow.pop %v527
      %v529 = vsel %vm167, %v528, 0.0
      %530 = vadd.xlane.f32.xlu0 %v529
      %v531 = vpop.xlane.xlu0 %530
      %v532 = vrcp.pop %v531
      %v533 = vmul.f32 %v528, %v532
      %v534 = vpack.c.bf16 %v533, %v533
      %535 = vrot.lane.b32.xlu0 %v116, 52
      %v536 = vpop.permute.xlu0 %535
      %v538 = vsel %vm167, %v534, 0
      %v541 = vsel %vm185, %v536, 0
      %543 = vmatprep.subr.bf16.mxu0 0
      %544 = vmatpush1.bf16.msra.mxu0 0
      %545 = vmatprep.subr.bf16.mxu0 0
      %546 = vmatpush1.bf16.msra.mxu0 0
      %547 = vmatprep.subr.bf16.mxu0 0
      %548 = vmatpush1.bf16.msra.mxu0 0
      %549 = vmatprep.subr.bf16.mxu0 0
      %550 = vmatpush1.bf16.msra.mxu0 0
      %551 = vmatprep.subr.bf16.mxu0 0
      %552 = vmatpush1.bf16.msra.mxu0 0
      %553 = vmatprep.subr.bf16.mxu0 0
      %554 = vmatpush1.bf16.msra.mxu0 0
      %555 = vmatprep.subr.bf16.mxu0 0
      %556 = vmatpush1.bf16.msra.mxu0 0
      %557 = vmatprep.subr.bf16.mxu0 0
      %558 = vmatpush1.bf16.msra.mxu0 %v541
      %559 = vmatprep.subr.bf16.mxu0 0
      %560 = vmatpush2.bf16.msra.mxu0 0
      %561 = vmatprep.subr.bf16.mxu0 0
      %562 = vmatpush2.bf16.msra.mxu0 0
      %563 = vmatprep.subr.bf16.mxu0 0
      %564 = vmatpush2.bf16.msra.mxu0 0
      %565 = vmatprep.subr.bf16.mxu0 0
      %566 = vmatpush2.bf16.msra.mxu0 0
      %567 = vmatprep.subr.bf16.mxu0 0
      %568 = vmatpush2.bf16.msra.mxu0 0
      %569 = vmatprep.subr.bf16.mxu0 0
      %570 = vmatpush2.bf16.msra.mxu0 0
      %571 = vmatprep.subr.bf16.mxu0 0
      %572 = vmatpush2.bf16.msra.mxu0 0
      %573 = vmatprep.subr.bf16.mxu0 0
      %574 = vmatpush2.bf16.msra.mxu0 0
      %575 = vmatprep.mubr.bf16.mxu0 0
      %576 = vmatmul.mubr.bf16.gmra.mxu0 %v538
      %v577 = vpop.f32.mrf.mxu0
      %v578 = vadd.f32 0.0, %v577
      %v579 = vpop.f32.mrf.mxu0
      %v580 = vpop.f32.mrf.mxu0
      %v581 = vpop.f32.mrf.mxu0
      %582 = vdwg.mxu0
      %v583 = vpack.c.bf16 %v578, %v578
      %v585 = vunpack.c.l.b16 %v583
      %v586 = vpack.c.b16 %v585, %v585
      %587 = vrot.lane.b32.xlu0 %v586, 12
      %v588 = vpop.permute.xlu0 %587
      %vm590 = vcmask 126048
      %591 = vst.msk [vmem:[%s111] sm:$0xf] %vm590, %v588
      %592 = vrot.lane.b32.xlu0 %v116, 112
      %v593 = vpop.permute.xlu0 %592
      %594 = vrot.lane.b32.xlu0 %v116, 80
      %v595 = vpop.permute.xlu0 %594
      %v597 = vsel %vm119, %v593, 0
      %v600 = vsel %vm119, %v595, 0
      %602 = vmatprep.subr.bf16.mxu0 0
      %603 = vmatpush1.bf16.xpose.msra.mxu0 0
      %604 = vmatprep.subr.bf16.mxu0 0
      %605 = vmatpush1.bf16.xpose.msra.mxu0 0
      %606 = vmatprep.subr.bf16.mxu0 0
      %607 = vmatpush1.bf16.xpose.msra.mxu0 0
      %608 = vmatprep.subr.bf16.mxu0 0
      %609 = vmatpush1.bf16.xpose.msra.mxu0 0
      %610 = vmatprep.subr.bf16.mxu0 0
      %611 = vmatpush1.bf16.xpose.msra.mxu0 0
      %612 = vmatprep.subr.bf16.mxu0 0
      %613 = vmatpush1.bf16.xpose.msra.mxu0 0
      %614 = vmatprep.subr.bf16.mxu0 0
      %615 = vmatpush1.bf16.xpose.msra.mxu0 0
      %616 = vmatprep.subr.bf16.mxu0 0
      %617 = vmatpush1.bf16.xpose.msra.mxu0 %v600
      %618 = vmatprep.subr.bf16.mxu0 0
      %619 = vmatpush2.bf16.xpose.msra.mxu0 0
      %620 = vmatprep.subr.bf16.mxu0 0
      %621 = vmatpush2.bf16.xpose.msra.mxu0 0
      %622 = vmatprep.subr.bf16.mxu0 0
      %623 = vmatpush2.bf16.xpose.msra.mxu0 0
      %624 = vmatprep.subr.bf16.mxu0 0
      %625 = vmatpush2.bf16.xpose.msra.mxu0 0
      %626 = vmatprep.subr.bf16.mxu0 0
      %627 = vmatpush2.bf16.xpose.msra.mxu0 0
      %628 = vmatprep.subr.bf16.mxu0 0
      %629 = vmatpush2.bf16.xpose.msra.mxu0 0
      %630 = vmatprep.subr.bf16.mxu0 0
      %631 = vmatpush2.bf16.xpose.msra.mxu0 0
      %632 = vmatprep.subr.bf16.mxu0 0
      %633 = vmatpush2.bf16.xpose.msra.mxu0 0
      %634 = vmatprep.mubr.bf16.mxu0 0
      %635 = vmatmul.mubr.bf16.gmra.mxu0 %v597
      %v636 = vpop.f32.mrf.mxu0
      %v637 = vadd.f32 0.0, %v636
      %v638 = vpop.f32.mrf.mxu0
      %v639 = vpop.f32.mrf.mxu0
      %v640 = vpop.f32.mrf.mxu0
      %641 = vdwg.mxu0
      %v642 = vmul.f32 %v637, 0.5
      %v643 = vsel %vm167, %v642, -inf
      %644 = vmax.xlane.f32.xlu0 %v643
      %v645 = vpop.xlane.xlu0 %644
      %v646 = vsub.f32 %v642, %v645
      %v647 = vmul.f32 %v646, 1.442695
      %v648 = vpow.pop %v647
      %v649 = vsel %vm167, %v648, 0.0
      %650 = vadd.xlane.f32.xlu0 %v649
      %v651 = vpop.xlane.xlu0 %650
      %v652 = vrcp.pop %v651
      %v653 = vmul.f32 %v648, %v652
      %v654 = vpack.c.bf16 %v653, %v653
      %655 = vrot.lane.b32.xlu0 %v116, 48
      %v656 = vpop.permute.xlu0 %655
      %v658 = vsel %vm167, %v654, 0
      %v661 = vsel %vm185, %v656, 0
      %663 = vmatprep.subr.bf16.mxu0 0
      %664 = vmatpush1.bf16.msra.mxu0 0
      %665 = vmatprep.subr.bf16.mxu0 0
      %666 = vmatpush1.bf16.msra.mxu0 0
      %667 = vmatprep.subr.bf16.mxu0 0
      %668 = vmatpush1.bf16.msra.mxu0 0
      %669 = vmatprep.subr.bf16.mxu0 0
      %670 = vmatpush1.bf16.msra.mxu0 0
      %671 = vmatprep.subr.bf16.mxu0 0
      %672 = vmatpush1.bf16.msra.mxu0 0
      %673 = vmatprep.subr.bf16.mxu0 0
      %674 = vmatpush1.bf16.msra.mxu0 0
      %675 = vmatprep.subr.bf16.mxu0 0
      %676 = vmatpush1.bf16.msra.mxu0 0
      %677 = vmatprep.subr.bf16.mxu0 0
      %678 = vmatpush1.bf16.msra.mxu0 %v661
      %679 = vmatprep.subr.bf16.mxu0 0
      %680 = vmatpush2.bf16.msra.mxu0 0
      %681 = vmatprep.subr.bf16.mxu0 0
      %682 = vmatpush2.bf16.msra.mxu0 0
      %683 = vmatprep.subr.bf16.mxu0 0
      %684 = vmatpush2.bf16.msra.mxu0 0
      %685 = vmatprep.subr.bf16.mxu0 0
      %686 = vmatpush2.bf16.msra.mxu0 0
      %687 = vmatprep.subr.bf16.mxu0 0
      %688 = vmatpush2.bf16.msra.mxu0 0
      %689 = vmatprep.subr.bf16.mxu0 0
      %690 = vmatpush2.bf16.msra.mxu0 0
      %691 = vmatprep.subr.bf16.mxu0 0
      %692 = vmatpush2.bf16.msra.mxu0 0
      %693 = vmatprep.subr.bf16.mxu0 0
      %694 = vmatpush2.bf16.msra.mxu0 0
      %695 = vmatprep.mubr.bf16.mxu0 0
      %696 = vmatmul.mubr.bf16.gmra.mxu0 %v658
      %v697 = vpop.f32.mrf.mxu0
      %v698 = vadd.f32 0.0, %v697
      %v699 = vpop.f32.mrf.mxu0
      %v700 = vpop.f32.mrf.mxu0
      %v701 = vpop.f32.mrf.mxu0
      %702 = vdwg.mxu0
      %v703 = vpack.c.bf16 %v698, %v698
      %v705 = vunpack.c.l.b16 %v703
      %v706 = vpack.c.b16 %v705, %v705
      %707 = vrot.lane.b32.xlu0 %v706, 16
      %v708 = vpop.permute.xlu0 %707
      %vm710 = vcmask 158848
      %711 = vst.msk [vmem:[%s111] sm:$0xf] %vm710, %v708
      %712 = vrot.lane.b32.xlu0 %v116, 108
      %v713 = vpop.permute.xlu0 %712
      %714 = vrot.lane.b32.xlu0 %v116, 76
      %v715 = vpop.permute.xlu0 %714
      %v717 = vsel %vm119, %v713, 0
      %v720 = vsel %vm119, %v715, 0
      %722 = vmatprep.subr.bf16.mxu0 0
      %723 = vmatpush1.bf16.xpose.msra.mxu0 0
      %724 = vmatprep.subr.bf16.mxu0 0
      %725 = vmatpush1.bf16.xpose.msra.mxu0 0
      %726 = vmatprep.subr.bf16.mxu0 0
      %727 = vmatpush1.bf16.xpose.msra.mxu0 0
      %728 = vmatprep.subr.bf16.mxu0 0
      %729 = vmatpush1.bf16.xpose.msra.mxu0 0
      %730 = vmatprep.subr.bf16.mxu0 0
      %731 = vmatpush1.bf16.xpose.msra.mxu0 0
      %732 = vmatprep.subr.bf16.mxu0 0
      %733 = vmatpush1.bf16.xpose.msra.mxu0 0
      %734 = vmatprep.subr.bf16.mxu0 0
      %735 = vmatpush1.bf16.xpose.msra.mxu0 0
      %736 = vmatprep.subr.bf16.mxu0 0
      %737 = vmatpush1.bf16.xpose.msra.mxu0 %v720
      %738 = vmatprep.subr.bf16.mxu0 0
      %739 = vmatpush2.bf16.xpose.msra.mxu0 0
      %740 = vmatprep.subr.bf16.mxu0 0
      %741 = vmatpush2.bf16.xpose.msra.mxu0 0
      %742 = vmatprep.subr.bf16.mxu0 0
      %743 = vmatpush2.bf16.xpose.msra.mxu0 0
      %744 = vmatprep.subr.bf16.mxu0 0
      %745 = vmatpush2.bf16.xpose.msra.mxu0 0
      %746 = vmatprep.subr.bf16.mxu0 0
      %747 = vmatpush2.bf16.xpose.msra.mxu0 0
      %748 = vmatprep.subr.bf16.mxu0 0
      %749 = vmatpush2.bf16.xpose.msra.mxu0 0
      %750 = vmatprep.subr.bf16.mxu0 0
      %751 = vmatpush2.bf16.xpose.msra.mxu0 0
      %752 = vmatprep.subr.bf16.mxu0 0
      %753 = vmatpush2.bf16.xpose.msra.mxu0 0
      %754 = vmatprep.mubr.bf16.mxu0 0
      %755 = vmatmul.mubr.bf16.gmra.mxu0 %v717
      %v756 = vpop.f32.mrf.mxu0
      %v757 = vadd.f32 0.0, %v756
      %v758 = vpop.f32.mrf.mxu0
      %v759 = vpop.f32.mrf.mxu0
      %v760 = vpop.f32.mrf.mxu0
      %761 = vdwg.mxu0
      %v762 = vmul.f32 %v757, 0.5
      %v763 = vsel %vm167, %v762, -inf
      %764 = vmax.xlane.f32.xlu0 %v763
      %v765 = vpop.xlane.xlu0 %764
      %v766 = vsub.f32 %v762, %v765
      %v767 = vmul.f32 %v766, 1.442695
      %v768 = vpow.pop %v767
      %v769 = vsel %vm167, %v768, 0.0
      %770 = vadd.xlane.f32.xlu0 %v769
      %v771 = vpop.xlane.xlu0 %770
      %v772 = vrcp.pop %v771
      %v773 = vmul.f32 %v768, %v772
      %v774 = vpack.c.bf16 %v773, %v773
      %775 = vrot.lane.b32.xlu0 %v116, 44
      %v776 = vpop.permute.xlu0 %775
      %v778 = vsel %vm167, %v774, 0
      %v781 = vsel %vm185, %v776, 0
      %783 = vmatprep.subr.bf16.mxu0 0
      %784 = vmatpush1.bf16.msra.mxu0 0
      %785 = vmatprep.subr.bf16.mxu0 0
      %786 = vmatpush1.bf16.msra.mxu0 0
      %787 = vmatprep.subr.bf16.mxu0 0
      %788 = vmatpush1.bf16.msra.mxu0 0
      %789 = vmatprep.subr.bf16.mxu0 0
      %790 = vmatpush1.bf16.msra.mxu0 0
      %791 = vmatprep.subr.bf16.mxu0 0
      %792 = vmatpush1.bf16.msra.mxu0 0
      %793 = vmatprep.subr.bf16.mxu0 0
      %794 = vmatpush1.bf16.msra.mxu0 0
      %795 = vmatprep.subr.bf16.mxu0 0
      %796 = vmatpush1.bf16.msra.mxu0 0
      %797 = vmatprep.subr.bf16.mxu0 0
      %798 = vmatpush1.bf16.msra.mxu0 %v781
      %799 = vmatprep.subr.bf16.mxu0 0
      %800 = vmatpush2.bf16.msra.mxu0 0
      %801 = vmatprep.subr.bf16.mxu0 0
      %802 = vmatpush2.bf16.msra.mxu0 0
      %803 = vmatprep.subr.bf16.mxu0 0
      %804 = vmatpush2.bf16.msra.mxu0 0
      %805 = vmatprep.subr.bf16.mxu0 0
      %806 = vmatpush2.bf16.msra.mxu0 0
      %807 = vmatprep.subr.bf16.mxu0 0
      %808 = vmatpush2.bf16.msra.mxu0 0
      %809 = vmatprep.subr.bf16.mxu0 0
      %810 = vmatpush2.bf16.msra.mxu0 0
      %811 = vmatprep.subr.bf16.mxu0 0
      %812 = vmatpush2.bf16.msra.mxu0 0
      %813 = vmatprep.subr.bf16.mxu0 0
      %814 = vmatpush2.bf16.msra.mxu0 0
      %815 = vmatprep.mubr.bf16.mxu0 0
      %816 = vmatmul.mubr.bf16.gmra.mxu0 %v778
      %v817 = vpop.f32.mrf.mxu0
      %v818 = vadd.f32 0.0, %v817
      %v819 = vpop.f32.mrf.mxu0
      %v820 = vpop.f32.mrf.mxu0
      %v821 = vpop.f32.mrf.mxu0
      %822 = vdwg.mxu0
      %v823 = vpack.c.bf16 %v818, %v818
      %v825 = vunpack.c.l.b16 %v823
      %v826 = vpack.c.b16 %v825, %v825
      %827 = vrot.lane.b32.xlu0 %v826, 20
      %v828 = vpop.permute.xlu0 %827
      %vm830 = vcmask 191648
      %831 = vst.msk [vmem:[%s111] sm:$0xf] %vm830, %v828
      %832 = vrot.lane.b32.xlu0 %v116, 104
      %v833 = vpop.permute.xlu0 %832
      %834 = vrot.lane.b32.xlu0 %v116, 72
      %v835 = vpop.permute.xlu0 %834
      %v837 = vsel %vm119, %v833, 0
      %v840 = vsel %vm119, %v835, 0
      %842 = vmatprep.subr.bf16.mxu0 0
      %843 = vmatpush1.bf16.xpose.msra.mxu0 0
      %844 = vmatprep.subr.bf16.mxu0 0
      %845 = vmatpush1.bf16.xpose.msra.mxu0 0
      %846 = vmatprep.subr.bf16.mxu0 0
      %847 = vmatpush1.bf16.xpose.msra.mxu0 0
      %848 = vmatprep.subr.bf16.mxu0 0
      %849 = vmatpush1.bf16.xpose.msra.mxu0 0
      %850 = vmatprep.subr.bf16.mxu0 0
      %851 = vmatpush1.bf16.xpose.msra.mxu0 0
      %852 = vmatprep.subr.bf16.mxu0 0
      %853 = vmatpush1.bf16.xpose.msra.mxu0 0
      %854 = vmatprep.subr.bf16.mxu0 0
      %855 = vmatpush1.bf16.xpose.msra.mxu0 0
      %856 = vmatprep.subr.bf16.mxu0 0
      %857 = vmatpush1.bf16.xpose.msra.mxu0 %v840
      %858 = vmatprep.subr.bf16.mxu0 0
      %859 = vmatpush2.bf16.xpose.msra.mxu0 0
      %860 = vmatprep.subr.bf16.mxu0 0
      %861 = vmatpush2.bf16.xpose.msra.mxu0 0
      %862 = vmatprep.subr.bf16.mxu0 0
      %863 = vmatpush2.bf16.xpose.msra.mxu0 0
      %864 = vmatprep.subr.bf16.mxu0 0
      %865 = vmatpush2.bf16.xpose.msra.mxu0 0
      %866 = vmatprep.subr.bf16.mxu0 0
      %867 = vmatpush2.bf16.xpose.msra.mxu0 0
      %868 = vmatprep.subr.bf16.mxu0 0
      %869 = vmatpush2.bf16.xpose.msra.mxu0 0
      %870 = vmatprep.subr.bf16.mxu0 0
      %871 = vmatpush2.bf16.xpose.msra.mxu0 0
      %872 = vmatprep.subr.bf16.mxu0 0
      %873 = vmatpush2.bf16.xpose.msra.mxu0 0
      %874 = vmatprep.mubr.bf16.mxu0 0
      %875 = vmatmul.mubr.bf16.gmra.mxu0 %v837
      %v876 = vpop.f32.mrf.mxu0
      %v877 = vadd.f32 0.0, %v876
      %v878 = vpop.f32.mrf.mxu0
      %v879 = vpop.f32.mrf.mxu0
      %v880 = vpop.f32.mrf.mxu0
      %881 = vdwg.mxu0
      %v882 = vmul.f32 %v877, 0.5
      %v883 = vsel %vm167, %v882, -inf
      %884 = vmax.xlane.f32.xlu0 %v883
      %v885 = vpop.xlane.xlu0 %884
      %v886 = vsub.f32 %v882, %v885
      %v887 = vmul.f32 %v886, 1.442695
      %v888 = vpow.pop %v887
      %v889 = vsel %vm167, %v888, 0.0
      %890 = vadd.xlane.f32.xlu0 %v889
      %v891 = vpop.xlane.xlu0 %890
      %v892 = vrcp.pop %v891
      %v893 = vmul.f32 %v888, %v892
      %v894 = vpack.c.bf16 %v893, %v893
      %895 = vrot.lane.b32.xlu0 %v116, 40
      %v896 = vpop.permute.xlu0 %895
      %v898 = vsel %vm167, %v894, 0
      %v901 = vsel %vm185, %v896, 0
      %903 = vmatprep.subr.bf16.mxu0 0
      %904 = vmatpush1.bf16.msra.mxu0 0
      %905 = vmatprep.subr.bf16.mxu0 0
      %906 = vmatpush1.bf16.msra.mxu0 0
      %907 = vmatprep.subr.bf16.mxu0 0
      %908 = vmatpush1.bf16.msra.mxu0 0
      %909 = vmatprep.subr.bf16.mxu0 0
      %910 = vmatpush1.bf16.msra.mxu0 0
      %911 = vmatprep.subr.bf16.mxu0 0
      %912 = vmatpush1.bf16.msra.mxu0 0
      %913 = vmatprep.subr.bf16.mxu0 0
      %914 = vmatpush1.bf16.msra.mxu0 0
      %915 = vmatprep.subr.bf16.mxu0 0
      %916 = vmatpush1.bf16.msra.mxu0 0
      %917 = vmatprep.subr.bf16.mxu0 0
      %918 = vmatpush1.bf16.msra.mxu0 %v901
      %919 = vmatprep.subr.bf16.mxu0 0
      %920 = vmatpush2.bf16.msra.mxu0 0
      %921 = vmatprep.subr.bf16.mxu0 0
      %922 = vmatpush2.bf16.msra.mxu0 0
      %923 = vmatprep.subr.bf16.mxu0 0
      %924 = vmatpush2.bf16.msra.mxu0 0
      %925 = vmatprep.subr.bf16.mxu0 0
      %926 = vmatpush2.bf16.msra.mxu0 0
      %927 = vmatprep.subr.bf16.mxu0 0
      %928 = vmatpush2.bf16.msra.mxu0 0
      %929 = vmatprep.subr.bf16.mxu0 0
      %930 = vmatpush2.bf16.msra.mxu0 0
      %931 = vmatprep.subr.bf16.mxu0 0
      %932 = vmatpush2.bf16.msra.mxu0 0
      %933 = vmatprep.subr.bf16.mxu0 0
      %934 = vmatpush2.bf16.msra.mxu0 0
      %935 = vmatprep.mubr.bf16.mxu0 0
      %936 = vmatmul.mubr.bf16.gmra.mxu0 %v898
      %v937 = vpop.f32.mrf.mxu0
      %v938 = vadd.f32 0.0, %v937
      %v939 = vpop.f32.mrf.mxu0
      %v940 = vpop.f32.mrf.mxu0
      %v941 = vpop.f32.mrf.mxu0
      %942 = vdwg.mxu0
      %v943 = vpack.c.bf16 %v938, %v938
      %v945 = vunpack.c.l.b16 %v943
      %v946 = vpack.c.b16 %v945, %v945
      %947 = vrot.lane.b32.xlu0 %v946, 24
      %v948 = vpop.permute.xlu0 %947
      %vm950 = vcmask 224448
      %951 = vst.msk [vmem:[%s111] sm:$0xf] %vm950, %v948
      %952 = vrot.lane.b32.xlu0 %v116, 100
      %v953 = vpop.permute.xlu0 %952
      %954 = vrot.lane.b32.xlu0 %v116, 68
      %v955 = vpop.permute.xlu0 %954
      %v957 = vsel %vm119, %v953, 0
      %v960 = vsel %vm119, %v955, 0
      %962 = vmatprep.subr.bf16.mxu0 0
      %963 = vmatpush1.bf16.xpose.msra.mxu0 0
      %964 = vmatprep.subr.bf16.mxu0 0
      %965 = vmatpush1.bf16.xpose.msra.mxu0 0
      %966 = vmatprep.subr.bf16.mxu0 0
      %967 = vmatpush1.bf16.xpose.msra.mxu0 0
      %968 = vmatprep.subr.bf16.mxu0 0
      %969 = vmatpush1.bf16.xpose.msra.mxu0 0
      %970 = vmatprep.subr.bf16.mxu0 0
      %971 = vmatpush1.bf16.xpose.msra.mxu0 0
      %972 = vmatprep.subr.bf16.mxu0 0
      %973 = vmatpush1.bf16.xpose.msra.mxu0 0
      %974 = vmatprep.subr.bf16.mxu0 0
      %975 = vmatpush1.bf16.xpose.msra.mxu0 0
      %976 = vmatprep.subr.bf16.mxu0 0
      %977 = vmatpush1.bf16.xpose.msra.mxu0 %v960
      %978 = vmatprep.subr.bf16.mxu0 0
      %979 = vmatpush2.bf16.xpose.msra.mxu0 0
      %980 = vmatprep.subr.bf16.mxu0 0
      %981 = vmatpush2.bf16.xpose.msra.mxu0 0
      %982 = vmatprep.subr.bf16.mxu0 0
      %983 = vmatpush2.bf16.xpose.msra.mxu0 0
      %984 = vmatprep.subr.bf16.mxu0 0
      %985 = vmatpush2.bf16.xpose.msra.mxu0 0
      %986 = vmatprep.subr.bf16.mxu0 0
      %987 = vmatpush2.bf16.xpose.msra.mxu0 0
      %988 = vmatprep.subr.bf16.mxu0 0
      %989 = vmatpush2.bf16.xpose.msra.mxu0 0
      %990 = vmatprep.subr.bf16.mxu0 0
      %991 = vmatpush2.bf16.xpose.msra.mxu0 0
      %992 = vmatprep.subr.bf16.mxu0 0
      %993 = vmatpush2.bf16.xpose.msra.mxu0 0
      %994 = vmatprep.mubr.bf16.mxu0 0
      %995 = vmatmul.mubr.bf16.gmra.mxu0 %v957
      %v996 = vpop.f32.mrf.mxu0
      %v997 = vadd.f32 0.0, %v996
      %v998 = vpop.f32.mrf.mxu0
      %v999 = vpop.f32.mrf.mxu0
      %v1000 = vpop.f32.mrf.mxu0
      %1001 = vdwg.mxu0
      %v1002 = vmul.f32 %v997, 0.5
      %v1003 = vsel %vm167, %v1002, -inf
      %1004 = vmax.xlane.f32.xlu0 %v1003
      %v1005 = vpop.xlane.xlu0 %1004
      %v1006 = vsub.f32 %v1002, %v1005
      %v1007 = vmul.f32 %v1006, 1.442695
      %v1008 = vpow.pop %v1007
      %v1009 = vsel %vm167, %v1008, 0.0
      %1010 = vadd.xlane.f32.xlu0 %v1009
      %v1011 = vpop.xlane.xlu0 %1010
      %v1012 = vrcp.pop %v1011
      %v1013 = vmul.f32 %v1008, %v1012
      %v1014 = vpack.c.bf16 %v1013, %v1013
      %1015 = vrot.lane.b32.xlu0 %v116, 36
      %v1016 = vpop.permute.xlu0 %1015
      %v1018 = vsel %vm167, %v1014, 0
      %v1021 = vsel %vm185, %v1016, 0
      %1023 = vmatprep.subr.bf16.mxu0 0
      %1024 = vmatpush1.bf16.msra.mxu0 0
      %1025 = vmatprep.subr.bf16.mxu0 0
      %1026 = vmatpush1.bf16.msra.mxu0 0
      %1027 = vmatprep.subr.bf16.mxu0 0
      %1028 = vmatpush1.bf16.msra.mxu0 0
      %1029 = vmatprep.subr.bf16.mxu0 0
      %1030 = vmatpush1.bf16.msra.mxu0 0
      %1031 = vmatprep.subr.bf16.mxu0 0
      %1032 = vmatpush1.bf16.msra.mxu0 0
      %1033 = vmatprep.subr.bf16.mxu0 0
      %1034 = vmatpush1.bf16.msra.mxu0 0
      %1035 = vmatprep.subr.bf16.mxu0 0
      %1036 = vmatpush1.bf16.msra.mxu0 0
      %1037 = vmatprep.subr.bf16.mxu0 0
      %1038 = vmatpush1.bf16.msra.mxu0 %v1021
      %1039 = vmatprep.subr.bf16.mxu0 0
      %1040 = vmatpush2.bf16.msra.mxu0 0
      %1041 = vmatprep.subr.bf16.mxu0 0
      %1042 = vmatpush2.bf16.msra.mxu0 0
      %1043 = vmatprep.subr.bf16.mxu0 0
      %1044 = vmatpush2.bf16.msra.mxu0 0
      %1045 = vmatprep.subr.bf16.mxu0 0
      %1046 = vmatpush2.bf16.msra.mxu0 0
      %1047 = vmatprep.subr.bf16.mxu0 0
      %1048 = vmatpush2.bf16.msra.mxu0 0
      %1049 = vmatprep.subr.bf16.mxu0 0
      %1050 = vmatpush2.bf16.msra.mxu0 0
      %1051 = vmatprep.subr.bf16.mxu0 0
      %1052 = vmatpush2.bf16.msra.mxu0 0
      %1053 = vmatprep.subr.bf16.mxu0 0
      %1054 = vmatpush2.bf16.msra.mxu0 0
      %1055 = vmatprep.mubr.bf16.mxu0 0
      %1056 = vmatmul.mubr.bf16.gmra.mxu0 %v1018
      %v1057 = vpop.f32.mrf.mxu0
      %v1058 = vadd.f32 0.0, %v1057
      %v1059 = vpop.f32.mrf.mxu0
      %v1060 = vpop.f32.mrf.mxu0
      %v1061 = vpop.f32.mrf.mxu0
      %1062 = vdwg.mxu0
      %v1063 = vpack.c.bf16 %v1058, %v1058
      %v1065 = vunpack.c.l.b16 %v1063
      %v1066 = vpack.c.b16 %v1065, %v1065
      %1067 = vrot.lane.b32.xlu0 %v1066, 28
      %v1068 = vpop.permute.xlu0 %1067
      %vm1070 = vcmask 257248
      %1071 = vst.msk [vmem:[%s111] sm:$0xf] %vm1070, %v1068
      %p1072 = scmp.lt.s32.totalorder %s12, 1
      %s1073 = scalar_select %p1072, %s12, 1
      %s1074 = smul.addr %s1073, 4
      %s1075 = scalar_lea.vmem %s1, %s1074
      // Predicated region
      $region25: #{transformer_encoder_forward.14} parent=23 // pred_check
        %p1076 = pneg %p56
      $region26: #{transformer_encoder_forward.14} parent=23 // pred_check_branch
        %1078 = sbr.rel (%p1076) target = $region28
      $region27: #{transformer_encoder_forward.14} parent=23 // pred_region
        _
      $region28: #{transformer_encoder_forward.14} parent=23 // pred_fallthru
        _
    $region24: #{transformer_encoder_forward.14} parent=5 // pred_fallthru
      _
    %p1079 = scmp.le.s32.totalorder 2, %s7
    // Predicated region
    $region29: #{transformer_encoder_forward.14} parent=5 // pred_check
      %p1080 = pneg %p1079
    $region30: #{transformer_encoder_forward.14} parent=5 // pred_check_branch
      %1082 = sbr.rel (%p1080) target = $region32
    $region31: #{transformer_encoder_forward.14} parent=5 // pred_region
      %s1083 = ssub.s32 %s7, 2
      // Predicated region
      $region33: #{transformer_encoder_forward.14} parent=31 // pred_check
        %p1084 = pneg %p62
      $region34: #{transformer_encoder_forward.14} parent=31 // pred_check_branch
        %1086 = sbr.rel (%p1084) target = $region36
      $region35: #{transformer_encoder_forward.14} parent=31 // pred_region
        %p1087 = scmp.lt.s32.totalorder %s13, 1
        %s1088 = scalar_select %p1087, %s13, 1
        %s1089 = smul.addr %s1088, 4
        %s1090 = scalar_lea.vmem %s1, %s1089
      $region36: #{transformer_encoder_forward.14} parent=31 // pred_fallthru
        _
    $region32: #{transformer_encoder_forward.14} parent=5 // pred_fallthru
      _
  $region6: #{transformer_encoder_forward.14} parent=0 // loop_footer
    %s11 = sadd.s32 1, %s7
  $region7: #{transformer_encoder_forward.14} parent=0 // loop_footer_branch
    %6 = sbr.rel target = $region3
  $region8: #{transformer_encoder_forward.14} parent=0 // loop_exit
    _

// kernel: transformer_encoder_forward.23
$region0: #{transformer_encoder_forward.23}
  #allocation0 [shape = 'u32[]', space=smem, size = 0x4, offset = 0x4, fixed_abs, tag = 'smem constant byte address 0x4 - core index']
  #allocation1 [shape = 'u32[144,128]{1,0:T(1,128)}', space=vmem, size = 0x12000, scoped, tag = 'internal scratch']
  %s0 = inlined_call_operand.vmem [shape: f32[16,32], index: 0, kind: input, shape index: {}]
  %s1 = inlined_call_operand.vmem [shape: f32[1,32], index: 1, kind: input, shape index: {}]
  %s2 = inlined_call_operand.vmem [shape: f32[1,32], index: 2, kind: input, shape index: {}]
  %s3 = inlined_call_operand.hbm [shape: f32[16,32], index: 3, kind: output, shape index: {}]
  %s4 = sld [smem:[#allocation0]]
  $region22: #{transformer_encoder_forward.23} parent=0
    _
  %s6 = ssub.s32 1, %s4
  %s7 = scalar_select 0, %s6, %s4
  $region1: #{transformer_encoder_forward.23} parent=0
    #allocation2 [shape = 'u8[8192]{0}', space=vmem, size = 0x2000, scoped, tag = 'output window, operand 0, single buffered']
    #allocation3 [shape = 's32[1]{0}', space=sflag, size = 0x4, scoped, tag = 'scoped memory for transformer_encoder_forward.23']
    %8 = vsyncpa [#allocation3], 0
    // Predicated region
    $region2: #{transformer_encoder_forward.23} parent=1 // pred_check
      _
    $region3: #{transformer_encoder_forward.23} parent=1 // pred_check_branch
      %10 = sbr.rel (0) target = $region5
    $region4: #{transformer_encoder_forward.23} parent=1 // pred_region
      _
    $region5: #{transformer_encoder_forward.23} parent=1 // pred_fallthru
      _
    // Predicated region
    $region6: #{transformer_encoder_forward.23} parent=1 // pred_check
      _
    $region7: #{transformer_encoder_forward.23} parent=1 // pred_check_branch
      %12 = sbr.rel (0) target = $region9
    $region8: #{transformer_encoder_forward.23} parent=1 // pred_region
      _
    $region9: #{transformer_encoder_forward.23} parent=1 // pred_fallthru
      _
    // Predicated region
    $region10: #{transformer_encoder_forward.23} parent=1 // pred_check
      _
    $region11: #{transformer_encoder_forward.23} parent=1 // pred_check_branch
      %14 = sbr.rel (0) target = $region13
    $region12: #{transformer_encoder_forward.23} parent=1 // pred_region
      _
    $region13: #{transformer_encoder_forward.23} parent=1 // pred_fallthru
      _
    %v15 = vld [vmem:[%s0] sm:$0xff]
    %v16 = vld [vmem:[%s0 + $0x8] sm:$0xff]
    %vm17 = vcmask 261120
    %v18 = vsel %vm17, %v15, 0.0
    %19 = vadd.xlane.f32.xlu0 %v18
    %v20 = vpop.xlane.xlu0 %19
    %v21 = vsel %vm17, %v16, 0.0
    %22 = vadd.xlane.f32.xlu0 %v21
    %v23 = vpop.xlane.xlu0 %22
    %v24 = vrcp.pop 32.0
    %v25 = vmul.f32 %v20, %v24
    %v26 = vmul.f32 %v23, %v24
    %v27 = vsub.f32 %v15, %v25
    %v28 = vsub.f32 %v16, %v26
    %v29 = vmul.f32 %v27, %v27
    %v30 = vmul.f32 %v28, %v28
    %v31 = vsel %vm17, %v29, 0.0
    %32 = vadd.xlane.f32.xlu0 %v31
    %v33 = vpop.xlane.xlu0 %32
    %v34 = vsel %vm17, %v30, 0.0
    %35 = vadd.xlane.f32.xlu0 %v34
    %v36 = vpop.xlane.xlu0 %35
    %v37 = vmul.f32 %v33, %v24
    %v38 = vmul.f32 %v36, %v24
    %v39 = vadd.f32 %v37, 1e-05
    %v40 = vadd.f32 %v38, 1e-05
    %v41 = vrsqrt.pop %v39
    %v42 = vrsqrt.pop %v40
    %v43 = vmul.f32 %v27, %v41
    %v44 = vmul.f32 %v28, %v42
    %v45 = vld [vmem:[%s1] sm:$0x1]
    %v47 = vlaneseq
    %v48 = vshrl.u32 %v47, 7
    %v49 = vsub.s32 0, %v48
    %v50 = vrot.slane %v45, %v49
    %v52 = vmul.f32 %v43, %v50
    %v53 = vmul.f32 %v44, %v50
    %v54 = vld [vmem:[%s2] sm:$0x1]
    %v56 = vlaneseq
    %v57 = vshrl.u32 %v56, 7
    %v58 = vsub.s32 0, %v57
    %v59 = vrot.slane %v54, %v58
    %v61 = vadd.f32 %v52, %v59
    %v62 = vadd.f32 %v53, %v59
    %63 = vst.msk [vmem:[#allocation2] sm:$0xff] %vm17, %v61
    %64 = vst.msk [vmem:[#allocation2 + $0x8] sm:$0xff] %vm17, %v62
    // Predicated region
    $region14: #{transformer_encoder_forward.23} parent=1 // pred_check
      _
    $region15: #{transformer_encoder_forward.23} parent=1 // pred_check_branch
      %66 = sbr.rel (0) target = $region17
    $region16: #{transformer_encoder_forward.23} parent=1 // pred_region
      %s68 = ssub.s32 256, 256
      %69 = vsyncadd [#allocation3], %s68
      %s70 = sshll.u32 [#allocation2], 4
      %s71 = int_to_ptr.vmem [resolvable:$true] %s70
      %76 = dma.vmem_to_hbm [thread:$0]  %s71, 256, %s3, [#allocation3], 128, 128, 8
    $region17: #{transformer_encoder_forward.23} parent=1 // pred_fallthru
      _
    // Predicated region
    $region18: #{transformer_encoder_forward.23} parent=1 // pred_check
      _
    $region19: #{transformer_encoder_forward.23} parent=1 // pred_check_branch
      %78 = sbr.rel (0) target = $region21
    $region20: #{transformer_encoder_forward.23} parent=1 // pred_region
      %79 = dma.done [#allocation3], 256
    $region21: #{transformer_encoder_forward.23} parent=1 // pred_fallthru
      _
    %80 = vsyncpa [#allocation3], 1

// kernel: transformer_encoder_forward.16
$region0: #{transformer_encoder_forward.16}
  #allocation0 [shape = 'u32[]', space=smem, size = 0x4, offset = 0x4, fixed_abs, tag = 'smem constant byte address 0x4 - core index']
  #allocation1 [shape = 'u32[144,128]{1,0:T(1,128)}', space=vmem, size = 0x12000, scoped, tag = 'internal scratch']
  %s0 = inlined_call_operand.vmem [shape: f32[16,32], index: 0, kind: input, shape index: {}]
  %s1 = inlined_call_operand.vmem [shape: f32[1,32], index: 1, kind: input, shape index: {}]
  %s2 = inlined_call_operand.vmem [shape: f32[1,32], index: 2, kind: input, shape index: {}]
  %s3 = inlined_call_operand.vmem [shape: bf16[32,64], index: 3, kind: input, shape index: {}]
  %s4 = inlined_call_operand.vmem [shape: f32[1,64], index: 4, kind: input, shape index: {}]
  %s5 = inlined_call_operand.vmem [shape: f32[16,32], index: 5, kind: output, shape index: {0}]
  %s6 = inlined_call_operand.vmem [shape: bf16[16,64], index: 6, kind: output, shape index: {1}]
  %7 = xla_tuple %s5, %s6
  %s8 = sld [smem:[#allocation0]]
  $region38: #{transformer_encoder_forward.16} parent=0
    _
  %s10 = ssub.s32 1, %s8
  %s11 = scalar_select 0, %s10, %s8
  // Predicated region
  $region2: #{transformer_encoder_forward.16} parent=0 // pred_check
    _
  $region3: #{transformer_encoder_forward.16} parent=0 // pred_check_branch
    %13 = sbr.rel (0) target = $region5
  $region4: #{transformer_encoder_forward.16} parent=0 // pred_region
    _
  $region5: #{transformer_encoder_forward.16} parent=0 // pred_fallthru
    _
  // Predicated region
  $region6: #{transformer_encoder_forward.16} parent=0 // pred_check
    _
  $region7: #{transformer_encoder_forward.16} parent=0 // pred_check_branch
    %15 = sbr.rel (0) target = $region9
  $region8: #{transformer_encoder_forward.16} parent=0 // pred_region
    _
  $region9: #{transformer_encoder_forward.16} parent=0 // pred_fallthru
    _
  // Predicated region
  $region10: #{transformer_encoder_forward.16} parent=0 // pred_check
    _
  $region11: #{transformer_encoder_forward.16} parent=0 // pred_check_branch
    %17 = sbr.rel (0) target = $region13
  $region12: #{transformer_encoder_forward.16} parent=0 // pred_region
    _
  $region13: #{transformer_encoder_forward.16} parent=0 // pred_fallthru
    _
  // Predicated region
  $region14: #{transformer_encoder_forward.16} parent=0 // pred_check
    _
  $region15: #{transformer_encoder_forward.16} parent=0 // pred_check_branch
    %19 = sbr.rel (0) target = $region17
  $region16: #{transformer_encoder_forward.16} parent=0 // pred_region
    _
  $region17: #{transformer_encoder_forward.16} parent=0 // pred_fallthru
    _
  // Predicated region
  $region18: #{transformer_encoder_forward.16} parent=0 // pred_check
    _
  $region19: #{transformer_encoder_forward.16} parent=0 // pred_check_branch
    %21 = sbr.rel (0) target = $region21
  $region20: #{transformer_encoder_forward.16} parent=0 // pred_region
    _
  $region21: #{transformer_encoder_forward.16} parent=0 // pred_fallthru
    _
  %v23 = vld [vmem:[%s0] sm:$0xff]
  %v24 = vld [vmem:[%s0 + $0x8] sm:$0xff]
  %vm25 = vcmask 261120
  %v26 = vsel %vm25, %v23, 0.0
  %27 = vadd.xlane.f32.xlu0 %v26
  %v28 = vpop.xlane.xlu0 %27
  %v29 = vsel %vm25, %v24, 0.0
  %30 = vadd.xlane.f32.xlu0 %v29
  %v31 = vpop.xlane.xlu0 %30
  %v32 = vrcp.pop 32.0
  %v33 = vmul.f32 %v28, %v32
  %v34 = vmul.f32 %v31, %v32
  %v35 = vsub.f32 %v23, %v33
  %v36 = vsub.f32 %v24, %v34
  %v37 = vmul.f32 %v35, %v35
  %v38 = vmul.f32 %v36, %v36
  %v39 = vsel %vm25, %v37, 0.0
  %40 = vadd.xlane.f32.xlu0 %v39
  %v41 = vpop.xlane.xlu0 %40
  %v42 = vsel %vm25, %v38, 0.0
  %43 = vadd.xlane.f32.xlu0 %v42
  %v44 = vpop.xlane.xlu0 %43
  %v45 = vmul.f32 %v41, %v32
  %v46 = vmul.f32 %v44, %v32
  %v47 = vadd.f32 %v45, 1e-05
  %v48 = vadd.f32 %v46, 1e-05
  %v49 = vrsqrt.pop %v47
  %v50 = vrsqrt.pop %v48
  %v51 = vmul.f32 %v35, %v49
  %v52 = vmul.f32 %v36, %v50
  %v53 = vld [vmem:[%s1] sm:$0x1]
  %v55 = vlaneseq
  %v56 = vshrl.u32 %v55, 7
  %v57 = vsub.s32 0, %v56
  %v58 = vrot.slane %v53, %v57
  %v60 = vmul.f32 %v51, %v58
  %v61 = vmul.f32 %v52, %v58
  %v62 = vld [vmem:[%s2] sm:$0x1]
  %v64 = vlaneseq
  %v65 = vshrl.u32 %v64, 7
  %v66 = vsub.s32 0, %v65
  %v67 = vrot.slane %v62, %v66
  %v69 = vadd.f32 %v60, %v67
  %v70 = vadd.f32 %v61, %v67
  %71 = vst.msk [vmem:[%s5] sm:$0xff] %vm25, %v69
  %72 = vst.msk [vmem:[%s5 + $0x8] sm:$0xff] %vm25, %v70
  %v73 = vpack.c.bf16 %v70, %v69
  %v74 = vld [vmem:[%s3] sm:$0xf]
  %v75 = vld [vmem:[%s3 + $0x4] sm:$0xf]
  %v76 = vld [vmem:[%s3 + $0x8] sm:$0xf]
  %v77 = vld [vmem:[%s3 + $0xc] sm:$0xf]
  %v78 = vld [vmem:[%s4] sm:$0x1]
  %v80 = vlaneseq
  %v81 = vshrl.u32 %v80, 7
  %v82 = vsub.s32 0, %v81
  %v83 = vrot.slane %v78, %v82
  %v89 = vunpack.c.l.b16 %v74
  %v90 = vunpack.c.l.b16 %v75
  %v91 = vunpack.c.l.b16 %v76
  %v92 = vunpack.c.l.b16 %v77
  %v93 = vpack.c.b16 %v90, %v89
  %v94 = vpack.c.b16 %v92, %v91
  %v98 = vsel %vm25, %v73, 0
  %100 = vmatprep.subr.bf16.mxu0 0
  %101 = vmatpush1.bf16.msra.mxu0 0
  %102 = vmatprep.subr.bf16.mxu0 0
  %103 = vmatpush1.bf16.msra.mxu0 0
  %104 = vmatprep.subr.bf16.mxu0 0
  %105 = vmatpush1.bf16.msra.mxu0 0
  %106 = vmatprep.subr.bf16.mxu0 0
  %107 = vmatpush1.bf16.msra.mxu0 0
  %108 = vmatprep.subr.bf16.mxu0 0
  %109 = vmatpush1.bf16.msra.mxu0 0
  %110 = vmatprep.subr.bf16.mxu0 0
  %111 = vmatpush1.bf16.msra.mxu0 0
  %112 = vmatprep.subr.bf16.mxu0 0
  %113 = vmatpush1.bf16.msra.mxu0 %v94
  %114 = vmatprep.subr.bf16.mxu0 0
  %115 = vmatpush1.bf16.msra.mxu0 %v93
  %116 = vmatprep.subr.bf16.mxu0 0
  %117 = vmatpush2.bf16.msra.mxu0 0
  %118 = vmatprep.subr.bf16.mxu0 0
  %119 = vmatpush2.bf16.msra.mxu0 0
  %120 = vmatprep.subr.bf16.mxu0 0
  %121 = vmatpush2.bf16.msra.mxu0 0
  %122 = vmatprep.subr.bf16.mxu0 0
  %123 = vmatpush2.bf16.msra.mxu0 0
  %124 = vmatprep.subr.bf16.mxu0 0
  %125 = vmatpush2.bf16.msra.mxu0 0
  %126 = vmatprep.subr.bf16.mxu0 0
  %127 = vmatpush2.bf16.msra.mxu0 0
  %128 = vmatprep.subr.bf16.mxu0 0
  %129 = vmatpush2.bf16.msra.mxu0 0
  %130 = vmatprep.subr.bf16.mxu0 0
  %131 = vmatpush2.bf16.msra.mxu0 0
  %132 = vmatprep.mubr.bf16.mxu0 0
  %133 = vmatmul.mubr.bf16.gmra.mxu0 %v98
  %v134 = vpop.f32.mrf.mxu0
  %v135 = vadd.f32 %v83, %v134
  %v136 = vpop.f32.mrf.mxu0
  %v137 = vpop.f32.mrf.mxu0
  %v138 = vadd.f32 %v83, %v137
  %v139 = vpop.f32.mrf.mxu0
  %140 = vdwg.mxu0
  %v141 = vmax.f32 %v135, 0.0
  %v142 = vmax.f32 %v138, 0.0
  %v143 = vpack.c.bf16 %v142, %v141
  %v145 = vunpack.c.l.b16 %v143
  %v146 = vunpack.c.h.b16 %v143
  %v147 = vpack.c.b16 %v145, %v145
  %v148 = vpack.c.b16 %v146, %v146
  %vm151 = vcmask 519168
  %152 = vst.msk [vmem:[%s6] sm:$0xf] %vm151, %v147
  %153 = vst.msk [vmem:[%s6 + $0x4] sm:$0xf] %vm151, %v148
  // Predicated region
  $region22: #{transformer_encoder_forward.16} parent=0 // pred_check
    _
  $region23: #{transformer_encoder_forward.16} parent=0 // pred_check_branch
    %155 = sbr.rel (0) target = $region25
  $region24: #{transformer_encoder_forward.16} parent=0 // pred_region
    _
  $region25: #{transformer_encoder_forward.16} parent=0 // pred_fallthru
    _
  // Predicated region
  $region26: #{transformer_encoder_forward.16} parent=0 // pred_check
    _
  $region27: #{transformer_encoder_forward.16} parent=0 // pred_check_branch
    %157 = sbr.rel (0) target = $region29
  $region28: #{transformer_encoder_forward.16} parent=0 // pred_region
    _
  $region29: #{transformer_encoder_forward.16} parent=0 // pred_fallthru
    _
  // Predicated region
  $region30: #{transformer_encoder_forward.16} parent=0 // pred_check
    _
  $region31: #{transformer_encoder_forward.16} parent=0 // pred_check_branch
    %159 = sbr.rel (0) target = $region33
  $region32: #{transformer_encoder_forward.16} parent=0 // pred_region
    _
  $region33: #{transformer_encoder_forward.16} parent=0 // pred_fallthru
    _
  // Predicated region
  $region34: #{transformer_encoder_forward.16} parent=0 // pred_check
    _
  $region35: #{transformer_encoder_forward.16} parent=0 // pred_check_branch
    %161 = sbr.rel (0) target = $region37
  $region36: #{transformer_encoder_forward.16} parent=0 // pred_region
    _
  $region37: #{transformer_encoder_forward.16} parent=0 // pred_fallthru
    _

// kernel: transformer_encoder_forward.17
$region0: #{transformer_encoder_forward.17}
  #allocation0 [shape = 'u32[]', space=smem, size = 0x4, offset = 0x4, fixed_abs, tag = 'smem constant byte address 0x4 - core index']
  #allocation1 [shape = 'u32[144,128]{1,0:T(1,128)}', space=vmem, size = 0x12000, scoped, tag = 'internal scratch']
  #allocation2 [shape = 'f32[16,32]{1,0:T(8,128)}', space=vmem, size = 0x2000, scoped, tag = 'scratch operand']
  %s0 = inlined_call_operand.vmem [shape: bf16[16,64], index: 0, kind: input, shape index: {}]
  %s1 = inlined_call_operand.vmem [shape: bf16[64,32], index: 1, kind: input, shape index: {}]
  %s2 = inlined_call_operand.vmem [shape: f32[1,32], index: 2, kind: input, shape index: {}]
  %s3 = inlined_call_operand.vmem [shape: f32[16,32], index: 3, kind: input, shape index: {}, may-alias: {3,4}]
  %s4 = inlined_call_operand.vmem [shape: f32[16,32], index: 4, kind: output, shape index: {}, may-alias: {3,4}]
  %s5 = sld [smem:[#allocation0]]
  $region34: #{transformer_encoder_forward.17} parent=0
    _
  %s7 = ssub.s32 1, %s5
  %s8 = scalar_select 0, %s7, %s5
  // Predicated region
  $region2: #{transformer_encoder_forward.17} parent=0 // pred_check
    _
  $region3: #{transformer_encoder_forward.17} parent=0 // pred_check_branch
    %10 = sbr.rel (0) target = $region5
  $region4: #{transformer_encoder_forward.17} parent=0 // pred_region
    _
  $region5: #{transformer_encoder_forward.17} parent=0 // pred_fallthru
    _
  // Predicated region
  $region6: #{transformer_encoder_forward.17} parent=0 // pred_check
    _
  $region7: #{transformer_encoder_forward.17} parent=0 // pred_check_branch
    %12 = sbr.rel (0) target = $region9
  $region8: #{transformer_encoder_forward.17} parent=0 // pred_region
    _
  $region9: #{transformer_encoder_forward.17} parent=0 // pred_fallthru
    _
  // Predicated region
  $region10: #{transformer_encoder_forward.17} parent=0 // pred_check
    _
  $region11: #{transformer_encoder_forward.17} parent=0 // pred_check_branch
    %14 = sbr.rel (0) target = $region13
  $region12: #{transformer_encoder_forward.17} parent=0 // pred_region
    _
  $region13: #{transformer_encoder_forward.17} parent=0 // pred_fallthru
    _
  // Predicated region
  $region14: #{transformer_encoder_forward.17} parent=0 // pred_check
    _
  $region15: #{transformer_encoder_forward.17} parent=0 // pred_check_branch
    %16 = sbr.rel (0) target = $region17
  $region16: #{transformer_encoder_forward.17} parent=0 // pred_region
    _
  $region17: #{transformer_encoder_forward.17} parent=0 // pred_fallthru
    _
  %p18 = scmp.eq.s32.totalorder 0, 0
  // Predicated region
  $region18: #{transformer_encoder_forward.17} parent=0 // pred_check
    %p19 = pneg %p18
  $region19: #{transformer_encoder_forward.17} parent=0 // pred_check_branch
    %21 = sbr.rel (%p19) target = $region21
  $region20: #{transformer_encoder_forward.17} parent=0 // pred_region
    %vm22 = vcmask 261120
    %23 = vst.msk [vmem:[#allocation2] sm:$0xff] %vm22, 0.0
    %24 = vst.msk [vmem:[#allocation2 + $0x8] sm:$0xff] %vm22, 0.0
  $region21: #{transformer_encoder_forward.17} parent=0 // pred_fallthru
    _
  %v25 = vld [vmem:[#allocation2] sm:$0xff]
  %v26 = vld [vmem:[#allocation2 + $0x8] sm:$0xff]
  %v27 = vld [vmem:[%s0] sm:$0xf]
  %v28 = vld [vmem:[%s0 + $0x4] sm:$0xf]
  %v29 = vld [vmem:[%s1] sm:$0xf]
  %v30 = vld [vmem:[%s1 + $0x4] sm:$0xf]
  %v31 = vld [vmem:[%s1 + $0x8] sm:$0xf]
  %v32 = vld [vmem:[%s1 + $0xc] sm:$0xf]
  %v33 = vld [vmem:[%s1 + $0x10] sm:$0xf]
  %v34 = vld [vmem:[%s1 + $0x14] sm:$0xf]
  %v35 = vld [vmem:[%s1 + $0x18] sm:$0xf]
  %v36 = vld [vmem:[%s1 + $0x1c] sm:$0xf]
  %v39 = vunpack.c.l.b16 %v27
  %v40 = vunpack.c.l.b16 %v28
  %v41 = vpack.c.b16 %v40, %v39
  %v50 = vunpack.c.l.b16 %v29
  %v51 = vunpack.c.l.b16 %v30
  %v52 = vunpack.c.l.b16 %v31
  %v53 = vunpack.c.l.b16 %v32
  %v54 = vunpack.c.l.b16 %v33
  %v55 = vunpack.c.l.b16 %v34
  %v56 = vunpack.c.l.b16 %v35
  %v57 = vunpack.c.l.b16 %v36
  %v58 = vpack.c.b16 %v51, %v50
  %v59 = vpack.c.b16 %v53, %v52
  %v60 = vpack.c.b16 %v55, %v54
  %v61 = vpack.c.b16 %v57, %v56
  %vm66 = vcmask 523264
  %v68 = vsel %vm66, %v41, 0
  %70 = vmatprep.subr.bf16.mxu0 0
  %71 = vmatpush1.bf16.msra.mxu0 0
  %72 = vmatprep.subr.bf16.mxu0 0
  %73 = vmatpush1.bf16.msra.mxu0 0
  %74 = vmatprep.subr.bf16.mxu0 0
  %75 = vmatpush1.bf16.msra.mxu0 0
  %76 = vmatprep.subr.bf16.mxu0 0
  %77 = vmatpush1.bf16.msra.mxu0 0
  %78 = vmatprep.subr.bf16.mxu0 0
  %79 = vmatpush1.bf16.msra.mxu0 %v61
  %80 = vmatprep.subr.bf16.mxu0 0
  %81 = vmatpush1.bf16.msra.mxu0 %v60
  %82 = vmatprep.subr.bf16.mxu0 0
  %83 = vmatpush1.bf16.msra.mxu0 %v59
  %84 = vmatprep.subr.bf16.mxu0 0
  %85 = vmatpush1.bf16.msra.mxu0 %v58
  %86 = vmatprep.subr.bf16.mxu0 0
  %87 = vmatpush2.bf16.msra.mxu0 0
  %88 = vmatprep.subr.bf16.mxu0 0
  %89 = vmatpush2.bf16.msra.mxu0 0
  %90 = vmatprep.subr.bf16.mxu0 0
  %91 = vmatpush2.bf16.msra.mxu0 0
  %92 = vmatprep.subr.bf16.mxu0 0
  %93 = vmatpush2.bf16.msra.mxu0 0
  %94 = vmatprep.subr.bf16.mxu0 0
  %95 = vmatpush2.bf16.msra.mxu0 0
  %96 = vmatprep.subr.bf16.mxu0 0
  %97 = vmatpush2.bf16.msra.mxu0 0
  %98 = vmatprep.subr.bf16.mxu0 0
  %99 = vmatpush2.bf16.msra.mxu0 0
  %100 = vmatprep.subr.bf16.mxu0 0
  %101 = vmatpush2.bf16.msra.mxu0 0
  %102 = vmatprep.mubr.bf16.mxu0 0
  %103 = vmatmul.mubr.bf16.gmra.mxu0 %v68
  %v104 = vpop.f32.mrf.mxu0
  %v105 = vadd.f32 0.0, %v104
  %v106 = vpop.f32.mrf.mxu0
  %v107 = vpop.f32.mrf.mxu0
  %v108 = vadd.f32 0.0, %v107
  %v109 = vpop.f32.mrf.mxu0
  %110 = vdwg.mxu0
  %v111 = vadd.f32 %v25, %v105
  %v112 = vadd.f32 %v26, %v108
  %vm113 = vcmask 261120
  %114 = vst.msk [vmem:[#allocation2] sm:$0xff] %vm113, %v111
  %115 = vst.msk [vmem:[#allocation2 + $0x8] sm:$0xff] %vm113, %v112
  // Predicated region
  $region22: #{transformer_encoder_forward.17} parent=0 // pred_check
    %p116 = pneg %p18
  $region23: #{transformer_encoder_forward.17} parent=0 // pred_check_branch
    %118 = sbr.rel (%p116) target = $region25
  $region24: #{transformer_encoder_forward.17} parent=0 // pred_region
    %v119 = vld [vmem:[#allocation2] sm:$0xff]
    %v120 = vld [vmem:[#allocation2 + $0x8] sm:$0xff]
    %v121 = vld [vmem:[%s2] sm:$0x1]
    %v123 = vlaneseq
    %v124 = vshrl.u32 %v123, 7
    %v125 = vsub.s32 0, %v124
    %v126 = vrot.slane %v121, %v125
    %v128 = vadd.f32 %v119, %v126
    %v129 = vadd.f32 %v120, %v126
    %v130 = vld [vmem:[%s3] sm:$0xff]
    %v131 = vld [vmem:[%s3 + $0x8] sm:$0xff]
    %v132 = vadd.f32 %v128, %v130
    %v133 = vadd.f32 %v129, %v131
    %134 = vst.msk [vmem:[%s4] sm:$0xff] %vm113, %v132
    %135 = vst.msk [vmem:[%s4 + $0x8] sm:$0xff] %vm113, %v133
  $region25: #{transformer_encoder_forward.17} parent=0 // pred_fallthru
    _
  // Predicated region
  $region26: #{transformer_encoder_forward.17} parent=0 // pred_check
    _
  $region27: #{transformer_encoder_forward.17} parent=0 // pred_check_branch
    %137 = sbr.rel (0) target = $region29
  $region28: #{transformer_encoder_forward.17} parent=0 // pred_region
    _
  $region29: #{transformer_encoder_forward.17} parent=0 // pred_fallthru
    _
  // Predicated region
  $region30: #{transformer_encoder_forward.17} parent=0 // pred_check
    _
  $region31: #{transformer_encoder_forward.17} parent=0 // pred_check_branch
    %139 = sbr.rel (0) target = $region33
  $region32: #{transformer_encoder_forward.17} parent=0 // pred_region
    _
  $region33: #{transformer_encoder_forward.17} parent=0 // pred_fallthru
    _

</llo_original>
